<compile_context>
chip_gen: v7x
topology: tpu7x:2x2x1
jax: 0.10.0
libtpu: 0.0.40
codegen_flags: <defaults>
</compile_context>

<pallas_src>
import functools

import jax
import jax.numpy as jnp
from jax.experimental import pallas as pl
from jax.experimental.pallas import tpu as pltpu


# ---------------------------------------------------------------------------
# In-kernel helpers (channels-major (C, N) activations).
# ---------------------------------------------------------------------------
def _mlp2(x, w1_ref, w2_ref, b12_ref, cdt):
    """relu(W2 @ relu(W1 @ x + b1) + b2); weights BN-folded, (Cout, Cin), bf16."""
    cmid = w1_ref.shape[0]
    cout = w2_ref.shape[0]
    h = jnp.dot(w1_ref[...], x.astype(cdt), preferred_element_type=jnp.float32)
    h = jnp.maximum(h + b12_ref[0:cmid, :], 0.0)
    y = jnp.dot(w2_ref[...], h.astype(cdt), preferred_element_type=jnp.float32)
    return jnp.maximum(y + b12_ref[cmid:cmid + cout, :], 0.0)


def _sa_block(x, w_qkv_ref, gb_ref, *, groups, eps, cdt):
    """SA_block: grouped dot-product self-attention (value projection already has the
    grouped 1x1 conv `z` folded in) + GroupNorm(groups) + residual.   x: (C, N) f32."""
    C, N = x.shape
    cg = C // groups

    # One fused QKV projection: (3C, C) @ (C, N) -> (3C, N), lane-dense over N.
    qkv = jnp.dot(w_qkv_ref[...], x.astype(cdt),
                  preferred_element_type=jnp.float32)

    z_groups = []
    for gi in range(groups):                       # static unroll over heads
        r = gi * cg
        qg = qkv[r:r + cg, :].astype(cdt)                      # (cg, N) sublane slice
        kg = qkv[C + r:C + r + cg, :].astype(cdt)
        vg = qkv[2 * C + r:2 * C + r + cg, :].astype(cdt)

        # energy[i, j] = <q_i, k_j>   (no 1/sqrt(d) scaling, matching SA-Det3D)
        e = jax.lax.dot_general(qg, kg, (((0,), (0,)), ((), ())),
                                preferred_element_type=jnp.float32)   # (N, N)
        e = e - jnp.max(e, axis=-1, keepdims=True)
        a = jnp.exp(e)
        a = a * pl.reciprocal(jnp.sum(a, axis=-1, keepdims=True), approx=True)

        # z_g[c, i] = sum_j a[i, j] * v_g[c, j]   (wz already folded into v)
        zg = jax.lax.dot_general(vg, a.astype(cdt), (((1,), (1,)), ((), ())),
                                 preferred_element_type=jnp.float32)  # (cg, N)

        # GroupNorm(groups): per-group stats over the (cg, N) slab.
        mu = jnp.mean(zg)
        var = jnp.mean(jnp.square(zg - mu))
        z_groups.append((zg - mu) * jax.lax.rsqrt(var + eps))

    zn = jnp.concatenate(z_groups, axis=0)          # (C, N), sublane concat
    gamma = gb_ref[0:C, :]
    beta = gb_ref[C:2 * C, :]
    return zn * gamma + beta + x                    # per-channel affine + residual


# ---------------------------------------------------------------------------
# Fused forward kernels (one batch sample per grid step), one per branch of
# PointContext3D.add_context_to_points.
# ---------------------------------------------------------------------------
def _kernel_b3(x_ref, l1_ref, l2_ref,
               rd_w1, rd_w2, rd_b, rc_w1, rc_w2, rc_b,
               a1_wqkv, a1_gb, a2_wqkv, a2_gb,
               o_ref, *, groups, eps, cdt):
    # l_conv1 and l_conv2 both provided.
    x = x_ref[0]                                    # (IN_DIM, N), no transpose
    l1 = l1_ref[0]                                  # (ATTN, N)
    l2 = l2_ref[0]                                  # (ATTN, N)

    red = _mlp2(x, rd_w1, rd_w2, rd_b, cdt)
    ms1 = _mlp2(jnp.concatenate([l1, red], axis=0), rc_w1, rc_w2, rc_b, cdt)
    ms1c = _sa_block(ms1, a1_wqkv, a1_gb, groups=groups, eps=eps, cdt=cdt)
    ms2c = _sa_block(jnp.concatenate([l2, ms1c], axis=0),
                     a2_wqkv, a2_gb, groups=groups, eps=eps, cdt=cdt)
    o_ref[0] = _mlp2(ms2c, rc_w1, rc_w2, rc_b, cdt)  # (ATTN, N) lane-dense store


def _kernel_b2(x_ref, l1_ref,
               rd_w1, rd_w2, rd_b, rc_w1, rc_w2, rc_b,
               a1_wqkv, a1_gb, a2_wqkv, a2_gb,
               o_ref, *, groups, eps, cdt):
    # l_conv1 provided, l_conv2 is None.
    x = x_ref[0]
    l1 = l1_ref[0]

    red = _mlp2(x, rd_w1, rd_w2, rd_b, cdt)
    ctx = _sa_block(red, a1_wqkv, a1_gb, groups=groups, eps=eps, cdt=cdt)
    ctx2 = _sa_block(jnp.concatenate([l1, ctx], axis=0),
                     a2_wqkv, a2_gb, groups=groups, eps=eps, cdt=cdt)
    o_ref[0] = _mlp2(ctx2, rc_w1, rc_w2, rc_b, cdt)


def _kernel_b1(x_ref,
               rd_w1, rd_w2, rd_b,
               a1_wqkv, a1_gb, a2_wqkv, a2_gb,
               o_ref, *, groups, eps, cdt):
    # l_conv1 and l_conv2 both None (like the PyTorch module, this branch only
    # type-checks if self_attn2's channel count matches self_attn1's output).
    x = x_ref[0]
    red = _mlp2(x, rd_w1, rd_w2, rd_b, cdt)
    c = _sa_block(red, a1_wqkv, a1_gb, groups=groups, eps=eps, cdt=cdt)
    c = _sa_block(c, a2_wqkv, a2_gb, groups=groups, eps=eps, cdt=cdt)
    o_ref[0] = c


# ---------------------------------------------------------------------------
# Parameter init (deterministic, synthetic) + BN folding + kernel-ready layout.
# ---------------------------------------------------------------------------
def _fold_bn(w, b, gamma, beta, mean, var, eps=1e-5):
    s = gamma / jnp.sqrt(var + eps)
    return w * s[:, None], b * s + beta - mean * s


def init_params(key, in_dim, attn_dim, groups=4, compute_dtype=jnp.bfloat16):
    keys = jax.random.split(key, 64)
    it = iter(keys)

    def nrm(shape, scale=0.1):
        return scale * jax.random.normal(next(it), shape, dtype=jnp.float32)

    def bn_params(c):
        gamma = 1.0 + 0.1 * jax.random.normal(next(it), (c,), dtype=jnp.float32)
        beta = 0.1 * jax.random.normal(next(it), (c,), dtype=jnp.float32)
        mean = 0.1 * jax.random.normal(next(it), (c,), dtype=jnp.float32)
        var = 0.5 + jax.random.uniform(next(it), (c,), dtype=jnp.float32)
        return gamma, beta, mean, var

    def mlp2_params(cin, cmid, cout):
        w1, b1 = nrm((cmid, cin)), nrm((cmid,))
        w2, b2 = nrm((cout, cmid)), nrm((cout,))
        w1f, b1f = _fold_bn(w1, b1, *bn_params(cmid))
        w2f, b2f = _fold_bn(w2, b2, *bn_params(cout))
        # channels-major: torch Conv1d weight (Cout, Cin) is used as-is (y = W @ x);
        # both biases packed into a single (cmid + cout, 1) slab.
        return dict(w1=w1f.astype(compute_dtype),
                    w2=w2f.astype(compute_dtype),
                    b12=jnp.concatenate([b1f, b2f]).reshape(cmid + cout, 1))

    def sa_params(c):
        cg = c // groups
        wq = nrm((c, c))          # torch `p` (query) 1x1 conv weight
        wk = nrm((c, c))          # torch `g` (key)   1x1 conv weight
        wt = nrm((c, c))          # torch `t` (value) 1x1 conv weight
        wz = nrm((c, cg))         # torch grouped conv `z` weight (out, in/groups)
        # Fold the grouped 1x1 conv z into the value projection:
        #   z_g = wz_g @ (Attn_g(wt_g @ x)) = Attn_g((wz_g @ wt_g) @ x)
        wv = jnp.concatenate(
            [wz[g * cg:(g + 1) * cg, :] @ wt[g * cg:(g + 1) * cg, :]
             for g in range(groups)], axis=0)
        w_qkv = jnp.concatenate([wq, wk, wv], axis=0).astype(compute_dtype)  # (3C, C)
        gamma = 1.0 + 0.1 * jax.random.normal(next(it), (c,), dtype=jnp.float32)
        beta = 0.1 * jax.random.normal(next(it), (c,), dtype=jnp.float32)
        return dict(w_qkv=w_qkv,
                    gb=jnp.concatenate([gamma, beta]).reshape(2 * c, 1))

    return dict(
        reduce_dim=mlp2_params(in_dim, attn_dim, attn_dim),
        reduce_dim_cat=mlp2_params(2 * attn_dim, attn_dim, attn_dim),
        attn1=sa_params(attn_dim),
        attn2=sa_params(2 * attn_dim),
    )


# ---------------------------------------------------------------------------
# PointContext3D.forward — single fused pallas_call per branch.
# l_xyz is accepted but unused, as in PyTorch.
# ---------------------------------------------------------------------------
def _sample_spec(c, n):
    return pl.BlockSpec((1, c, n), lambda b: (b, 0, 0))


def _weight_spec(w):
    return pl.BlockSpec(w.shape, lambda b: (0,) * w.ndim)


def _vmem_limit_bytes(inputs, out_c, n, weights, groups):
    """Generous scoped-VMEM estimate, clamped well under v7x's 64 MiB physical VMEM."""
    io = 2 * sum(int(a.shape[1]) * n * a.dtype.itemsize for a in inputs)   # double-buffered
    io += 2 * out_c * n * 4
    wb = 2 * sum(int(w.size) * w.dtype.itemsize for w in weights)
    attn = 3 * groups * n * n * 4                 # energy + exp + attention copies
    acts = 24 * (2 * out_c) * n * 4               # rough bound on live activations
    est = 2 * (io + wb + attn + acts)
    return int(min(max(est, 32 * 1024 * 1024), 48 * 1024 * 1024))


def point_context3d_forward(params, batch_size, l_features, l_xyz,
                            l_conv1=None, l_conv2=None, *, groups=4, eps=1e-5):
    del batch_size, l_xyz
    B, in_dim, N = l_features.shape
    attn_dim = params["reduce_dim"]["w2"].shape[0]
    cdt = params["reduce_dim"]["w1"].dtype          # matmul compute dtype (bf16)

    rd, rc = params["reduce_dim"], params["reduce_dim_cat"]
    a1, a2 = params["attn1"], params["attn2"]
    mlp_w = lambda m: (m["w1"], m["w2"], m["b12"])
    sa_w = lambda s: (s["w_qkv"], s["gb"])

    if l_conv1 is None and l_conv2 is None:
        kern = functools.partial(_kernel_b1, groups=groups, eps=eps, cdt=cdt)
        inputs = (l_features,)
        weights = (*mlp_w(rd), *sa_w(a1), *sa_w(a2))
        in_specs = [_sample_spec(in_dim, N)]
        out_c = a2["w_qkv"].shape[1]
    elif l_conv1 is not None and l_conv2 is None:
        kern = functools.partial(_kernel_b2, groups=groups, eps=eps, cdt=cdt)
        inputs = (l_features, l_conv1)
        weights = (*mlp_w(rd), *mlp_w(rc), *sa_w(a1), *sa_w(a2))
        in_specs = [_sample_spec(in_dim, N), _sample_spec(l_conv1.shape[1], N)]
        out_c = attn_dim
    elif l_conv1 is not None and l_conv2 is not None:
        kern = functools.partial(_kernel_b3, groups=groups, eps=eps, cdt=cdt)
        inputs = (l_features, l_conv1, l_conv2)
        weights = (*mlp_w(rd), *mlp_w(rc), *sa_w(a1), *sa_w(a2))
        in_specs = [_sample_spec(in_dim, N),
                    _sample_spec(l_conv1.shape[1], N),
                    _sample_spec(l_conv2.shape[1], N)]
        out_c = attn_dim
    else:
        raise ValueError("l_conv1 must be provided when l_conv2 is provided")

    in_specs = in_specs + [_weight_spec(w) for w in weights]

    return pl.pallas_call(
        kern,
        out_shape=jax.ShapeDtypeStruct((B, out_c, N), jnp.float32),
        grid=(B,),
        in_specs=in_specs,
        out_specs=pl.BlockSpec((1, out_c, N), lambda b: (b, 0, 0)),
        compiler_params=pltpu.CompilerParams(
            dimension_semantics=("parallel",),
            vmem_limit_bytes=_vmem_limit_bytes(inputs, out_c, N, weights, groups)),
    )(*inputs, *weights)


if __name__ == "__main__":
    B, N = 2, 128
    IN_DIM, ATTN_DIM = 64, 32

    key = jax.random.PRNGKey(0)
    kp, kf, kxyz, k1, k2 = jax.random.split(key, 5)
    params = init_params(kp, IN_DIM, ATTN_DIM)

    l_features = jax.random.normal(kf, (B, IN_DIM, N), dtype=jnp.float32)
    l_xyz = jax.random.normal(kxyz, (B, N, 3), dtype=jnp.float32)          # unused
    l_conv1 = jax.random.normal(k1, (B, ATTN_DIM, N), dtype=jnp.float32)
    l_conv2 = jax.random.normal(k2, (B, ATTN_DIM, N), dtype=jnp.float32)

    out = point_context3d_forward(params, B, l_features, l_xyz, l_conv1, l_conv2)
    out = jax.block_until_ready(out)

    assert out.shape == (B, ATTN_DIM, N), out.shape
    assert bool(jnp.all(jnp.isfinite(out)))
    print("KERNEL_OK")
</pallas_src>

<mosaic_0001>
module attributes {stable_mosaic.version = 11 : i64} {
  func.func @_kernel_b3(%arg0: i32, %arg1: memref<1x64x128xf32, #tpu.memory_space<vmem>>, %arg2: memref<1x32x128xf32, #tpu.memory_space<vmem>>, %arg3: memref<1x32x128xf32, #tpu.memory_space<vmem>>, %arg4: memref<32x64xbf16, #tpu.memory_space<vmem>>, %arg5: memref<32x32xbf16, #tpu.memory_space<vmem>>, %arg6: memref<64x1xf32, #tpu.memory_space<vmem>>, %arg7: memref<32x64xbf16, #tpu.memory_space<vmem>>, %arg8: memref<32x32xbf16, #tpu.memory_space<vmem>>, %arg9: memref<64x1xf32, #tpu.memory_space<vmem>>, %arg10: memref<96x32xbf16, #tpu.memory_space<vmem>>, %arg11: memref<64x1xf32, #tpu.memory_space<vmem>>, %arg12: memref<192x64xbf16, #tpu.memory_space<vmem>>, %arg13: memref<128x1xf32, #tpu.memory_space<vmem>>, %arg14: memref<1x32x128xf32, #tpu.memory_space<vmem>>) attributes {dimension_semantics = [#tpu.dimension_semantics<parallel>], iteration_bounds = array<i64: 2>, scalar_prefetch = 0 : i64, scratch_operands = 0 : i64, tpu.core_type = #tpu.core_type<tc>, window_params = [{transform_indices = @transform_0, window_bounds = array<i64: 1, 64, 128>}, {transform_indices = @transform_1, window_bounds = array<i64: 1, 32, 128>}, {transform_indices = @transform_2, window_bounds = array<i64: 1, 32, 128>}, {pipeline_mode = #tpu.pipeline_mode<synchronous>, transform_indices = @transform_3, window_bounds = array<i64: 32, 64>}, {pipeline_mode = #tpu.pipeline_mode<synchronous>, transform_indices = @transform_4, window_bounds = array<i64: 32, 32>}, {pipeline_mode = #tpu.pipeline_mode<synchronous>, transform_indices = @transform_5, window_bounds = array<i64: 64, 1>}, {pipeline_mode = #tpu.pipeline_mode<synchronous>, transform_indices = @transform_6, window_bounds = array<i64: 32, 64>}, {pipeline_mode = #tpu.pipeline_mode<synchronous>, transform_indices = @transform_7, window_bounds = array<i64: 32, 32>}, {pipeline_mode = #tpu.pipeline_mode<synchronous>, transform_indices = @transform_8, window_bounds = array<i64: 64, 1>}, {pipeline_mode = #tpu.pipeline_mode<synchronous>, transform_indices = @transform_9, window_bounds = array<i64: 96, 32>}, {pipeline_mode = #tpu.pipeline_mode<synchronous>, transform_indices = @transform_10, window_bounds = array<i64: 64, 1>}, {pipeline_mode = #tpu.pipeline_mode<synchronous>, transform_indices = @transform_11, window_bounds = array<i64: 192, 64>}, {pipeline_mode = #tpu.pipeline_mode<synchronous>, transform_indices = @transform_12, window_bounds = array<i64: 128, 1>}, {transform_indices = @transform_13, window_bounds = array<i64: 1, 32, 128>}]} {
    %c0 = arith.constant 0 : index
    %c0_0 = arith.constant 0 : index
    %c0_1 = arith.constant 0 : index
    %0 = vector.load %arg1[%c0, %c0_0, %c0_1] : memref<1x64x128xf32, #tpu.memory_space<vmem>>, vector<1x64x128xf32>
    %1 = vector.shape_cast %0 : vector<1x64x128xf32> to vector<64x128xf32>
    %c0_2 = arith.constant 0 : index
    %c0_3 = arith.constant 0 : index
    %c0_4 = arith.constant 0 : index
    %2 = vector.load %arg2[%c0_2, %c0_3, %c0_4] : memref<1x32x128xf32, #tpu.memory_space<vmem>>, vector<1x32x128xf32>
    %3 = vector.shape_cast %2 : vector<1x32x128xf32> to vector<32x128xf32>
    %c0_5 = arith.constant 0 : index
    %c0_6 = arith.constant 0 : index
    %c0_7 = arith.constant 0 : index
    %4 = vector.load %arg3[%c0_5, %c0_6, %c0_7] : memref<1x32x128xf32, #tpu.memory_space<vmem>>, vector<1x32x128xf32>
    %5 = vector.shape_cast %4 : vector<1x32x128xf32> to vector<32x128xf32>
    %c0_8 = arith.constant 0 : index
    %c0_9 = arith.constant 0 : index
    %6 = vector.load %arg4[%c0_8, %c0_9] : memref<32x64xbf16, #tpu.memory_space<vmem>>, vector<32x64xbf16>
    %7 = arith.truncf %1 : vector<64x128xf32> to vector<64x128xbf16>
    %cst = arith.constant dense<0.000000e+00> : vector<32x128xf32>
    %8 = tpu.matmul %6, %7, %cst {dimension_numbers = #tpu.dot_dimension_numbers<[1], [0], [0], [1], [0, 0, 1, 1], [], []>} : vector<32x64xbf16>, vector<64x128xbf16>, vector<32x128xf32> -> vector<32x128xf32>
    %c0_10 = arith.constant 0 : index
    %c0_11 = arith.constant 0 : index
    %9 = vector.load %arg6[%c0_10, %c0_11] : memref<64x1xf32, #tpu.memory_space<vmem>>, vector<32x1xf32>
    %10 = vector.broadcast %9 : vector<32x1xf32> to vector<32x128xf32>
    %11 = arith.addf %8, %10 : vector<32x128xf32>
    %cst_12 = arith.constant 0.000000e+00 : f32
    %12 = vector.broadcast %cst_12 : f32 to vector<32x128xf32>
    %13 = arith.maximumf %11, %12 : vector<32x128xf32>
    %c0_13 = arith.constant 0 : index
    %c0_14 = arith.constant 0 : index
    %14 = vector.load %arg5[%c0_13, %c0_14] : memref<32x32xbf16, #tpu.memory_space<vmem>>, vector<32x32xbf16>
    %15 = arith.truncf %13 : vector<32x128xf32> to vector<32x128xbf16>
    %cst_15 = arith.constant dense<0.000000e+00> : vector<32x128xf32>
    %16 = tpu.matmul %14, %15, %cst_15 {dimension_numbers = #tpu.dot_dimension_numbers<[1], [0], [0], [1], [0, 0, 1, 1], [], []>} : vector<32x32xbf16>, vector<32x128xbf16>, vector<32x128xf32> -> vector<32x128xf32>
    %c32 = arith.constant 32 : index
    %c0_16 = arith.constant 0 : index
    %17 = vector.load %arg6[%c32, %c0_16] : memref<64x1xf32, #tpu.memory_space<vmem>>, vector<32x1xf32>
    %18 = vector.broadcast %17 : vector<32x1xf32> to vector<32x128xf32>
    %19 = arith.addf %16, %18 : vector<32x128xf32>
    %cst_17 = arith.constant 0.000000e+00 : f32
    %20 = vector.broadcast %cst_17 : f32 to vector<32x128xf32>
    %21 = arith.maximumf %19, %20 : vector<32x128xf32>
    %22 = tpu.concatenate %3, %21 in 0 : vector<32x128xf32>, vector<32x128xf32> -> vector<64x128xf32>
    %c0_18 = arith.constant 0 : index
    %c0_19 = arith.constant 0 : index
    %23 = vector.load %arg7[%c0_18, %c0_19] : memref<32x64xbf16, #tpu.memory_space<vmem>>, vector<32x64xbf16>
    %24 = arith.truncf %22 : vector<64x128xf32> to vector<64x128xbf16>
    %cst_20 = arith.constant dense<0.000000e+00> : vector<32x128xf32>
    %25 = tpu.matmul %23, %24, %cst_20 {dimension_numbers = #tpu.dot_dimension_numbers<[1], [0], [0], [1], [0, 0, 1, 1], [], []>} : vector<32x64xbf16>, vector<64x128xbf16>, vector<32x128xf32> -> vector<32x128xf32>
    %c0_21 = arith.constant 0 : index
    %c0_22 = arith.constant 0 : index
    %26 = vector.load %arg9[%c0_21, %c0_22] : memref<64x1xf32, #tpu.memory_space<vmem>>, vector<32x1xf32>
    %27 = vector.broadcast %26 : vector<32x1xf32> to vector<32x128xf32>
    %28 = arith.addf %25, %27 : vector<32x128xf32>
    %cst_23 = arith.constant 0.000000e+00 : f32
    %29 = vector.broadcast %cst_23 : f32 to vector<32x128xf32>
    %30 = arith.maximumf %28, %29 : vector<32x128xf32>
    %c0_24 = arith.constant 0 : index
    %c0_25 = arith.constant 0 : index
    %31 = vector.load %arg8[%c0_24, %c0_25] : memref<32x32xbf16, #tpu.memory_space<vmem>>, vector<32x32xbf16>
    %32 = arith.truncf %30 : vector<32x128xf32> to vector<32x128xbf16>
    %cst_26 = arith.constant dense<0.000000e+00> : vector<32x128xf32>
    %33 = tpu.matmul %31, %32, %cst_26 {dimension_numbers = #tpu.dot_dimension_numbers<[1], [0], [0], [1], [0, 0, 1, 1], [], []>} : vector<32x32xbf16>, vector<32x128xbf16>, vector<32x128xf32> -> vector<32x128xf32>
    %c32_27 = arith.constant 32 : index
    %c0_28 = arith.constant 0 : index
    %34 = vector.load %arg9[%c32_27, %c0_28] : memref<64x1xf32, #tpu.memory_space<vmem>>, vector<32x1xf32>
    %35 = vector.broadcast %34 : vector<32x1xf32> to vector<32x128xf32>
    %36 = arith.addf %33, %35 : vector<32x128xf32>
    %cst_29 = arith.constant 0.000000e+00 : f32
    %37 = vector.broadcast %cst_29 : f32 to vector<32x128xf32>
    %38 = arith.maximumf %36, %37 : vector<32x128xf32>
    %c0_30 = arith.constant 0 : index
    %c0_31 = arith.constant 0 : index
    %39 = vector.load %arg10[%c0_30, %c0_31] : memref<96x32xbf16, #tpu.memory_space<vmem>>, vector<96x32xbf16>
    %40 = arith.truncf %38 : vector<32x128xf32> to vector<32x128xbf16>
    %cst_32 = arith.constant dense<0.000000e+00> : vector<96x128xf32>
    %41 = tpu.matmul %39, %40, %cst_32 {dimension_numbers = #tpu.dot_dimension_numbers<[1], [0], [0], [1], [0, 0, 1, 1], [], []>} : vector<96x32xbf16>, vector<32x128xbf16>, vector<96x128xf32> -> vector<96x128xf32>
    %42 = vector.extract_strided_slice %41 {offsets = [0, 0], sizes = [8, 128], strides = [1, 1]} : vector<96x128xf32> to vector<8x128xf32>
    %43 = arith.truncf %42 : vector<8x128xf32> to vector<8x128xbf16>
    %44 = vector.extract_strided_slice %41 {offsets = [32, 0], sizes = [8, 128], strides = [1, 1]} : vector<96x128xf32> to vector<8x128xf32>
    %45 = arith.truncf %44 : vector<8x128xf32> to vector<8x128xbf16>
    %46 = vector.extract_strided_slice %41 {offsets = [64, 0], sizes = [8, 128], strides = [1, 1]} : vector<96x128xf32> to vector<8x128xf32>
    %47 = arith.truncf %46 : vector<8x128xf32> to vector<8x128xbf16>
    %cst_33 = arith.constant dense<0.000000e+00> : vector<128x128xf32>
    %48 = tpu.matmul %43, %45, %cst_33 {dimension_numbers = #tpu.dot_dimension_numbers<[0], [0], [1], [1], [0, 1, 1, 1], [], []>} : vector<8x128xbf16>, vector<8x128xbf16>, vector<128x128xf32> -> vector<128x128xf32>
    %cst_34 = arith.constant dense<0xFF800000> : vector<128xf32>
    %49 = vector.multi_reduction <maximumf>, %48, %cst_34 [1] : vector<128x128xf32> to vector<128xf32>
    %50 = vector.shape_cast %49 : vector<128xf32> to vector<128x1xf32>
    %51 = vector.broadcast %50 : vector<128x1xf32> to vector<128x128xf32>
    %52 = arith.subf %48, %51 : vector<128x128xf32>
    %53 = math.exp %52 : vector<128x128xf32>
    %cst_35 = arith.constant dense<0.000000e+00> : vector<128xf32>
    %54 = vector.multi_reduction <add>, %53, %cst_35 [1] : vector<128x128xf32> to vector<128xf32>
    %55 = vector.shape_cast %54 : vector<128xf32> to vector<128x1xf32>
    %56 = tpu.reciprocal %55 {approx = true} : vector<128x1xf32> -> vector<128x1xf32>
    %57 = vector.broadcast %56 : vector<128x1xf32> to vector<128x128xf32>
    %58 = arith.mulf %53, %57 : vector<128x128xf32>
    %59 = arith.truncf %58 : vector<128x128xf32> to vector<128x128xbf16>
    %cst_36 = arith.constant dense<0.000000e+00> : vector<8x128xf32>
    %60 = tpu.matmul %47, %59, %cst_36 {dimension_numbers = #tpu.dot_dimension_numbers<[1], [1], [0], [0], [0, 0, 1, 0], [], []>} : vector<8x128xbf16>, vector<128x128xbf16>, vector<8x128xf32> -> vector<8x128xf32>
    %61 = vector.shape_cast %60 : vector<8x128xf32> to vector<1x8x128xf32>
    %cst_37 = arith.constant dense<0.000000e+00> : vector<1xf32>
    %62 = vector.multi_reduction <add>, %61, %cst_37 [1, 2] : vector<1x8x128xf32> to vector<1xf32>
    %63 = vector.shape_cast %62 : vector<1xf32> to vector<1x1x1xf32>
    %64 = vector.extract %63[0, 0, 0] : f32 from vector<1x1x1xf32>
    %cst_38 = arith.constant 1.024000e+03 : f32
    %65 = arith.divf %64, %cst_38 : f32
    %66 = vector.broadcast %65 : f32 to vector<8x128xf32>
    %67 = arith.subf %60, %66 : vector<8x128xf32>
    %68 = arith.mulf %67, %67 : vector<8x128xf32>
    %69 = vector.shape_cast %68 : vector<8x128xf32> to vector<1x8x128xf32>
    %cst_39 = arith.constant dense<0.000000e+00> : vector<1xf32>
    %70 = vector.multi_reduction <add>, %69, %cst_39 [1, 2] : vector<1x8x128xf32> to vector<1xf32>
    %71 = vector.shape_cast %70 : vector<1xf32> to vector<1x1x1xf32>
    %72 = vector.extract %71[0, 0, 0] : f32 from vector<1x1x1xf32>
    %cst_40 = arith.constant 1.024000e+03 : f32
    %73 = arith.divf %72, %cst_40 : f32
    %74 = vector.broadcast %65 : f32 to vector<8x128xf32>
    %75 = arith.subf %60, %74 : vector<8x128xf32>
    %cst_41 = arith.constant 9.99999974E-6 : f32
    %76 = arith.addf %73, %cst_41 : f32
    %77 = math.rsqrt %76 : f32
    %78 = vector.broadcast %77 : f32 to vector<8x128xf32>
    %79 = arith.mulf %75, %78 : vector<8x128xf32>
    %80 = vector.extract_strided_slice %41 {offsets = [8, 0], sizes = [8, 128], strides = [1, 1]} : vector<96x128xf32> to vector<8x128xf32>
    %81 = arith.truncf %80 : vector<8x128xf32> to vector<8x128xbf16>
    %82 = vector.extract_strided_slice %41 {offsets = [40, 0], sizes = [8, 128], strides = [1, 1]} : vector<96x128xf32> to vector<8x128xf32>
    %83 = arith.truncf %82 : vector<8x128xf32> to vector<8x128xbf16>
    %84 = vector.extract_strided_slice %41 {offsets = [72, 0], sizes = [8, 128], strides = [1, 1]} : vector<96x128xf32> to vector<8x128xf32>
    %85 = arith.truncf %84 : vector<8x128xf32> to vector<8x128xbf16>
    %cst_42 = arith.constant dense<0.000000e+00> : vector<128x128xf32>
    %86 = tpu.matmul %81, %83, %cst_42 {dimension_numbers = #tpu.dot_dimension_numbers<[0], [0], [1], [1], [0, 1, 1, 1], [], []>} : vector<8x128xbf16>, vector<8x128xbf16>, vector<128x128xf32> -> vector<128x128xf32>
    %cst_43 = arith.constant dense<0xFF800000> : vector<128xf32>
    %87 = vector.multi_reduction <maximumf>, %86, %cst_43 [1] : vector<128x128xf32> to vector<128xf32>
    %88 = vector.shape_cast %87 : vector<128xf32> to vector<128x1xf32>
    %89 = vector.broadcast %88 : vector<128x1xf32> to vector<128x128xf32>
    %90 = arith.subf %86, %89 : vector<128x128xf32>
    %91 = math.exp %90 : vector<128x128xf32>
    %cst_44 = arith.constant dense<0.000000e+00> : vector<128xf32>
    %92 = vector.multi_reduction <add>, %91, %cst_44 [1] : vector<128x128xf32> to vector<128xf32>
    %93 = vector.shape_cast %92 : vector<128xf32> to vector<128x1xf32>
    %94 = tpu.reciprocal %93 {approx = true} : vector<128x1xf32> -> vector<128x1xf32>
    %95 = vector.broadcast %94 : vector<128x1xf32> to vector<128x128xf32>
    %96 = arith.mulf %91, %95 : vector<128x128xf32>
    %97 = arith.truncf %96 : vector<128x128xf32> to vector<128x128xbf16>
    %cst_45 = arith.constant dense<0.000000e+00> : vector<8x128xf32>
    %98 = tpu.matmul %85, %97, %cst_45 {dimension_numbers = #tpu.dot_dimension_numbers<[1], [1], [0], [0], [0, 0, 1, 0], [], []>} : vector<8x128xbf16>, vector<128x128xbf16>, vector<8x128xf32> -> vector<8x128xf32>
    %99 = vector.shape_cast %98 : vector<8x128xf32> to vector<1x8x128xf32>
    %cst_46 = arith.constant dense<0.000000e+00> : vector<1xf32>
    %100 = vector.multi_reduction <add>, %99, %cst_46 [1, 2] : vector<1x8x128xf32> to vector<1xf32>
    %101 = vector.shape_cast %100 : vector<1xf32> to vector<1x1x1xf32>
    %102 = vector.extract %101[0, 0, 0] : f32 from vector<1x1x1xf32>
    %cst_47 = arith.constant 1.024000e+03 : f32
    %103 = arith.divf %102, %cst_47 : f32
    %104 = vector.broadcast %103 : f32 to vector<8x128xf32>
    %105 = arith.subf %98, %104 : vector<8x128xf32>
    %106 = arith.mulf %105, %105 : vector<8x128xf32>
    %107 = vector.shape_cast %106 : vector<8x128xf32> to vector<1x8x128xf32>
    %cst_48 = arith.constant dense<0.000000e+00> : vector<1xf32>
    %108 = vector.multi_reduction <add>, %107, %cst_48 [1, 2] : vector<1x8x128xf32> to vector<1xf32>
    %109 = vector.shape_cast %108 : vector<1xf32> to vector<1x1x1xf32>
    %110 = vector.extract %109[0, 0, 0] : f32 from vector<1x1x1xf32>
    %cst_49 = arith.constant 1.024000e+03 : f32
    %111 = arith.divf %110, %cst_49 : f32
    %112 = vector.broadcast %103 : f32 to vector<8x128xf32>
    %113 = arith.subf %98, %112 : vector<8x128xf32>
    %cst_50 = arith.constant 9.99999974E-6 : f32
    %114 = arith.addf %111, %cst_50 : f32
    %115 = math.rsqrt %114 : f32
    %116 = vector.broadcast %115 : f32 to vector<8x128xf32>
    %117 = arith.mulf %113, %116 : vector<8x128xf32>
    %118 = vector.extract_strided_slice %41 {offsets = [16, 0], sizes = [8, 128], strides = [1, 1]} : vector<96x128xf32> to vector<8x128xf32>
    %119 = arith.truncf %118 : vector<8x128xf32> to vector<8x128xbf16>
    %120 = vector.extract_strided_slice %41 {offsets = [48, 0], sizes = [8, 128], strides = [1, 1]} : vector<96x128xf32> to vector<8x128xf32>
    %121 = arith.truncf %120 : vector<8x128xf32> to vector<8x128xbf16>
    %122 = vector.extract_strided_slice %41 {offsets = [80, 0], sizes = [8, 128], strides = [1, 1]} : vector<96x128xf32> to vector<8x128xf32>
    %123 = arith.truncf %122 : vector<8x128xf32> to vector<8x128xbf16>
    %cst_51 = arith.constant dense<0.000000e+00> : vector<128x128xf32>
    %124 = tpu.matmul %119, %121, %cst_51 {dimension_numbers = #tpu.dot_dimension_numbers<[0], [0], [1], [1], [0, 1, 1, 1], [], []>} : vector<8x128xbf16>, vector<8x128xbf16>, vector<128x128xf32> -> vector<128x128xf32>
    %cst_52 = arith.constant dense<0xFF800000> : vector<128xf32>
    %125 = vector.multi_reduction <maximumf>, %124, %cst_52 [1] : vector<128x128xf32> to vector<128xf32>
    %126 = vector.shape_cast %125 : vector<128xf32> to vector<128x1xf32>
    %127 = vector.broadcast %126 : vector<128x1xf32> to vector<128x128xf32>
    %128 = arith.subf %124, %127 : vector<128x128xf32>
    %129 = math.exp %128 : vector<128x128xf32>
    %cst_53 = arith.constant dense<0.000000e+00> : vector<128xf32>
    %130 = vector.multi_reduction <add>, %129, %cst_53 [1] : vector<128x128xf32> to vector<128xf32>
    %131 = vector.shape_cast %130 : vector<128xf32> to vector<128x1xf32>
    %132 = tpu.reciprocal %131 {approx = true} : vector<128x1xf32> -> vector<128x1xf32>
    %133 = vector.broadcast %132 : vector<128x1xf32> to vector<128x128xf32>
    %134 = arith.mulf %129, %133 : vector<128x128xf32>
    %135 = arith.truncf %134 : vector<128x128xf32> to vector<128x128xbf16>
    %cst_54 = arith.constant dense<0.000000e+00> : vector<8x128xf32>
    %136 = tpu.matmul %123, %135, %cst_54 {dimension_numbers = #tpu.dot_dimension_numbers<[1], [1], [0], [0], [0, 0, 1, 0], [], []>} : vector<8x128xbf16>, vector<128x128xbf16>, vector<8x128xf32> -> vector<8x128xf32>
    %137 = vector.shape_cast %136 : vector<8x128xf32> to vector<1x8x128xf32>
    %cst_55 = arith.constant dense<0.000000e+00> : vector<1xf32>
    %138 = vector.multi_reduction <add>, %137, %cst_55 [1, 2] : vector<1x8x128xf32> to vector<1xf32>
    %139 = vector.shape_cast %138 : vector<1xf32> to vector<1x1x1xf32>
    %140 = vector.extract %139[0, 0, 0] : f32 from vector<1x1x1xf32>
    %cst_56 = arith.constant 1.024000e+03 : f32
    %141 = arith.divf %140, %cst_56 : f32
    %142 = vector.broadcast %141 : f32 to vector<8x128xf32>
    %143 = arith.subf %136, %142 : vector<8x128xf32>
    %144 = arith.mulf %143, %143 : vector<8x128xf32>
    %145 = vector.shape_cast %144 : vector<8x128xf32> to vector<1x8x128xf32>
    %cst_57 = arith.constant dense<0.000000e+00> : vector<1xf32>
    %146 = vector.multi_reduction <add>, %145, %cst_57 [1, 2] : vector<1x8x128xf32> to vector<1xf32>
    %147 = vector.shape_cast %146 : vector<1xf32> to vector<1x1x1xf32>
    %148 = vector.extract %147[0, 0, 0] : f32 from vector<1x1x1xf32>
    %cst_58 = arith.constant 1.024000e+03 : f32
    %149 = arith.divf %148, %cst_58 : f32
    %150 = vector.broadcast %141 : f32 to vector<8x128xf32>
    %151 = arith.subf %136, %150 : vector<8x128xf32>
    %cst_59 = arith.constant 9.99999974E-6 : f32
    %152 = arith.addf %149, %cst_59 : f32
    %153 = math.rsqrt %152 : f32
    %154 = vector.broadcast %153 : f32 to vector<8x128xf32>
    %155 = arith.mulf %151, %154 : vector<8x128xf32>
    %156 = vector.extract_strided_slice %41 {offsets = [24, 0], sizes = [8, 128], strides = [1, 1]} : vector<96x128xf32> to vector<8x128xf32>
    %157 = arith.truncf %156 : vector<8x128xf32> to vector<8x128xbf16>
    %158 = vector.extract_strided_slice %41 {offsets = [56, 0], sizes = [8, 128], strides = [1, 1]} : vector<96x128xf32> to vector<8x128xf32>
    %159 = arith.truncf %158 : vector<8x128xf32> to vector<8x128xbf16>
    %160 = vector.extract_strided_slice %41 {offsets = [88, 0], sizes = [8, 128], strides = [1, 1]} : vector<96x128xf32> to vector<8x128xf32>
    %161 = arith.truncf %160 : vector<8x128xf32> to vector<8x128xbf16>
    %cst_60 = arith.constant dense<0.000000e+00> : vector<128x128xf32>
    %162 = tpu.matmul %157, %159, %cst_60 {dimension_numbers = #tpu.dot_dimension_numbers<[0], [0], [1], [1], [0, 1, 1, 1], [], []>} : vector<8x128xbf16>, vector<8x128xbf16>, vector<128x128xf32> -> vector<128x128xf32>
    %cst_61 = arith.constant dense<0xFF800000> : vector<128xf32>
    %163 = vector.multi_reduction <maximumf>, %162, %cst_61 [1] : vector<128x128xf32> to vector<128xf32>
    %164 = vector.shape_cast %163 : vector<128xf32> to vector<128x1xf32>
    %165 = vector.broadcast %164 : vector<128x1xf32> to vector<128x128xf32>
    %166 = arith.subf %162, %165 : vector<128x128xf32>
    %167 = math.exp %166 : vector<128x128xf32>
    %cst_62 = arith.constant dense<0.000000e+00> : vector<128xf32>
    %168 = vector.multi_reduction <add>, %167, %cst_62 [1] : vector<128x128xf32> to vector<128xf32>
    %169 = vector.shape_cast %168 : vector<128xf32> to vector<128x1xf32>
    %170 = tpu.reciprocal %169 {approx = true} : vector<128x1xf32> -> vector<128x1xf32>
    %171 = vector.broadcast %170 : vector<128x1xf32> to vector<128x128xf32>
    %172 = arith.mulf %167, %171 : vector<128x128xf32>
    %173 = arith.truncf %172 : vector<128x128xf32> to vector<128x128xbf16>
    %cst_63 = arith.constant dense<0.000000e+00> : vector<8x128xf32>
    %174 = tpu.matmul %161, %173, %cst_63 {dimension_numbers = #tpu.dot_dimension_numbers<[1], [1], [0], [0], [0, 0, 1, 0], [], []>} : vector<8x128xbf16>, vector<128x128xbf16>, vector<8x128xf32> -> vector<8x128xf32>
    %175 = vector.shape_cast %174 : vector<8x128xf32> to vector<1x8x128xf32>
    %cst_64 = arith.constant dense<0.000000e+00> : vector<1xf32>
    %176 = vector.multi_reduction <add>, %175, %cst_64 [1, 2] : vector<1x8x128xf32> to vector<1xf32>
    %177 = vector.shape_cast %176 : vector<1xf32> to vector<1x1x1xf32>
    %178 = vector.extract %177[0, 0, 0] : f32 from vector<1x1x1xf32>
    %cst_65 = arith.constant 1.024000e+03 : f32
    %179 = arith.divf %178, %cst_65 : f32
    %180 = vector.broadcast %179 : f32 to vector<8x128xf32>
    %181 = arith.subf %174, %180 : vector<8x128xf32>
    %182 = arith.mulf %181, %181 : vector<8x128xf32>
    %183 = vector.shape_cast %182 : vector<8x128xf32> to vector<1x8x128xf32>
    %cst_66 = arith.constant dense<0.000000e+00> : vector<1xf32>
    %184 = vector.multi_reduction <add>, %183, %cst_66 [1, 2] : vector<1x8x128xf32> to vector<1xf32>
    %185 = vector.shape_cast %184 : vector<1xf32> to vector<1x1x1xf32>
    %186 = vector.extract %185[0, 0, 0] : f32 from vector<1x1x1xf32>
    %cst_67 = arith.constant 1.024000e+03 : f32
    %187 = arith.divf %186, %cst_67 : f32
    %188 = vector.broadcast %179 : f32 to vector<8x128xf32>
    %189 = arith.subf %174, %188 : vector<8x128xf32>
    %cst_68 = arith.constant 9.99999974E-6 : f32
    %190 = arith.addf %187, %cst_68 : f32
    %191 = math.rsqrt %190 : f32
    %192 = vector.broadcast %191 : f32 to vector<8x128xf32>
    %193 = arith.mulf %189, %192 : vector<8x128xf32>
    %194 = tpu.concatenate %79, %117, %155, %193 in 0 : vector<8x128xf32>, vector<8x128xf32>, vector<8x128xf32>, vector<8x128xf32> -> vector<32x128xf32>
    %c0_69 = arith.constant 0 : index
    %c0_70 = arith.constant 0 : index
    %195 = vector.load %arg11[%c0_69, %c0_70] : memref<64x1xf32, #tpu.memory_space<vmem>>, vector<32x1xf32>
    %c32_71 = arith.constant 32 : index
    %c0_72 = arith.constant 0 : index
    %196 = vector.load %arg11[%c32_71, %c0_72] : memref<64x1xf32, #tpu.memory_space<vmem>>, vector<32x1xf32>
    %197 = vector.broadcast %195 : vector<32x1xf32> to vector<32x128xf32>
    %198 = arith.mulf %194, %197 : vector<32x128xf32>
    %199 = vector.broadcast %196 : vector<32x1xf32> to vector<32x128xf32>
    %200 = arith.addf %198, %199 : vector<32x128xf32>
    %201 = arith.addf %200, %38 : vector<32x128xf32>
    %202 = tpu.concatenate %5, %201 in 0 : vector<32x128xf32>, vector<32x128xf32> -> vector<64x128xf32>
    %c0_73 = arith.constant 0 : index
    %c0_74 = arith.constant 0 : index
    %203 = vector.load %arg12[%c0_73, %c0_74] : memref<192x64xbf16, #tpu.memory_space<vmem>>, vector<192x64xbf16>
    %204 = arith.truncf %202 : vector<64x128xf32> to vector<64x128xbf16>
    %cst_75 = arith.constant dense<0.000000e+00> : vector<192x128xf32>
    %205 = tpu.matmul %203, %204, %cst_75 {dimension_numbers = #tpu.dot_dimension_numbers<[1], [0], [0], [1], [0, 0, 1, 1], [], []>} : vector<192x64xbf16>, vector<64x128xbf16>, vector<192x128xf32> -> vector<192x128xf32>
    %206 = vector.extract_strided_slice %205 {offsets = [0, 0], sizes = [16, 128], strides = [1, 1]} : vector<192x128xf32> to vector<16x128xf32>
    %207 = arith.truncf %206 : vector<16x128xf32> to vector<16x128xbf16>
    %208 = vector.extract_strided_slice %205 {offsets = [64, 0], sizes = [16, 128], strides = [1, 1]} : vector<192x128xf32> to vector<16x128xf32>
    %209 = arith.truncf %208 : vector<16x128xf32> to vector<16x128xbf16>
    %210 = vector.extract_strided_slice %205 {offsets = [128, 0], sizes = [16, 128], strides = [1, 1]} : vector<192x128xf32> to vector<16x128xf32>
    %211 = arith.truncf %210 : vector<16x128xf32> to vector<16x128xbf16>
    %cst_76 = arith.constant dense<0.000000e+00> : vector<128x128xf32>
    %212 = tpu.matmul %207, %209, %cst_76 {dimension_numbers = #tpu.dot_dimension_numbers<[0], [0], [1], [1], [0, 1, 1, 1], [], []>} : vector<16x128xbf16>, vector<16x128xbf16>, vector<128x128xf32> -> vector<128x128xf32>
    %cst_77 = arith.constant dense<0xFF800000> : vector<128xf32>
    %213 = vector.multi_reduction <maximumf>, %212, %cst_77 [1] : vector<128x128xf32> to vector<128xf32>
    %214 = vector.shape_cast %213 : vector<128xf32> to vector<128x1xf32>
    %215 = vector.broadcast %214 : vector<128x1xf32> to vector<128x128xf32>
    %216 = arith.subf %212, %215 : vector<128x128xf32>
    %217 = math.exp %216 : vector<128x128xf32>
    %cst_78 = arith.constant dense<0.000000e+00> : vector<128xf32>
    %218 = vector.multi_reduction <add>, %217, %cst_78 [1] : vector<128x128xf32> to vector<128xf32>
    %219 = vector.shape_cast %218 : vector<128xf32> to vector<128x1xf32>
    %220 = tpu.reciprocal %219 {approx = true} : vector<128x1xf32> -> vector<128x1xf32>
    %221 = vector.broadcast %220 : vector<128x1xf32> to vector<128x128xf32>
    %222 = arith.mulf %217, %221 : vector<128x128xf32>
    %223 = arith.truncf %222 : vector<128x128xf32> to vector<128x128xbf16>
    %cst_79 = arith.constant dense<0.000000e+00> : vector<16x128xf32>
    %224 = tpu.matmul %211, %223, %cst_79 {dimension_numbers = #tpu.dot_dimension_numbers<[1], [1], [0], [0], [0, 0, 1, 0], [], []>} : vector<16x128xbf16>, vector<128x128xbf16>, vector<16x128xf32> -> vector<16x128xf32>
    %225 = vector.shape_cast %224 : vector<16x128xf32> to vector<1x16x128xf32>
    %cst_80 = arith.constant dense<0.000000e+00> : vector<1xf32>
    %226 = vector.multi_reduction <add>, %225, %cst_80 [1, 2] : vector<1x16x128xf32> to vector<1xf32>
    %227 = vector.shape_cast %226 : vector<1xf32> to vector<1x1x1xf32>
    %228 = vector.extract %227[0, 0, 0] : f32 from vector<1x1x1xf32>
    %cst_81 = arith.constant 2.048000e+03 : f32
    %229 = arith.divf %228, %cst_81 : f32
    %230 = vector.broadcast %229 : f32 to vector<16x128xf32>
    %231 = arith.subf %224, %230 : vector<16x128xf32>
    %232 = arith.mulf %231, %231 : vector<16x128xf32>
    %233 = vector.shape_cast %232 : vector<16x128xf32> to vector<1x16x128xf32>
    %cst_82 = arith.constant dense<0.000000e+00> : vector<1xf32>
    %234 = vector.multi_reduction <add>, %233, %cst_82 [1, 2] : vector<1x16x128xf32> to vector<1xf32>
    %235 = vector.shape_cast %234 : vector<1xf32> to vector<1x1x1xf32>
    %236 = vector.extract %235[0, 0, 0] : f32 from vector<1x1x1xf32>
    %cst_83 = arith.constant 2.048000e+03 : f32
    %237 = arith.divf %236, %cst_83 : f32
    %238 = vector.broadcast %229 : f32 to vector<16x128xf32>
    %239 = arith.subf %224, %238 : vector<16x128xf32>
    %cst_84 = arith.constant 9.99999974E-6 : f32
    %240 = arith.addf %237, %cst_84 : f32
    %241 = math.rsqrt %240 : f32
    %242 = vector.broadcast %241 : f32 to vector<16x128xf32>
    %243 = arith.mulf %239, %242 : vector<16x128xf32>
    %244 = vector.extract_strided_slice %205 {offsets = [16, 0], sizes = [16, 128], strides = [1, 1]} : vector<192x128xf32> to vector<16x128xf32>
    %245 = arith.truncf %244 : vector<16x128xf32> to vector<16x128xbf16>
    %246 = vector.extract_strided_slice %205 {offsets = [80, 0], sizes = [16, 128], strides = [1, 1]} : vector<192x128xf32> to vector<16x128xf32>
    %247 = arith.truncf %246 : vector<16x128xf32> to vector<16x128xbf16>
    %248 = vector.extract_strided_slice %205 {offsets = [144, 0], sizes = [16, 128], strides = [1, 1]} : vector<192x128xf32> to vector<16x128xf32>
    %249 = arith.truncf %248 : vector<16x128xf32> to vector<16x128xbf16>
    %cst_85 = arith.constant dense<0.000000e+00> : vector<128x128xf32>
    %250 = tpu.matmul %245, %247, %cst_85 {dimension_numbers = #tpu.dot_dimension_numbers<[0], [0], [1], [1], [0, 1, 1, 1], [], []>} : vector<16x128xbf16>, vector<16x128xbf16>, vector<128x128xf32> -> vector<128x128xf32>
    %cst_86 = arith.constant dense<0xFF800000> : vector<128xf32>
    %251 = vector.multi_reduction <maximumf>, %250, %cst_86 [1] : vector<128x128xf32> to vector<128xf32>
    %252 = vector.shape_cast %251 : vector<128xf32> to vector<128x1xf32>
    %253 = vector.broadcast %252 : vector<128x1xf32> to vector<128x128xf32>
    %254 = arith.subf %250, %253 : vector<128x128xf32>
    %255 = math.exp %254 : vector<128x128xf32>
    %cst_87 = arith.constant dense<0.000000e+00> : vector<128xf32>
    %256 = vector.multi_reduction <add>, %255, %cst_87 [1] : vector<128x128xf32> to vector<128xf32>
    %257 = vector.shape_cast %256 : vector<128xf32> to vector<128x1xf32>
    %258 = tpu.reciprocal %257 {approx = true} : vector<128x1xf32> -> vector<128x1xf32>
    %259 = vector.broadcast %258 : vector<128x1xf32> to vector<128x128xf32>
    %260 = arith.mulf %255, %259 : vector<128x128xf32>
    %261 = arith.truncf %260 : vector<128x128xf32> to vector<128x128xbf16>
    %cst_88 = arith.constant dense<0.000000e+00> : vector<16x128xf32>
    %262 = tpu.matmul %249, %261, %cst_88 {dimension_numbers = #tpu.dot_dimension_numbers<[1], [1], [0], [0], [0, 0, 1, 0], [], []>} : vector<16x128xbf16>, vector<128x128xbf16>, vector<16x128xf32> -> vector<16x128xf32>
    %263 = vector.shape_cast %262 : vector<16x128xf32> to vector<1x16x128xf32>
    %cst_89 = arith.constant dense<0.000000e+00> : vector<1xf32>
    %264 = vector.multi_reduction <add>, %263, %cst_89 [1, 2] : vector<1x16x128xf32> to vector<1xf32>
    %265 = vector.shape_cast %264 : vector<1xf32> to vector<1x1x1xf32>
    %266 = vector.extract %265[0, 0, 0] : f32 from vector<1x1x1xf32>
    %cst_90 = arith.constant 2.048000e+03 : f32
    %267 = arith.divf %266, %cst_90 : f32
    %268 = vector.broadcast %267 : f32 to vector<16x128xf32>
    %269 = arith.subf %262, %268 : vector<16x128xf32>
    %270 = arith.mulf %269, %269 : vector<16x128xf32>
    %271 = vector.shape_cast %270 : vector<16x128xf32> to vector<1x16x128xf32>
    %cst_91 = arith.constant dense<0.000000e+00> : vector<1xf32>
    %272 = vector.multi_reduction <add>, %271, %cst_91 [1, 2] : vector<1x16x128xf32> to vector<1xf32>
    %273 = vector.shape_cast %272 : vector<1xf32> to vector<1x1x1xf32>
    %274 = vector.extract %273[0, 0, 0] : f32 from vector<1x1x1xf32>
    %cst_92 = arith.constant 2.048000e+03 : f32
    %275 = arith.divf %274, %cst_92 : f32
    %276 = vector.broadcast %267 : f32 to vector<16x128xf32>
    %277 = arith.subf %262, %276 : vector<16x128xf32>
    %cst_93 = arith.constant 9.99999974E-6 : f32
    %278 = arith.addf %275, %cst_93 : f32
    %279 = math.rsqrt %278 : f32
    %280 = vector.broadcast %279 : f32 to vector<16x128xf32>
    %281 = arith.mulf %277, %280 : vector<16x128xf32>
    %282 = vector.extract_strided_slice %205 {offsets = [32, 0], sizes = [16, 128], strides = [1, 1]} : vector<192x128xf32> to vector<16x128xf32>
    %283 = arith.truncf %282 : vector<16x128xf32> to vector<16x128xbf16>
    %284 = vector.extract_strided_slice %205 {offsets = [96, 0], sizes = [16, 128], strides = [1, 1]} : vector<192x128xf32> to vector<16x128xf32>
    %285 = arith.truncf %284 : vector<16x128xf32> to vector<16x128xbf16>
    %286 = vector.extract_strided_slice %205 {offsets = [160, 0], sizes = [16, 128], strides = [1, 1]} : vector<192x128xf32> to vector<16x128xf32>
    %287 = arith.truncf %286 : vector<16x128xf32> to vector<16x128xbf16>
    %cst_94 = arith.constant dense<0.000000e+00> : vector<128x128xf32>
    %288 = tpu.matmul %283, %285, %cst_94 {dimension_numbers = #tpu.dot_dimension_numbers<[0], [0], [1], [1], [0, 1, 1, 1], [], []>} : vector<16x128xbf16>, vector<16x128xbf16>, vector<128x128xf32> -> vector<128x128xf32>
    %cst_95 = arith.constant dense<0xFF800000> : vector<128xf32>
    %289 = vector.multi_reduction <maximumf>, %288, %cst_95 [1] : vector<128x128xf32> to vector<128xf32>
    %290 = vector.shape_cast %289 : vector<128xf32> to vector<128x1xf32>
    %291 = vector.broadcast %290 : vector<128x1xf32> to vector<128x128xf32>
    %292 = arith.subf %288, %291 : vector<128x128xf32>
    %293 = math.exp %292 : vector<128x128xf32>
    %cst_96 = arith.constant dense<0.000000e+00> : vector<128xf32>
    %294 = vector.multi_reduction <add>, %293, %cst_96 [1] : vector<128x128xf32> to vector<128xf32>
    %295 = vector.shape_cast %294 : vector<128xf32> to vector<128x1xf32>
    %296 = tpu.reciprocal %295 {approx = true} : vector<128x1xf32> -> vector<128x1xf32>
    %297 = vector.broadcast %296 : vector<128x1xf32> to vector<128x128xf32>
    %298 = arith.mulf %293, %297 : vector<128x128xf32>
    %299 = arith.truncf %298 : vector<128x128xf32> to vector<128x128xbf16>
    %cst_97 = arith.constant dense<0.000000e+00> : vector<16x128xf32>
    %300 = tpu.matmul %287, %299, %cst_97 {dimension_numbers = #tpu.dot_dimension_numbers<[1], [1], [0], [0], [0, 0, 1, 0], [], []>} : vector<16x128xbf16>, vector<128x128xbf16>, vector<16x128xf32> -> vector<16x128xf32>
    %301 = vector.shape_cast %300 : vector<16x128xf32> to vector<1x16x128xf32>
    %cst_98 = arith.constant dense<0.000000e+00> : vector<1xf32>
    %302 = vector.multi_reduction <add>, %301, %cst_98 [1, 2] : vector<1x16x128xf32> to vector<1xf32>
    %303 = vector.shape_cast %302 : vector<1xf32> to vector<1x1x1xf32>
    %304 = vector.extract %303[0, 0, 0] : f32 from vector<1x1x1xf32>
    %cst_99 = arith.constant 2.048000e+03 : f32
    %305 = arith.divf %304, %cst_99 : f32
    %306 = vector.broadcast %305 : f32 to vector<16x128xf32>
    %307 = arith.subf %300, %306 : vector<16x128xf32>
    %308 = arith.mulf %307, %307 : vector<16x128xf32>
    %309 = vector.shape_cast %308 : vector<16x128xf32> to vector<1x16x128xf32>
    %cst_100 = arith.constant dense<0.000000e+00> : vector<1xf32>
    %310 = vector.multi_reduction <add>, %309, %cst_100 [1, 2] : vector<1x16x128xf32> to vector<1xf32>
    %311 = vector.shape_cast %310 : vector<1xf32> to vector<1x1x1xf32>
    %312 = vector.extract %311[0, 0, 0] : f32 from vector<1x1x1xf32>
    %cst_101 = arith.constant 2.048000e+03 : f32
    %313 = arith.divf %312, %cst_101 : f32
    %314 = vector.broadcast %305 : f32 to vector<16x128xf32>
    %315 = arith.subf %300, %314 : vector<16x128xf32>
    %cst_102 = arith.constant 9.99999974E-6 : f32
    %316 = arith.addf %313, %cst_102 : f32
    %317 = math.rsqrt %316 : f32
    %318 = vector.broadcast %317 : f32 to vector<16x128xf32>
    %319 = arith.mulf %315, %318 : vector<16x128xf32>
    %320 = vector.extract_strided_slice %205 {offsets = [48, 0], sizes = [16, 128], strides = [1, 1]} : vector<192x128xf32> to vector<16x128xf32>
    %321 = arith.truncf %320 : vector<16x128xf32> to vector<16x128xbf16>
    %322 = vector.extract_strided_slice %205 {offsets = [112, 0], sizes = [16, 128], strides = [1, 1]} : vector<192x128xf32> to vector<16x128xf32>
    %323 = arith.truncf %322 : vector<16x128xf32> to vector<16x128xbf16>
    %324 = vector.extract_strided_slice %205 {offsets = [176, 0], sizes = [16, 128], strides = [1, 1]} : vector<192x128xf32> to vector<16x128xf32>
    %325 = arith.truncf %324 : vector<16x128xf32> to vector<16x128xbf16>
    %cst_103 = arith.constant dense<0.000000e+00> : vector<128x128xf32>
    %326 = tpu.matmul %321, %323, %cst_103 {dimension_numbers = #tpu.dot_dimension_numbers<[0], [0], [1], [1], [0, 1, 1, 1], [], []>} : vector<16x128xbf16>, vector<16x128xbf16>, vector<128x128xf32> -> vector<128x128xf32>
    %cst_104 = arith.constant dense<0xFF800000> : vector<128xf32>
    %327 = vector.multi_reduction <maximumf>, %326, %cst_104 [1] : vector<128x128xf32> to vector<128xf32>
    %328 = vector.shape_cast %327 : vector<128xf32> to vector<128x1xf32>
    %329 = vector.broadcast %328 : vector<128x1xf32> to vector<128x128xf32>
    %330 = arith.subf %326, %329 : vector<128x128xf32>
    %331 = math.exp %330 : vector<128x128xf32>
    %cst_105 = arith.constant dense<0.000000e+00> : vector<128xf32>
    %332 = vector.multi_reduction <add>, %331, %cst_105 [1] : vector<128x128xf32> to vector<128xf32>
    %333 = vector.shape_cast %332 : vector<128xf32> to vector<128x1xf32>
    %334 = tpu.reciprocal %333 {approx = true} : vector<128x1xf32> -> vector<128x1xf32>
    %335 = vector.broadcast %334 : vector<128x1xf32> to vector<128x128xf32>
    %336 = arith.mulf %331, %335 : vector<128x128xf32>
    %337 = arith.truncf %336 : vector<128x128xf32> to vector<128x128xbf16>
    %cst_106 = arith.constant dense<0.000000e+00> : vector<16x128xf32>
    %338 = tpu.matmul %325, %337, %cst_106 {dimension_numbers = #tpu.dot_dimension_numbers<[1], [1], [0], [0], [0, 0, 1, 0], [], []>} : vector<16x128xbf16>, vector<128x128xbf16>, vector<16x128xf32> -> vector<16x128xf32>
    %339 = vector.shape_cast %338 : vector<16x128xf32> to vector<1x16x128xf32>
    %cst_107 = arith.constant dense<0.000000e+00> : vector<1xf32>
    %340 = vector.multi_reduction <add>, %339, %cst_107 [1, 2] : vector<1x16x128xf32> to vector<1xf32>
    %341 = vector.shape_cast %340 : vector<1xf32> to vector<1x1x1xf32>
    %342 = vector.extract %341[0, 0, 0] : f32 from vector<1x1x1xf32>
    %cst_108 = arith.constant 2.048000e+03 : f32
    %343 = arith.divf %342, %cst_108 : f32
    %344 = vector.broadcast %343 : f32 to vector<16x128xf32>
    %345 = arith.subf %338, %344 : vector<16x128xf32>
    %346 = arith.mulf %345, %345 : vector<16x128xf32>
    %347 = vector.shape_cast %346 : vector<16x128xf32> to vector<1x16x128xf32>
    %cst_109 = arith.constant dense<0.000000e+00> : vector<1xf32>
    %348 = vector.multi_reduction <add>, %347, %cst_109 [1, 2] : vector<1x16x128xf32> to vector<1xf32>
    %349 = vector.shape_cast %348 : vector<1xf32> to vector<1x1x1xf32>
    %350 = vector.extract %349[0, 0, 0] : f32 from vector<1x1x1xf32>
    %cst_110 = arith.constant 2.048000e+03 : f32
    %351 = arith.divf %350, %cst_110 : f32
    %352 = vector.broadcast %343 : f32 to vector<16x128xf32>
    %353 = arith.subf %338, %352 : vector<16x128xf32>
    %cst_111 = arith.constant 9.99999974E-6 : f32
    %354 = arith.addf %351, %cst_111 : f32
    %355 = math.rsqrt %354 : f32
    %356 = vector.broadcast %355 : f32 to vector<16x128xf32>
    %357 = arith.mulf %353, %356 : vector<16x128xf32>
    %358 = tpu.concatenate %243, %281, %319, %357 in 0 : vector<16x128xf32>, vector<16x128xf32>, vector<16x128xf32>, vector<16x128xf32> -> vector<64x128xf32>
    %c0_112 = arith.constant 0 : index
    %c0_113 = arith.constant 0 : index
    %359 = vector.load %arg13[%c0_112, %c0_113] : memref<128x1xf32, #tpu.memory_space<vmem>>, vector<64x1xf32>
    %c64 = arith.constant 64 : index
    %c0_114 = arith.constant 0 : index
    %360 = vector.load %arg13[%c64, %c0_114] : memref<128x1xf32, #tpu.memory_space<vmem>>, vector<64x1xf32>
    %361 = vector.broadcast %359 : vector<64x1xf32> to vector<64x128xf32>
    %362 = arith.mulf %358, %361 : vector<64x128xf32>
    %363 = vector.broadcast %360 : vector<64x1xf32> to vector<64x128xf32>
    %364 = arith.addf %362, %363 : vector<64x128xf32>
    %365 = arith.addf %364, %202 : vector<64x128xf32>
    %c0_115 = arith.constant 0 : index
    %c0_116 = arith.constant 0 : index
    %366 = vector.load %arg7[%c0_115, %c0_116] : memref<32x64xbf16, #tpu.memory_space<vmem>>, vector<32x64xbf16>
    %367 = arith.truncf %365 : vector<64x128xf32> to vector<64x128xbf16>
    %cst_117 = arith.constant dense<0.000000e+00> : vector<32x128xf32>
    %368 = tpu.matmul %366, %367, %cst_117 {dimension_numbers = #tpu.dot_dimension_numbers<[1], [0], [0], [1], [0, 0, 1, 1], [], []>} : vector<32x64xbf16>, vector<64x128xbf16>, vector<32x128xf32> -> vector<32x128xf32>
    %c0_118 = arith.constant 0 : index
    %c0_119 = arith.constant 0 : index
    %369 = vector.load %arg9[%c0_118, %c0_119] : memref<64x1xf32, #tpu.memory_space<vmem>>, vector<32x1xf32>
    %370 = vector.broadcast %369 : vector<32x1xf32> to vector<32x128xf32>
    %371 = arith.addf %368, %370 : vector<32x128xf32>
    %cst_120 = arith.constant 0.000000e+00 : f32
    %372 = vector.broadcast %cst_120 : f32 to vector<32x128xf32>
    %373 = arith.maximumf %371, %372 : vector<32x128xf32>
    %c0_121 = arith.constant 0 : index
    %c0_122 = arith.constant 0 : index
    %374 = vector.load %arg8[%c0_121, %c0_122] : memref<32x32xbf16, #tpu.memory_space<vmem>>, vector<32x32xbf16>
    %375 = arith.truncf %373 : vector<32x128xf32> to vector<32x128xbf16>
    %cst_123 = arith.constant dense<0.000000e+00> : vector<32x128xf32>
    %376 = tpu.matmul %374, %375, %cst_123 {dimension_numbers = #tpu.dot_dimension_numbers<[1], [0], [0], [1], [0, 0, 1, 1], [], []>} : vector<32x32xbf16>, vector<32x128xbf16>, vector<32x128xf32> -> vector<32x128xf32>
    %c32_124 = arith.constant 32 : index
    %c0_125 = arith.constant 0 : index
    %377 = vector.load %arg9[%c32_124, %c0_125] : memref<64x1xf32, #tpu.memory_space<vmem>>, vector<32x1xf32>
    %378 = vector.broadcast %377 : vector<32x1xf32> to vector<32x128xf32>
    %379 = arith.addf %376, %378 : vector<32x128xf32>
    %cst_126 = arith.constant 0.000000e+00 : f32
    %380 = vector.broadcast %cst_126 : f32 to vector<32x128xf32>
    %381 = arith.maximumf %379, %380 : vector<32x128xf32>
    %c0_127 = arith.constant 0 : index
    %c0_128 = arith.constant 0 : index
    %c0_129 = arith.constant 0 : index
    %382 = vector.load %arg14[%c0_127, %c0_128, %c0_129] : memref<1x32x128xf32, #tpu.memory_space<vmem>>, vector<1x32x128xf32>
    %383 = vector.shape_cast %382 : vector<1x32x128xf32> to vector<32x128xf32>
    %384 = vector.shape_cast %381 : vector<32x128xf32> to vector<1x32x128xf32>
    tpu.vector_store %arg14[%c0_127, %c0_128, %c0_129], %384 {strides = array<i32>} : memref<1x32x128xf32, #tpu.memory_space<vmem>>, vector<1x32x128xf32>,
    return
  }
  func.func @transform_0(%arg0: i32) -> (i32, i32, i32) {
    %c0_i32 = arith.constant 0 : i32
    %c0_i32_0 = arith.constant 0 : i32
    %c0_i32_1 = arith.constant 0 : i32
    return %arg0, %c0_i32, %c0_i32_0 : i32, i32, i32
  }
  func.func @transform_1(%arg0: i32) -> (i32, i32, i32) {
    %c0_i32 = arith.constant 0 : i32
    %c0_i32_0 = arith.constant 0 : i32
    %c0_i32_1 = arith.constant 0 : i32
    return %arg0, %c0_i32, %c0_i32_0 : i32, i32, i32
  }
  func.func @transform_2(%arg0: i32) -> (i32, i32, i32) {
    %c0_i32 = arith.constant 0 : i32
    %c0_i32_0 = arith.constant 0 : i32
    %c0_i32_1 = arith.constant 0 : i32
    return %arg0, %c0_i32, %c0_i32_0 : i32, i32, i32
  }
  func.func @transform_3(%arg0: i32) -> (i32, i32) {
    %c0_i32 = arith.constant 0 : i32
    %c0_i32_0 = arith.constant 0 : i32
    %c0_i32_1 = arith.constant 0 : i32
    return %c0_i32, %c0_i32_0 : i32, i32
  }
  func.func @transform_4(%arg0: i32) -> (i32, i32) {
    %c0_i32 = arith.constant 0 : i32
    %c0_i32_0 = arith.constant 0 : i32
    %c0_i32_1 = arith.constant 0 : i32
    return %c0_i32, %c0_i32_0 : i32, i32
  }
  func.func @transform_5(%arg0: i32) -> (i32, i32) {
    %c0_i32 = arith.constant 0 : i32
    %c0_i32_0 = arith.constant 0 : i32
    %c0_i32_1 = arith.constant 0 : i32
    return %c0_i32, %c0_i32_0 : i32, i32
  }
  func.func @transform_6(%arg0: i32) -> (i32, i32) {
    %c0_i32 = arith.constant 0 : i32
    %c0_i32_0 = arith.constant 0 : i32
    %c0_i32_1 = arith.constant 0 : i32
    return %c0_i32, %c0_i32_0 : i32, i32
  }
  func.func @transform_7(%arg0: i32) -> (i32, i32) {
    %c0_i32 = arith.constant 0 : i32
    %c0_i32_0 = arith.constant 0 : i32
    %c0_i32_1 = arith.constant 0 : i32
    return %c0_i32, %c0_i32_0 : i32, i32
  }
  func.func @transform_8(%arg0: i32) -> (i32, i32) {
    %c0_i32 = arith.constant 0 : i32
    %c0_i32_0 = arith.constant 0 : i32
    %c0_i32_1 = arith.constant 0 : i32
    return %c0_i32, %c0_i32_0 : i32, i32
  }
  func.func @transform_9(%arg0: i32) -> (i32, i32) {
    %c0_i32 = arith.constant 0 : i32
    %c0_i32_0 = arith.constant 0 : i32
    %c0_i32_1 = arith.constant 0 : i32
    return %c0_i32, %c0_i32_0 : i32, i32
  }
  func.func @transform_10(%arg0: i32) -> (i32, i32) {
    %c0_i32 = arith.constant 0 : i32
    %c0_i32_0 = arith.constant 0 : i32
    %c0_i32_1 = arith.constant 0 : i32
    return %c0_i32, %c0_i32_0 : i32, i32
  }
  func.func @transform_11(%arg0: i32) -> (i32, i32) {
    %c0_i32 = arith.constant 0 : i32
    %c0_i32_0 = arith.constant 0 : i32
    %c0_i32_1 = arith.constant 0 : i32
    return %c0_i32, %c0_i32_0 : i32, i32
  }
  func.func @transform_12(%arg0: i32) -> (i32, i32) {
    %c0_i32 = arith.constant 0 : i32
    %c0_i32_0 = arith.constant 0 : i32
    %c0_i32_1 = arith.constant 0 : i32
    return %c0_i32, %c0_i32_0 : i32, i32
  }
  func.func @transform_13(%arg0: i32) -> (i32, i32, i32) {
    %c0_i32 = arith.constant 0 : i32
    %c0_i32_0 = arith.constant 0 : i32
    %c0_i32_1 = arith.constant 0 : i32
    return %arg0, %c0_i32, %c0_i32_0 : i32, i32, i32
  }
}

</mosaic_0001>

<llo_original>
// kernel: tpu_custom_call.1
$region0: #{tpu_custom_call.1}
  #allocation0 [shape = 'u32[]', space=smem, size = 0x4, offset = 0x4, fixed_abs, tag = 'smem constant byte address 0x4 - core index']
  #allocation1 [shape = 'u32[144,128]{1,0:T(1,128)}', space=vmem, size = 0x12000, scoped, tag = 'internal scratch']
  %s0 = inlined_call_operand.vmem [shape: f32[2,64,128], index: 0, kind: input, shape index: {}]
  %s1 = inlined_call_operand.vmem [shape: f32[2,32,128], index: 1, kind: input, shape index: {}]
  %s2 = inlined_call_operand.vmem [shape: f32[2,32,128], index: 2, kind: input, shape index: {}]
  %s3 = inlined_call_operand.vmem [shape: bf16[32,64], index: 3, kind: input, shape index: {}]
  %s4 = inlined_call_operand.vmem [shape: bf16[32,32], index: 4, kind: input, shape index: {}]
  %s5 = inlined_call_operand.vmem [shape: f32[64,1], index: 5, kind: input, shape index: {}]
  %s6 = inlined_call_operand.vmem [shape: bf16[32,64], index: 6, kind: input, shape index: {}]
  %s7 = inlined_call_operand.vmem [shape: bf16[32,32], index: 7, kind: input, shape index: {}]
  %s8 = inlined_call_operand.vmem [shape: f32[64,1], index: 8, kind: input, shape index: {}]
  %s9 = inlined_call_operand.vmem [shape: bf16[96,32], index: 9, kind: input, shape index: {}]
  %s10 = inlined_call_operand.vmem [shape: f32[64,1], index: 10, kind: input, shape index: {}]
  %s11 = inlined_call_operand.vmem [shape: bf16[192,64], index: 11, kind: input, shape index: {}]
  %s12 = inlined_call_operand.vmem [shape: f32[128,1], index: 12, kind: input, shape index: {}]
  %s13 = inlined_call_operand.hbm [shape: f32[2,32,128], index: 13, kind: output, shape index: {}]
  %s14 = sld [smem:[#allocation0]]
  $region85: #{tpu_custom_call.1} parent=0
    _
  %s16 = ssub.s32 1, %s14
  %s17 = scalar_select 0, %s16, %s14
  $region1: #{tpu_custom_call.1} parent=0
    #allocation2 [shape = 'u8[32768]{0}', space=vmem, size = 0x8000, scoped, tag = 'output window, operand 0']
    #allocation3 [shape = 's32[2]{0}', space=sflag, size = 0x8, scoped, tag = 'scoped memory for tpu_custom_call.1']
    %18 = vsyncpa [#allocation3], 0
    %s19 = scalar_lea.sflag [#allocation3], 1
    %20 = vsyncpa %s19, 0
    loop: start=0, step=1, limit=4
    $region2: #{tpu_custom_call.1} parent=1 // loop_pre_header
      _
    $region3: #{tpu_custom_call.1} parent=1 // loop_header
      %s22 = sphi 0, %s26
      %p23 = scmp.ge.s32.totalorder %s22, 4
      %s32 = sphi 0, %s34
      %s35 = sphi 0, %s32
      %s36 = sphi 0, %s35
      %s52 = sphi 0, %s36
      %s58 = sphi 0, %s60
      %s61 = sphi 0, %s58
      %s62 = sphi 0, %s61
      %s78 = sphi 0, %s62
      %s84 = sphi 0, %s86
      %s87 = sphi 0, %s84
      %s88 = sphi 0, %s87
      %s104 = sphi 0, %s88
      %s108 = sphi 0, %s108
      %s110 = sphi 0, %s108
      %s111 = sphi 0, %s110
      %s125 = sphi 0, %s111
      %s129 = sphi 0, %s129
      %s131 = sphi 0, %s129
      %s132 = sphi 0, %s131
      %s146 = sphi 0, %s132
      %s150 = sphi 0, %s150
      %s152 = sphi 0, %s150
      %s153 = sphi 0, %s152
      %s167 = sphi 0, %s153
      %s171 = sphi 0, %s171
      %s173 = sphi 0, %s171
      %s174 = sphi 0, %s173
      %s188 = sphi 0, %s174
      %s192 = sphi 0, %s192
      %s194 = sphi 0, %s192
      %s195 = sphi 0, %s194
      %s209 = sphi 0, %s195
      %s213 = sphi 0, %s213
      %s215 = sphi 0, %s213
      %s216 = sphi 0, %s215
      %s230 = sphi 0, %s216
      %s234 = sphi 0, %s234
      %s236 = sphi 0, %s234
      %s237 = sphi 0, %s236
      %s251 = sphi 0, %s237
      %s255 = sphi 0, %s255
      %s257 = sphi 0, %s255
      %s258 = sphi 0, %s257
      %s272 = sphi 0, %s258
      %s276 = sphi 0, %s276
      %s278 = sphi 0, %s276
      %s279 = sphi 0, %s278
      %s293 = sphi 0, %s279
      %s297 = sphi 0, %s297
      %s299 = sphi 0, %s297
      %s300 = sphi 0, %s299
      %s314 = sphi 0, %s300
      %s320 = sphi 0, %s322
      %s323 = sphi 0, %s320
      %s324 = sphi 0, %s323
      %s340 = sphi 0, %s324
    $region4: #{tpu_custom_call.1} parent=1 // loop_header_branch
      %25 = sbr.rel (%p23) target = $region8
    $region5: #{tpu_custom_call.1} parent=1 // loop_body
      %s27 = ssub.s32 %s22, 1
      %s28 = ssub.s32 %s22, 2
      %s29 = sadd.s32 %s22, 1
      %s30 = ssub.s32 %s22, %s29
      %p31 = scmp.eq.s32.totalorder %s30, 0
      %s33 = sadd.s32 %s32, 1
      %s34 = scalar_select %p31, %s32, %s33
      %p37 = pneg %p31
      %p38 = scmp.eq.s32.totalorder %s22, 1
      %p39 = por %p37, %p38
      %p40 = scmp.ne.s32.totalorder %s32, %s35
      %p41 = scmp.eq.s32.totalorder %s22, 0
      %p42 = por %p40, %p41
      %p43 = scmp.ne.s32.totalorder %s32, %s35
      %p44 = scmp.eq.s32.totalorder %s27, 1
      %p45 = por %p43, %p44
      %p46 = scmp.ne.s32.totalorder %s35, %s36
      %p47 = scmp.eq.s32.totalorder %s27, 0
      %p48 = por %p46, %p47
      %p49 = scmp.ne.s32.totalorder %s35, %s36
      %p50 = scmp.eq.s32.totalorder %s28, 1
      %p51 = por %p49, %p50
      %p53 = scmp.ne.s32.totalorder %s36, %s52
      %p54 = scmp.eq.s32.totalorder %s28, 0
      %p55 = por %p53, %p54
      %s56 = ssub.s32 %s22, %s29
      %p57 = scmp.eq.s32.totalorder %s56, 0
      %s59 = sadd.s32 %s58, 1
      %s60 = scalar_select %p57, %s58, %s59
      %p63 = pneg %p57
      %p64 = scmp.eq.s32.totalorder %s22, 1
      %p65 = por %p63, %p64
      %p66 = scmp.ne.s32.totalorder %s58, %s61
      %p67 = scmp.eq.s32.totalorder %s22, 0
      %p68 = por %p66, %p67
      %p69 = scmp.ne.s32.totalorder %s58, %s61
      %p70 = scmp.eq.s32.totalorder %s27, 1
      %p71 = por %p69, %p70
      %p72 = scmp.ne.s32.totalorder %s61, %s62
      %p73 = scmp.eq.s32.totalorder %s27, 0
      %p74 = por %p72, %p73
      %p75 = scmp.ne.s32.totalorder %s61, %s62
      %p76 = scmp.eq.s32.totalorder %s28, 1
      %p77 = por %p75, %p76
      %p79 = scmp.ne.s32.totalorder %s62, %s78
      %p80 = scmp.eq.s32.totalorder %s28, 0
      %p81 = por %p79, %p80
      %s82 = ssub.s32 %s22, %s29
      %p83 = scmp.eq.s32.totalorder %s82, 0
      %s85 = sadd.s32 %s84, 1
      %s86 = scalar_select %p83, %s84, %s85
      %p89 = pneg %p83
      %p90 = scmp.eq.s32.totalorder %s22, 1
      %p91 = por %p89, %p90
      %p92 = scmp.ne.s32.totalorder %s84, %s87
      %p93 = scmp.eq.s32.totalorder %s22, 0
      %p94 = por %p92, %p93
      %p95 = scmp.ne.s32.totalorder %s84, %s87
      %p96 = scmp.eq.s32.totalorder %s27, 1
      %p97 = por %p95, %p96
      %p98 = scmp.ne.s32.totalorder %s87, %s88
      %p99 = scmp.eq.s32.totalorder %s27, 0
      %p100 = por %p98, %p99
      %p101 = scmp.ne.s32.totalorder %s87, %s88
      %p102 = scmp.eq.s32.totalorder %s28, 1
      %p103 = por %p101, %p102
      %p105 = scmp.ne.s32.totalorder %s88, %s104
      %p106 = scmp.eq.s32.totalorder %s28, 0
      %p107 = por %p105, %p106
      %s109 = sadd.s32 %s108, 1
      %p112 = scmp.eq.s32.totalorder %s22, 1
      %p113 = scmp.ne.s32.totalorder %s108, %s110
      %p114 = scmp.eq.s32.totalorder %s22, 0
      %p115 = por %p113, %p114
      %p116 = scmp.ne.s32.totalorder %s108, %s110
      %p117 = scmp.eq.s32.totalorder %s27, 1
      %p118 = por %p116, %p117
      %p119 = scmp.ne.s32.totalorder %s110, %s111
      %p120 = scmp.eq.s32.totalorder %s27, 0
      %p121 = por %p119, %p120
      %p122 = scmp.ne.s32.totalorder %s110, %s111
      %p123 = scmp.eq.s32.totalorder %s28, 1
      %p124 = por %p122, %p123
      %p126 = scmp.ne.s32.totalorder %s111, %s125
      %p127 = scmp.eq.s32.totalorder %s28, 0
      %p128 = por %p126, %p127
      %s130 = sadd.s32 %s129, 1
      %p133 = scmp.eq.s32.totalorder %s22, 1
      %p134 = scmp.ne.s32.totalorder %s129, %s131
      %p135 = scmp.eq.s32.totalorder %s22, 0
      %p136 = por %p134, %p135
      %p137 = scmp.ne.s32.totalorder %s129, %s131
      %p138 = scmp.eq.s32.totalorder %s27, 1
      %p139 = por %p137, %p138
      %p140 = scmp.ne.s32.totalorder %s131, %s132
      %p141 = scmp.eq.s32.totalorder %s27, 0
      %p142 = por %p140, %p141
      %p143 = scmp.ne.s32.totalorder %s131, %s132
      %p144 = scmp.eq.s32.totalorder %s28, 1
      %p145 = por %p143, %p144
      %p147 = scmp.ne.s32.totalorder %s132, %s146
      %p148 = scmp.eq.s32.totalorder %s28, 0
      %p149 = por %p147, %p148
      %s151 = sadd.s32 %s150, 1
      %p154 = scmp.eq.s32.totalorder %s22, 1
      %p155 = scmp.ne.s32.totalorder %s150, %s152
      %p156 = scmp.eq.s32.totalorder %s22, 0
      %p157 = por %p155, %p156
      %p158 = scmp.ne.s32.totalorder %s150, %s152
      %p159 = scmp.eq.s32.totalorder %s27, 1
      %p160 = por %p158, %p159
      %p161 = scmp.ne.s32.totalorder %s152, %s153
      %p162 = scmp.eq.s32.totalorder %s27, 0
      %p163 = por %p161, %p162
      %p164 = scmp.ne.s32.totalorder %s152, %s153
      %p165 = scmp.eq.s32.totalorder %s28, 1
      %p166 = por %p164, %p165
      %p168 = scmp.ne.s32.totalorder %s153, %s167
      %p169 = scmp.eq.s32.totalorder %s28, 0
      %p170 = por %p168, %p169
      %s172 = sadd.s32 %s171, 1
      %p175 = scmp.eq.s32.totalorder %s22, 1
      %p176 = scmp.ne.s32.totalorder %s171, %s173
      %p177 = scmp.eq.s32.totalorder %s22, 0
      %p178 = por %p176, %p177
      %p179 = scmp.ne.s32.totalorder %s171, %s173
      %p180 = scmp.eq.s32.totalorder %s27, 1
      %p181 = por %p179, %p180
      %p182 = scmp.ne.s32.totalorder %s173, %s174
      %p183 = scmp.eq.s32.totalorder %s27, 0
      %p184 = por %p182, %p183
      %p185 = scmp.ne.s32.totalorder %s173, %s174
      %p186 = scmp.eq.s32.totalorder %s28, 1
      %p187 = por %p185, %p186
      %p189 = scmp.ne.s32.totalorder %s174, %s188
      %p190 = scmp.eq.s32.totalorder %s28, 0
      %p191 = por %p189, %p190
      %s193 = sadd.s32 %s192, 1
      %p196 = scmp.eq.s32.totalorder %s22, 1
      %p197 = scmp.ne.s32.totalorder %s192, %s194
      %p198 = scmp.eq.s32.totalorder %s22, 0
      %p199 = por %p197, %p198
      %p200 = scmp.ne.s32.totalorder %s192, %s194
      %p201 = scmp.eq.s32.totalorder %s27, 1
      %p202 = por %p200, %p201
      %p203 = scmp.ne.s32.totalorder %s194, %s195
      %p204 = scmp.eq.s32.totalorder %s27, 0
      %p205 = por %p203, %p204
      %p206 = scmp.ne.s32.totalorder %s194, %s195
      %p207 = scmp.eq.s32.totalorder %s28, 1
      %p208 = por %p206, %p207
      %p210 = scmp.ne.s32.totalorder %s195, %s209
      %p211 = scmp.eq.s32.totalorder %s28, 0
      %p212 = por %p210, %p211
      %s214 = sadd.s32 %s213, 1
      %p217 = scmp.eq.s32.totalorder %s22, 1
      %p218 = scmp.ne.s32.totalorder %s213, %s215
      %p219 = scmp.eq.s32.totalorder %s22, 0
      %p220 = por %p218, %p219
      %p221 = scmp.ne.s32.totalorder %s213, %s215
      %p222 = scmp.eq.s32.totalorder %s27, 1
      %p223 = por %p221, %p222
      %p224 = scmp.ne.s32.totalorder %s215, %s216
      %p225 = scmp.eq.s32.totalorder %s27, 0
      %p226 = por %p224, %p225
      %p227 = scmp.ne.s32.totalorder %s215, %s216
      %p228 = scmp.eq.s32.totalorder %s28, 1
      %p229 = por %p227, %p228
      %p231 = scmp.ne.s32.totalorder %s216, %s230
      %p232 = scmp.eq.s32.totalorder %s28, 0
      %p233 = por %p231, %p232
      %s235 = sadd.s32 %s234, 1
      %p238 = scmp.eq.s32.totalorder %s22, 1
      %p239 = scmp.ne.s32.totalorder %s234, %s236
      %p240 = scmp.eq.s32.totalorder %s22, 0
      %p241 = por %p239, %p240
      %p242 = scmp.ne.s32.totalorder %s234, %s236
      %p243 = scmp.eq.s32.totalorder %s27, 1
      %p244 = por %p242, %p243
      %p245 = scmp.ne.s32.totalorder %s236, %s237
      %p246 = scmp.eq.s32.totalorder %s27, 0
      %p247 = por %p245, %p246
      %p248 = scmp.ne.s32.totalorder %s236, %s237
      %p249 = scmp.eq.s32.totalorder %s28, 1
      %p250 = por %p248, %p249
      %p252 = scmp.ne.s32.totalorder %s237, %s251
      %p253 = scmp.eq.s32.totalorder %s28, 0
      %p254 = por %p252, %p253
      %s256 = sadd.s32 %s255, 1
      %p259 = scmp.eq.s32.totalorder %s22, 1
      %p260 = scmp.ne.s32.totalorder %s255, %s257
      %p261 = scmp.eq.s32.totalorder %s22, 0
      %p262 = por %p260, %p261
      %p263 = scmp.ne.s32.totalorder %s255, %s257
      %p264 = scmp.eq.s32.totalorder %s27, 1
      %p265 = por %p263, %p264
      %p266 = scmp.ne.s32.totalorder %s257, %s258
      %p267 = scmp.eq.s32.totalorder %s27, 0
      %p268 = por %p266, %p267
      %p269 = scmp.ne.s32.totalorder %s257, %s258
      %p270 = scmp.eq.s32.totalorder %s28, 1
      %p271 = por %p269, %p270
      %p273 = scmp.ne.s32.totalorder %s258, %s272
      %p274 = scmp.eq.s32.totalorder %s28, 0
      %p275 = por %p273, %p274
      %s277 = sadd.s32 %s276, 1
      %p280 = scmp.eq.s32.totalorder %s22, 1
      %p281 = scmp.ne.s32.totalorder %s276, %s278
      %p282 = scmp.eq.s32.totalorder %s22, 0
      %p283 = por %p281, %p282
      %p284 = scmp.ne.s32.totalorder %s276, %s278
      %p285 = scmp.eq.s32.totalorder %s27, 1
      %p286 = por %p284, %p285
      %p287 = scmp.ne.s32.totalorder %s278, %s279
      %p288 = scmp.eq.s32.totalorder %s27, 0
      %p289 = por %p287, %p288
      %p290 = scmp.ne.s32.totalorder %s278, %s279
      %p291 = scmp.eq.s32.totalorder %s28, 1
      %p292 = por %p290, %p291
      %p294 = scmp.ne.s32.totalorder %s279, %s293
      %p295 = scmp.eq.s32.totalorder %s28, 0
      %p296 = por %p294, %p295
      %s298 = sadd.s32 %s297, 1
      %p301 = scmp.eq.s32.totalorder %s22, 1
      %p302 = scmp.ne.s32.totalorder %s297, %s299
      %p303 = scmp.eq.s32.totalorder %s22, 0
      %p304 = por %p302, %p303
      %p305 = scmp.ne.s32.totalorder %s297, %s299
      %p306 = scmp.eq.s32.totalorder %s27, 1
      %p307 = por %p305, %p306
      %p308 = scmp.ne.s32.totalorder %s299, %s300
      %p309 = scmp.eq.s32.totalorder %s27, 0
      %p310 = por %p308, %p309
      %p311 = scmp.ne.s32.totalorder %s299, %s300
      %p312 = scmp.eq.s32.totalorder %s28, 1
      %p313 = por %p311, %p312
      %p315 = scmp.ne.s32.totalorder %s300, %s314
      %p316 = scmp.eq.s32.totalorder %s28, 0
      %p317 = por %p315, %p316
      %s318 = ssub.s32 %s22, %s29
      %p319 = scmp.eq.s32.totalorder %s318, 0
      %s321 = sadd.s32 %s320, 1
      %s322 = scalar_select %p319, %s320, %s321
      %p325 = pneg %p319
      %p326 = scmp.eq.s32.totalorder %s22, 1
      %p327 = por %p325, %p326
      %p328 = scmp.ne.s32.totalorder %s320, %s323
      %p329 = scmp.eq.s32.totalorder %s22, 0
      %p330 = por %p328, %p329
      %p331 = scmp.ne.s32.totalorder %s320, %s323
      %p332 = scmp.eq.s32.totalorder %s27, 1
      %p333 = por %p331, %p332
      %p334 = scmp.ne.s32.totalorder %s323, %s324
      %p335 = scmp.eq.s32.totalorder %s27, 0
      %p336 = por %p334, %p335
      %p337 = scmp.ne.s32.totalorder %s323, %s324
      %p338 = scmp.eq.s32.totalorder %s28, 1
      %p339 = por %p337, %p338
      %p341 = scmp.ne.s32.totalorder %s324, %s340
      %p342 = scmp.eq.s32.totalorder %s28, 0
      %p343 = por %p341, %p342
      %p344 = scmp.le.s32.totalorder 1, %s22
      %p345 = scmp.lt.s32.totalorder %s22, 3
      %p346 = pnand %p344, %p345
      %p347 = pneg %p346
      // Predicated region
      $region9: #{tpu_custom_call.1} parent=5 // pred_check
        _
      $region10: #{tpu_custom_call.1} parent=5 // pred_check_branch
        %349 = sbr.rel (%p346) target = $region12
      $region11: #{tpu_custom_call.1} parent=5 // pred_region
        %s350 = ssub.s32 %s22, 1
        // Predicated region
        $region13: #{tpu_custom_call.1} parent=11 // pred_check
          %p351 = pneg %p121
        $region14: #{tpu_custom_call.1} parent=11 // pred_check_branch
          %353 = sbr.rel (%p351) target = $region16
        $region15: #{tpu_custom_call.1} parent=11 // pred_region
          _
        $region16: #{tpu_custom_call.1} parent=11 // pred_fallthru
          _
        // Predicated region
        $region17: #{tpu_custom_call.1} parent=11 // pred_check
          %p354 = pneg %p142
        $region18: #{tpu_custom_call.1} parent=11 // pred_check_branch
          %356 = sbr.rel (%p354) target = $region20
        $region19: #{tpu_custom_call.1} parent=11 // pred_region
          _
        $region20: #{tpu_custom_call.1} parent=11 // pred_fallthru
          _
        // Predicated region
        $region21: #{tpu_custom_call.1} parent=11 // pred_check
          %p357 = pneg %p163
        $region22: #{tpu_custom_call.1} parent=11 // pred_check_branch
          %359 = sbr.rel (%p357) target = $region24
        $region23: #{tpu_custom_call.1} parent=11 // pred_region
          _
        $region24: #{tpu_custom_call.1} parent=11 // pred_fallthru
          _
        // Predicated region
        $region25: #{tpu_custom_call.1} parent=11 // pred_check
          %p360 = pneg %p184
        $region26: #{tpu_custom_call.1} parent=11 // pred_check_branch
          %362 = sbr.rel (%p360) target = $region28
        $region27: #{tpu_custom_call.1} parent=11 // pred_region
          _
        $region28: #{tpu_custom_call.1} parent=11 // pred_fallthru
          _
        // Predicated region
        $region29: #{tpu_custom_call.1} parent=11 // pred_check
          %p363 = pneg %p205
        $region30: #{tpu_custom_call.1} parent=11 // pred_check_branch
          %365 = sbr.rel (%p363) target = $region32
        $region31: #{tpu_custom_call.1} parent=11 // pred_region
          _
        $region32: #{tpu_custom_call.1} parent=11 // pred_fallthru
          _
        // Predicated region
        $region33: #{tpu_custom_call.1} parent=11 // pred_check
          %p366 = pneg %p226
        $region34: #{tpu_custom_call.1} parent=11 // pred_check_branch
          %368 = sbr.rel (%p366) target = $region36
        $region35: #{tpu_custom_call.1} parent=11 // pred_region
          _
        $region36: #{tpu_custom_call.1} parent=11 // pred_fallthru
          _
        // Predicated region
        $region37: #{tpu_custom_call.1} parent=11 // pred_check
          %p369 = pneg %p247
        $region38: #{tpu_custom_call.1} parent=11 // pred_check_branch
          %371 = sbr.rel (%p369) target = $region40
        $region39: #{tpu_custom_call.1} parent=11 // pred_region
          _
        $region40: #{tpu_custom_call.1} parent=11 // pred_fallthru
          _
        // Predicated region
        $region41: #{tpu_custom_call.1} parent=11 // pred_check
          %p372 = pneg %p268
        $region42: #{tpu_custom_call.1} parent=11 // pred_check_branch
          %374 = sbr.rel (%p372) target = $region44
        $region43: #{tpu_custom_call.1} parent=11 // pred_region
          _
        $region44: #{tpu_custom_call.1} parent=11 // pred_fallthru
          _
        // Predicated region
        $region45: #{tpu_custom_call.1} parent=11 // pred_check
          %p375 = pneg %p289
        $region46: #{tpu_custom_call.1} parent=11 // pred_check_branch
          %377 = sbr.rel (%p375) target = $region48
        $region47: #{tpu_custom_call.1} parent=11 // pred_region
          _
        $region48: #{tpu_custom_call.1} parent=11 // pred_fallthru
          _
        // Predicated region
        $region49: #{tpu_custom_call.1} parent=11 // pred_check
          %p378 = pneg %p310
        $region50: #{tpu_custom_call.1} parent=11 // pred_check_branch
          %380 = sbr.rel (%p378) target = $region52
        $region51: #{tpu_custom_call.1} parent=11 // pred_region
          _
        $region52: #{tpu_custom_call.1} parent=11 // pred_fallthru
          _
      $region12: #{tpu_custom_call.1} parent=5 // pred_fallthru
        _
      %p381 = scmp.lt.s32.totalorder %s22, 2
      // Predicated region
      $region53: #{tpu_custom_call.1} parent=5 // pred_check
        %p382 = pneg %p381
      $region54: #{tpu_custom_call.1} parent=5 // pred_check_branch
        %384 = sbr.rel (%p382) target = $region56
      $region55: #{tpu_custom_call.1} parent=5 // pred_region
        // Predicated region
        $region57: #{tpu_custom_call.1} parent=55 // pred_check
          %p385 = pneg %p42
        $region58: #{tpu_custom_call.1} parent=55 // pred_check_branch
          %387 = sbr.rel (%p385) target = $region60
        $region59: #{tpu_custom_call.1} parent=55 // pred_region
          %p388 = scmp.lt.s32.totalorder %s22, 1
          %s389 = scalar_select %p388, %s22, 1
          %s390 = smul.addr %s389, 8
          %s391 = smul.addr %s390, 8
          %s392 = scalar_lea.vmem %s0, %s391
        $region60: #{tpu_custom_call.1} parent=55 // pred_fallthru
          _
        // Predicated region
        $region61: #{tpu_custom_call.1} parent=55 // pred_check
          %p393 = pneg %p68
        $region62: #{tpu_custom_call.1} parent=55 // pred_check_branch
          %395 = sbr.rel (%p393) target = $region64
        $region63: #{tpu_custom_call.1} parent=55 // pred_region
          %p396 = scmp.lt.s32.totalorder %s22, 1
          %s397 = scalar_select %p396, %s22, 1
          %s398 = smul.addr %s397, 4
          %s399 = smul.addr %s398, 8
          %s400 = scalar_lea.vmem %s1, %s399
        $region64: #{tpu_custom_call.1} parent=55 // pred_fallthru
          _
        // Predicated region
        $region65: #{tpu_custom_call.1} parent=55 // pred_check
          %p401 = pneg %p94
        $region66: #{tpu_custom_call.1} parent=55 // pred_check_branch
          %403 = sbr.rel (%p401) target = $region68
        $region67: #{tpu_custom_call.1} parent=55 // pred_region
          %p404 = scmp.lt.s32.totalorder %s22, 1
          %s405 = scalar_select %p404, %s22, 1
          %s406 = smul.addr %s405, 4
          %s407 = smul.addr %s406, 8
          %s408 = scalar_lea.vmem %s2, %s407
        $region68: #{tpu_custom_call.1} parent=55 // pred_fallthru
          _
      $region56: #{tpu_custom_call.1} parent=5 // pred_fallthru
        _
      %p409 = scmp.le.s32.totalorder 1, %s22
      %p410 = scmp.lt.s32.totalorder %s22, 3
      %p411 = pnand %p409, %p410
      %p412 = pneg %p411
      // Predicated region
      $region69: #{tpu_custom_call.1} parent=5 // pred_check
        _
      $region70: #{tpu_custom_call.1} parent=5 // pred_check_branch
        %414 = sbr.rel (%p411) target = $region72
      $region71: #{tpu_custom_call.1} parent=5 // pred_region
        %s415 = ssub.s32 %s22, 1
        %p416 = scmp.lt.s32.totalorder %s27, 1
        %s417 = scalar_select %p416, %s27, 1
        %s418 = smul.addr %s417, 8
        %s419 = smul.addr %s418, 8
        %s420 = scalar_lea.vmem %s0, %s419
        %p421 = pneg %p48
        %p422 = pneg %p45
        %p423 = scmp.lt.s32.totalorder %s27, 1
        %s424 = scalar_select %p423, %s27, 1
        %s425 = smul.addr %s424, 4
        %s426 = smul.addr %s425, 8
        %s427 = scalar_lea.vmem %s1, %s426
        %p428 = pneg %p74
        %p429 = pneg %p71
        %p430 = scmp.lt.s32.totalorder %s27, 1
        %s431 = scalar_select %p430, %s27, 1
        %s432 = smul.addr %s431, 4
        %s433 = smul.addr %s432, 8
        %s434 = scalar_lea.vmem %s2, %s433
        %p435 = pneg %p100
        %p436 = pneg %p97
        %p437 = pneg %p121
        %p438 = pneg %p118
        %p439 = pneg %p142
        %p440 = pneg %p139
        %p441 = pneg %p163
        %p442 = pneg %p160
        %p443 = pneg %p184
        %p444 = pneg %p181
        %p445 = pneg %p205
        %p446 = pneg %p202
        %p447 = pneg %p226
        %p448 = pneg %p223
        %p449 = pneg %p247
        %p450 = pneg %p244
        %p451 = pneg %p268
        %p452 = pneg %p265
        %p453 = pneg %p289
        %p454 = pneg %p286
        %p455 = pneg %p310
        %p456 = pneg %p307
        %p457 = pneg %p336
        %p458 = pneg %p333
        %s459 = sand.u32 %s323, 1
        %s460 = scalar_lea.sflag [#allocation3], %s459
        %s461 = sand.u32 %s323, 1
        %s462 = smul.addr %s461, 32
        %s463 = scalar_lea.vmem [#allocation2], %s462
        %p464 = scmp.lt.s32.totalorder %s27, 1
        %s465 = scalar_select %p464, %s27, 1
        %s466 = smul.addr %s465, 8
        %s467 = smul.addr %s466, 8
        %s468 = scalar_lea.vmem %s0, %s467
        %p469 = scmp.lt.s32.totalorder %s27, 1
        %s470 = scalar_select %p469, %s27, 1
        %s471 = smul.addr %s470, 4
        %s472 = smul.addr %s471, 8
        %s473 = scalar_lea.vmem %s1, %s472
        %p474 = scmp.lt.s32.totalorder %s27, 1
        %s475 = scalar_select %p474, %s27, 1
        %s476 = smul.addr %s475, 4
        %s477 = smul.addr %s476, 8
        %s478 = scalar_lea.vmem %s2, %s477
        %v480 = vld [vmem:[%s468] sm:$0xff]
        %v481 = vld [vmem:[%s468 + $0x8] sm:$0xff]
        %v482 = vld [vmem:[%s468 + $0x10] sm:$0xff]
        %v483 = vld [vmem:[%s468 + $0x18] sm:$0xff]
        %v484 = vld [vmem:[%s468 + $0x20] sm:$0xff]
        %v485 = vld [vmem:[%s468 + $0x28] sm:$0xff]
        %v486 = vld [vmem:[%s468 + $0x30] sm:$0xff]
        %v487 = vld [vmem:[%s468 + $0x38] sm:$0xff]
        %v488 = vld [vmem:[%s473] sm:$0xff]
        %v489 = vld [vmem:[%s473 + $0x8] sm:$0xff]
        %v490 = vld [vmem:[%s473 + $0x10] sm:$0xff]
        %v491 = vld [vmem:[%s473 + $0x18] sm:$0xff]
        %v492 = vld [vmem:[%s478] sm:$0xff]
        %v493 = vld [vmem:[%s478 + $0x8] sm:$0xff]
        %v494 = vld [vmem:[%s478 + $0x10] sm:$0xff]
        %v495 = vld [vmem:[%s478 + $0x18] sm:$0xff]
        %v496 = vld [vmem:[%s3] sm:$0xf]
        %v497 = vld [vmem:[%s3 + $0x4] sm:$0xf]
        %v498 = vld [vmem:[%s3 + $0x8] sm:$0xf]
        %v499 = vld [vmem:[%s3 + $0xc] sm:$0xf]
        %v500 = vpack.c.bf16 %v481, %v480
        %v501 = vpack.c.bf16 %v483, %v482
        %v502 = vpack.c.bf16 %v485, %v484
        %v503 = vpack.c.bf16 %v487, %v486
        %v504 = vld [vmem:[%s5] sm:$0xff]
        %v505 = vld [vmem:[%s5 + $0x8] sm:$0xff]
        %v506 = vld [vmem:[%s5 + $0x10] sm:$0xff]
        %v507 = vld [vmem:[%s5 + $0x18] sm:$0xff]
        %509 = vset.pattern.permute.xlu0 0
        %510 = vperm.xlu0 %509, %v504
        %v511 = vpop.permute.xlu0 %510
        %514 = vset.pattern.permute.xlu0 0
        %515 = vperm.xlu0 %514, %v505
        %v516 = vpop.permute.xlu0 %515
        %519 = vset.pattern.permute.xlu0 0
        %520 = vperm.xlu0 %519, %v506
        %v521 = vpop.permute.xlu0 %520
        %524 = vset.pattern.permute.xlu0 0
        %525 = vperm.xlu0 %524, %v507
        %v526 = vpop.permute.xlu0 %525
        %v532 = vunpack.c.l.b16 %v496
        %v533 = vunpack.c.l.b16 %v497
        %v534 = vunpack.c.l.b16 %v498
        %v535 = vunpack.c.l.b16 %v499
        %v536 = vpack.c.b16 %v533, %v532
        %v537 = vpack.c.b16 %v535, %v534
        %vm538 = vcmask 523264
        %v540 = vsel %vm538, %v536, 0
        %v543 = vsel %vm538, %v537, 0
        %545 = vmatprep.subr.bf16.mxu0 0
        %546 = vmatpush1.bf16.msra.mxu0 %v500
        %547 = vmatprep.subr.bf16.mxu0 0
        %548 = vmatpush1.bf16.msra.mxu0 %v501
        %549 = vmatprep.subr.bf16.mxu0 0
        %550 = vmatpush1.bf16.msra.mxu0 %v502
        %551 = vmatprep.subr.bf16.mxu0 0
        %552 = vmatpush1.bf16.msra.mxu0 %v503
        %553 = vmatprep.subr.bf16.mxu0 0
        %554 = vmatpush1.bf16.msra.mxu0 0
        %555 = vmatprep.subr.bf16.mxu0 0
        %556 = vmatpush1.bf16.msra.mxu0 0
        %557 = vmatprep.subr.bf16.mxu0 0
        %558 = vmatpush1.bf16.msra.mxu0 0
        %559 = vmatprep.subr.bf16.mxu0 0
        %560 = vmatpush1.bf16.msra.mxu0 0
        %561 = vmatprep.subr.bf16.mxu0 0
        %562 = vmatpush1.bf16.msra.mxu0 0
        %563 = vmatprep.subr.bf16.mxu0 0
        %564 = vmatpush1.bf16.msra.mxu0 0
        %565 = vmatprep.subr.bf16.mxu0 0
        %566 = vmatpush1.bf16.msra.mxu0 0
        %567 = vmatprep.subr.bf16.mxu0 0
        %568 = vmatpush1.bf16.msra.mxu0 0
        %569 = vmatprep.subr.bf16.mxu0 0
        %570 = vmatpush1.bf16.msra.mxu0 0
        %571 = vmatprep.subr.bf16.mxu0 0
        %572 = vmatpush1.bf16.msra.mxu0 0
        %573 = vmatprep.subr.bf16.mxu0 0
        %574 = vmatpush1.bf16.msra.mxu0 0
        %575 = vmatprep.subr.bf16.mxu0 0
        %576 = vmatpush1.bf16.msra.mxu0 0
        %577 = vmatprep.mubr.bf16.mxu0 0
        %578 = vmatmul.mubr.bf16.gmra.mrb[0].mxu0 %v540
        %v579 = vpop.f32.mrb[0].mxu0
        %v580 = vadd.f32 %v511, %v579
        %v581 = vpop.f32.mrb[0].mxu0
        %v582 = vpop.f32.mrb[0].mxu0
        %v583 = vadd.f32 %v516, %v582
        %v584 = vpop.f32.mrb[0].mxu0
        %585 = vmatprep.mubr.bf16.mxu0 0
        %586 = vmatmul.mubr.bf16.gmra.mrb[0].mxu0 %v543
        %v587 = vpop.f32.mrb[0].mxu0
        %v588 = vadd.f32 %v521, %v587
        %v589 = vpop.f32.mrb[0].mxu0
        %v590 = vpop.f32.mrb[0].mxu0
        %v591 = vadd.f32 %v526, %v590
        %v592 = vpop.f32.mrb[0].mxu0
        %593 = vdwg.mxu0
        %v594 = vmax.f32 %v580, 0.0
        %v595 = vmax.f32 %v583, 0.0
        %v596 = vmax.f32 %v588, 0.0
        %v597 = vmax.f32 %v591, 0.0
        %v598 = vld [vmem:[%s4] sm:$0xf]
        %v599 = vld [vmem:[%s4 + $0x4] sm:$0xf]
        %v600 = vld [vmem:[%s4 + $0x8] sm:$0xf]
        %v601 = vld [vmem:[%s4 + $0xc] sm:$0xf]
        %v602 = vpack.c.bf16 %v595, %v594
        %v603 = vpack.c.bf16 %v597, %v596
        %v604 = vld [vmem:[%s5 + $0x20] sm:$0xff]
        %v605 = vld [vmem:[%s5 + $0x28] sm:$0xff]
        %v606 = vld [vmem:[%s5 + $0x30] sm:$0xff]
        %v607 = vld [vmem:[%s5 + $0x38] sm:$0xff]
        %609 = vset.pattern.permute.xlu0 0
        %610 = vperm.xlu0 %609, %v604
        %v611 = vpop.permute.xlu0 %610
        %614 = vset.pattern.permute.xlu0 0
        %615 = vperm.xlu0 %614, %v605
        %v616 = vpop.permute.xlu0 %615
        %619 = vset.pattern.permute.xlu0 0
        %620 = vperm.xlu0 %619, %v606
        %v621 = vpop.permute.xlu0 %620
        %624 = vset.pattern.permute.xlu0 0
        %625 = vperm.xlu0 %624, %v607
        %v626 = vpop.permute.xlu0 %625
        %v632 = vunpack.c.l.b16 %v598
        %v633 = vunpack.c.l.b16 %v599
        %v634 = vunpack.c.l.b16 %v600
        %v635 = vunpack.c.l.b16 %v601
        %v636 = vpack.c.b16 %v633, %v632
        %v637 = vpack.c.b16 %v635, %v634
        %vm638 = vcmask 261120
        %v640 = vsel %vm638, %v636, 0
        %v643 = vsel %vm638, %v637, 0
        %645 = vmatprep.subr.bf16.mxu0 0
        %646 = vmatpush1.bf16.msra.mxu0 %v602
        %647 = vmatprep.subr.bf16.mxu0 0
        %648 = vmatpush1.bf16.msra.mxu0 %v603
        %649 = vmatprep.subr.bf16.mxu0 0
        %650 = vmatpush1.bf16.msra.mxu0 0
        %651 = vmatprep.subr.bf16.mxu0 0
        %652 = vmatpush1.bf16.msra.mxu0 0
        %653 = vmatprep.subr.bf16.mxu0 0
        %654 = vmatpush1.bf16.msra.mxu0 0
        %655 = vmatprep.subr.bf16.mxu0 0
        %656 = vmatpush1.bf16.msra.mxu0 0
        %657 = vmatprep.subr.bf16.mxu0 0
        %658 = vmatpush1.bf16.msra.mxu0 0
        %659 = vmatprep.subr.bf16.mxu0 0
        %660 = vmatpush1.bf16.msra.mxu0 0
        %661 = vmatprep.subr.bf16.mxu0 0
        %662 = vmatpush1.bf16.msra.mxu0 0
        %663 = vmatprep.subr.bf16.mxu0 0
        %664 = vmatpush1.bf16.msra.mxu0 0
        %665 = vmatprep.subr.bf16.mxu0 0
        %666 = vmatpush1.bf16.msra.mxu0 0
        %667 = vmatprep.subr.bf16.mxu0 0
        %668 = vmatpush1.bf16.msra.mxu0 0
        %669 = vmatprep.subr.bf16.mxu0 0
        %670 = vmatpush1.bf16.msra.mxu0 0
        %671 = vmatprep.subr.bf16.mxu0 0
        %672 = vmatpush1.bf16.msra.mxu0 0
        %673 = vmatprep.subr.bf16.mxu0 0
        %674 = vmatpush1.bf16.msra.mxu0 0
        %675 = vmatprep.subr.bf16.mxu0 0
        %676 = vmatpush1.bf16.msra.mxu0 0
        %677 = vmatprep.mubr.bf16.mxu0 0
        %678 = vmatmul.mubr.bf16.gmra.mrb[0].mxu0 %v640
        %v679 = vpop.f32.mrb[0].mxu0
        %v680 = vadd.f32 %v611, %v679
        %v681 = vpop.f32.mrb[0].mxu0
        %v682 = vpop.f32.mrb[0].mxu0
        %v683 = vadd.f32 %v616, %v682
        %v684 = vpop.f32.mrb[0].mxu0
        %685 = vmatprep.mubr.bf16.mxu0 0
        %686 = vmatmul.mubr.bf16.gmra.mrb[0].mxu0 %v643
        %v687 = vpop.f32.mrb[0].mxu0
        %v688 = vadd.f32 %v621, %v687
        %v689 = vpop.f32.mrb[0].mxu0
        %v690 = vpop.f32.mrb[0].mxu0
        %v691 = vadd.f32 %v626, %v690
        %v692 = vpop.f32.mrb[0].mxu0
        %693 = vdwg.mxu0
        %v694 = vmax.f32 %v680, 0.0
        %v695 = vmax.f32 %v683, 0.0
        %v696 = vmax.f32 %v688, 0.0
        %v697 = vmax.f32 %v691, 0.0
        %v698 = vld [vmem:[%s6] sm:$0xf]
        %v699 = vld [vmem:[%s6 + $0x4] sm:$0xf]
        %v700 = vld [vmem:[%s6 + $0x8] sm:$0xf]
        %v701 = vld [vmem:[%s6 + $0xc] sm:$0xf]
        %v702 = vpack.c.bf16 %v489, %v488
        %v703 = vpack.c.bf16 %v491, %v490
        %v704 = vpack.c.bf16 %v695, %v694
        %v705 = vpack.c.bf16 %v697, %v696
        %v706 = vld [vmem:[%s8] sm:$0xff]
        %v707 = vld [vmem:[%s8 + $0x8] sm:$0xff]
        %v708 = vld [vmem:[%s8 + $0x10] sm:$0xff]
        %v709 = vld [vmem:[%s8 + $0x18] sm:$0xff]
        %711 = vset.pattern.permute.xlu0 0
        %712 = vperm.xlu0 %711, %v706
        %v713 = vpop.permute.xlu0 %712
        %716 = vset.pattern.permute.xlu0 0
        %717 = vperm.xlu0 %716, %v707
        %v718 = vpop.permute.xlu0 %717
        %721 = vset.pattern.permute.xlu0 0
        %722 = vperm.xlu0 %721, %v708
        %v723 = vpop.permute.xlu0 %722
        %726 = vset.pattern.permute.xlu0 0
        %727 = vperm.xlu0 %726, %v709
        %v728 = vpop.permute.xlu0 %727
        %v734 = vunpack.c.l.b16 %v698
        %v735 = vunpack.c.l.b16 %v699
        %v736 = vunpack.c.l.b16 %v700
        %v737 = vunpack.c.l.b16 %v701
        %v738 = vpack.c.b16 %v735, %v734
        %v739 = vpack.c.b16 %v737, %v736
        %v741 = vsel %vm538, %v738, 0
        %v744 = vsel %vm538, %v739, 0
        %746 = vmatprep.subr.bf16.mxu0 0
        %747 = vmatpush1.bf16.msra.mxu0 %v702
        %748 = vmatprep.subr.bf16.mxu0 0
        %749 = vmatpush1.bf16.msra.mxu0 %v703
        %750 = vmatprep.subr.bf16.mxu0 0
        %751 = vmatpush1.bf16.msra.mxu0 %v704
        %752 = vmatprep.subr.bf16.mxu0 0
        %753 = vmatpush1.bf16.msra.mxu0 %v705
        %754 = vmatprep.subr.bf16.mxu0 0
        %755 = vmatpush1.bf16.msra.mxu0 0
        %756 = vmatprep.subr.bf16.mxu0 0
        %757 = vmatpush1.bf16.msra.mxu0 0
        %758 = vmatprep.subr.bf16.mxu0 0
        %759 = vmatpush1.bf16.msra.mxu0 0
        %760 = vmatprep.subr.bf16.mxu0 0
        %761 = vmatpush1.bf16.msra.mxu0 0
        %762 = vmatprep.subr.bf16.mxu0 0
        %763 = vmatpush1.bf16.msra.mxu0 0
        %764 = vmatprep.subr.bf16.mxu0 0
        %765 = vmatpush1.bf16.msra.mxu0 0
        %766 = vmatprep.subr.bf16.mxu0 0
        %767 = vmatpush1.bf16.msra.mxu0 0
        %768 = vmatprep.subr.bf16.mxu0 0
        %769 = vmatpush1.bf16.msra.mxu0 0
        %770 = vmatprep.subr.bf16.mxu0 0
        %771 = vmatpush1.bf16.msra.mxu0 0
        %772 = vmatprep.subr.bf16.mxu0 0
        %773 = vmatpush1.bf16.msra.mxu0 0
        %774 = vmatprep.subr.bf16.mxu0 0
        %775 = vmatpush1.bf16.msra.mxu0 0
        %776 = vmatprep.subr.bf16.mxu0 0
        %777 = vmatpush1.bf16.msra.mxu0 0
        %778 = vmatprep.mubr.bf16.mxu0 0
        %779 = vmatmul.mubr.bf16.gmra.mrb[0].mxu0 %v741
        %v780 = vpop.f32.mrb[0].mxu0
        %v781 = vadd.f32 %v713, %v780
        %v782 = vpop.f32.mrb[0].mxu0
        %v783 = vpop.f32.mrb[0].mxu0
        %v784 = vadd.f32 %v718, %v783
        %v785 = vpop.f32.mrb[0].mxu0
        %786 = vmatprep.mubr.bf16.mxu0 0
        %787 = vmatmul.mubr.bf16.gmra.mrb[0].mxu0 %v744
        %v788 = vpop.f32.mrb[0].mxu0
        %v789 = vadd.f32 %v723, %v788
        %v790 = vpop.f32.mrb[0].mxu0
        %v791 = vpop.f32.mrb[0].mxu0
        %v792 = vadd.f32 %v728, %v791
        %v793 = vpop.f32.mrb[0].mxu0
        %794 = vdwg.mxu0
        %v795 = vmax.f32 %v781, 0.0
        %v796 = vmax.f32 %v784, 0.0
        %v797 = vmax.f32 %v789, 0.0
        %v798 = vmax.f32 %v792, 0.0
        %v799 = vld [vmem:[%s7] sm:$0xf]
        %v800 = vld [vmem:[%s7 + $0x4] sm:$0xf]
        %v801 = vld [vmem:[%s7 + $0x8] sm:$0xf]
        %v802 = vld [vmem:[%s7 + $0xc] sm:$0xf]
        %v803 = vpack.c.bf16 %v796, %v795
        %v804 = vpack.c.bf16 %v798, %v797
        %v805 = vld [vmem:[%s8 + $0x20] sm:$0xff]
        %v806 = vld [vmem:[%s8 + $0x28] sm:$0xff]
        %v807 = vld [vmem:[%s8 + $0x30] sm:$0xff]
        %v808 = vld [vmem:[%s8 + $0x38] sm:$0xff]
        %810 = vset.pattern.permute.xlu0 0
        %811 = vperm.xlu0 %810, %v805
        %v812 = vpop.permute.xlu0 %811
        %815 = vset.pattern.permute.xlu0 0
        %816 = vperm.xlu0 %815, %v806
        %v817 = vpop.permute.xlu0 %816
        %820 = vset.pattern.permute.xlu0 0
        %821 = vperm.xlu0 %820, %v807
        %v822 = vpop.permute.xlu0 %821
        %825 = vset.pattern.permute.xlu0 0
        %826 = vperm.xlu0 %825, %v808
        %v827 = vpop.permute.xlu0 %826
        %v833 = vunpack.c.l.b16 %v799
        %v834 = vunpack.c.l.b16 %v800
        %v835 = vunpack.c.l.b16 %v801
        %v836 = vunpack.c.l.b16 %v802
        %v837 = vpack.c.b16 %v834, %v833
        %v838 = vpack.c.b16 %v836, %v835
        %v840 = vsel %vm638, %v837, 0
        %v843 = vsel %vm638, %v838, 0
        %845 = vmatprep.subr.bf16.mxu0 0
        %846 = vmatpush1.bf16.msra.mxu0 %v803
        %847 = vmatprep.subr.bf16.mxu0 0
        %848 = vmatpush1.bf16.msra.mxu0 %v804
        %849 = vmatprep.subr.bf16.mxu0 0
        %850 = vmatpush1.bf16.msra.mxu0 0
        %851 = vmatprep.subr.bf16.mxu0 0
        %852 = vmatpush1.bf16.msra.mxu0 0
        %853 = vmatprep.subr.bf16.mxu0 0
        %854 = vmatpush1.bf16.msra.mxu0 0
        %855 = vmatprep.subr.bf16.mxu0 0
        %856 = vmatpush1.bf16.msra.mxu0 0
        %857 = vmatprep.subr.bf16.mxu0 0
        %858 = vmatpush1.bf16.msra.mxu0 0
        %859 = vmatprep.subr.bf16.mxu0 0
        %860 = vmatpush1.bf16.msra.mxu0 0
        %861 = vmatprep.subr.bf16.mxu0 0
        %862 = vmatpush1.bf16.msra.mxu0 0
        %863 = vmatprep.subr.bf16.mxu0 0
        %864 = vmatpush1.bf16.msra.mxu0 0
        %865 = vmatprep.subr.bf16.mxu0 0
        %866 = vmatpush1.bf16.msra.mxu0 0
        %867 = vmatprep.subr.bf16.mxu0 0
        %868 = vmatpush1.bf16.msra.mxu0 0
        %869 = vmatprep.subr.bf16.mxu0 0
        %870 = vmatpush1.bf16.msra.mxu0 0
        %871 = vmatprep.subr.bf16.mxu0 0
        %872 = vmatpush1.bf16.msra.mxu0 0
        %873 = vmatprep.subr.bf16.mxu0 0
        %874 = vmatpush1.bf16.msra.mxu0 0
        %875 = vmatprep.subr.bf16.mxu0 0
        %876 = vmatpush1.bf16.msra.mxu0 0
        %877 = vmatprep.mubr.bf16.mxu0 0
        %878 = vmatmul.mubr.bf16.gmra.mrb[0].mxu0 %v840
        %v879 = vpop.f32.mrb[0].mxu0
        %v880 = vadd.f32 %v812, %v879
        %v881 = vpop.f32.mrb[0].mxu0
        %v882 = vpop.f32.mrb[0].mxu0
        %v883 = vadd.f32 %v817, %v882
        %v884 = vpop.f32.mrb[0].mxu0
        %885 = vmatprep.mubr.bf16.mxu0 0
        %886 = vmatmul.mubr.bf16.gmra.mrb[0].mxu0 %v843
        %v887 = vpop.f32.mrb[0].mxu0
        %v888 = vadd.f32 %v822, %v887
        %v889 = vpop.f32.mrb[0].mxu0
        %v890 = vpop.f32.mrb[0].mxu0
        %v891 = vadd.f32 %v827, %v890
        %v892 = vpop.f32.mrb[0].mxu0
        %893 = vdwg.mxu0
        %v894 = vmax.f32 %v880, 0.0
        %v895 = vmax.f32 %v883, 0.0
        %v896 = vmax.f32 %v888, 0.0
        %v897 = vmax.f32 %v891, 0.0
        %v898 = vld [vmem:[%s9] sm:$0xf]
        %v899 = vld [vmem:[%s9 + $0x4] sm:$0xf]
        %v900 = vld [vmem:[%s9 + $0x8] sm:$0xf]
        %v901 = vld [vmem:[%s9 + $0xc] sm:$0xf]
        %v902 = vld [vmem:[%s9 + $0x10] sm:$0xf]
        %v903 = vld [vmem:[%s9 + $0x14] sm:$0xf]
        %v904 = vld [vmem:[%s9 + $0x18] sm:$0xf]
        %v905 = vld [vmem:[%s9 + $0x1c] sm:$0xf]
        %v906 = vld [vmem:[%s9 + $0x20] sm:$0xf]
        %v907 = vld [vmem:[%s9 + $0x24] sm:$0xf]
        %v908 = vld [vmem:[%s9 + $0x28] sm:$0xf]
        %v909 = vld [vmem:[%s9 + $0x2c] sm:$0xf]
        %v910 = vpack.c.bf16 %v895, %v894
        %v911 = vpack.c.bf16 %v897, %v896
        %v924 = vunpack.c.l.b16 %v898
        %v925 = vunpack.c.l.b16 %v899
        %v926 = vunpack.c.l.b16 %v900
        %v927 = vunpack.c.l.b16 %v901
        %v928 = vunpack.c.l.b16 %v902
        %v929 = vunpack.c.l.b16 %v903
        %v930 = vunpack.c.l.b16 %v904
        %v931 = vunpack.c.l.b16 %v905
        %v932 = vunpack.c.l.b16 %v906
        %v933 = vunpack.c.l.b16 %v907
        %v934 = vunpack.c.l.b16 %v908
        %v935 = vunpack.c.l.b16 %v909
        %v936 = vpack.c.b16 %v925, %v924
        %v937 = vpack.c.b16 %v927, %v926
        %v938 = vpack.c.b16 %v929, %v928
        %v939 = vpack.c.b16 %v931, %v930
        %v940 = vpack.c.b16 %v933, %v932
        %v941 = vpack.c.b16 %v935, %v934
        %v943 = vsel %vm638, %v936, 0
        %v946 = vsel %vm638, %v937, 0
        %v949 = vsel %vm638, %v938, 0
        %v952 = vsel %vm638, %v939, 0
        %v955 = vsel %vm638, %v940, 0
        %v958 = vsel %vm638, %v941, 0
        %960 = vmatprep.subr.bf16.mxu0 0
        %961 = vmatpush1.bf16.msra.mxu0 %v910
        %962 = vmatprep.subr.bf16.mxu0 0
        %963 = vmatpush1.bf16.msra.mxu0 %v911
        %964 = vmatprep.subr.bf16.mxu0 0
        %965 = vmatpush1.bf16.msra.mxu0 0
        %966 = vmatprep.subr.bf16.mxu0 0
        %967 = vmatpush1.bf16.msra.mxu0 0
        %968 = vmatprep.subr.bf16.mxu0 0
        %969 = vmatpush1.bf16.msra.mxu0 0
        %970 = vmatprep.subr.bf16.mxu0 0
        %971 = vmatpush1.bf16.msra.mxu0 0
        %972 = vmatprep.subr.bf16.mxu0 0
        %973 = vmatpush1.bf16.msra.mxu0 0
        %974 = vmatprep.subr.bf16.mxu0 0
        %975 = vmatpush1.bf16.msra.mxu0 0
        %976 = vmatprep.subr.bf16.mxu0 0
        %977 = vmatpush1.bf16.msra.mxu0 0
        %978 = vmatprep.subr.bf16.mxu0 0
        %979 = vmatpush1.bf16.msra.mxu0 0
        %980 = vmatprep.subr.bf16.mxu0 0
        %981 = vmatpush1.bf16.msra.mxu0 0
        %982 = vmatprep.subr.bf16.mxu0 0
        %983 = vmatpush1.bf16.msra.mxu0 0
        %984 = vmatprep.subr.bf16.mxu0 0
        %985 = vmatpush1.bf16.msra.mxu0 0
        %986 = vmatprep.subr.bf16.mxu0 0
        %987 = vmatpush1.bf16.msra.mxu0 0
        %988 = vmatprep.subr.bf16.mxu0 0
        %989 = vmatpush1.bf16.msra.mxu0 0
        %990 = vmatprep.subr.bf16.mxu0 0
        %991 = vmatpush1.bf16.msra.mxu0 0
        %992 = vmatprep.mubr.bf16.mxu0 0
        %993 = vmatmul.mubr.bf16.gmra.mrb[0].mxu0 %v943
        %v994 = vpop.f32.mrb[0].mxu0
        %v995 = vadd.f32 0.0, %v994
        %v996 = vpop.f32.mrb[0].mxu0
        %v997 = vpop.f32.mrb[0].mxu0
        %v998 = vadd.f32 0.0, %v997
        %v999 = vpop.f32.mrb[0].mxu0
        %1000 = vmatprep.mubr.bf16.mxu0 0
        %1001 = vmatmul.mubr.bf16.gmra.mrb[0].mxu0 %v946
        %v1002 = vpop.f32.mrb[0].mxu0
        %v1003 = vadd.f32 0.0, %v1002
        %v1004 = vpop.f32.mrb[0].mxu0
        %v1005 = vpop.f32.mrb[0].mxu0
        %v1006 = vadd.f32 0.0, %v1005
        %v1007 = vpop.f32.mrb[0].mxu0
        %1008 = vmatprep.mubr.bf16.mxu0 0
        %1009 = vmatmul.mubr.bf16.gmra.mrb[0].mxu0 %v949
        %v1010 = vpop.f32.mrb[0].mxu0
        %v1011 = vadd.f32 0.0, %v1010
        %v1012 = vpop.f32.mrb[0].mxu0
        %v1013 = vpop.f32.mrb[0].mxu0
        %v1014 = vadd.f32 0.0, %v1013
        %v1015 = vpop.f32.mrb[0].mxu0
        %1016 = vmatprep.mubr.bf16.mxu0 0
        %1017 = vmatmul.mubr.bf16.gmra.mrb[0].mxu0 %v952
        %v1018 = vpop.f32.mrb[0].mxu0
        %v1019 = vadd.f32 0.0, %v1018
        %v1020 = vpop.f32.mrb[0].mxu0
        %v1021 = vpop.f32.mrb[0].mxu0
        %v1022 = vadd.f32 0.0, %v1021
        %v1023 = vpop.f32.mrb[0].mxu0
        %1024 = vmatprep.mubr.bf16.mxu0 0
        %1025 = vmatmul.mubr.bf16.gmra.mrb[0].mxu0 %v955
        %v1026 = vpop.f32.mrb[0].mxu0
        %v1027 = vadd.f32 0.0, %v1026
        %v1028 = vpop.f32.mrb[0].mxu0
        %v1029 = vpop.f32.mrb[0].mxu0
        %v1030 = vadd.f32 0.0, %v1029
        %v1031 = vpop.f32.mrb[0].mxu0
        %1032 = vmatprep.mubr.bf16.mxu0 0
        %1033 = vmatmul.mubr.bf16.gmra.mrb[0].mxu0 %v958
        %v1034 = vpop.f32.mrb[0].mxu0
        %v1035 = vadd.f32 0.0, %v1034
        %v1036 = vpop.f32.mrb[0].mxu0
        %v1037 = vpop.f32.mrb[0].mxu0
        %v1038 = vadd.f32 0.0, %v1037
        %v1039 = vpop.f32.mrb[0].mxu0
        %1040 = vdwg.mxu0
        %v1041 = vpack.c.bf16 %v995, %v995
        %v1042 = vpack.c.bf16 %v1011, %v1011
        %v1043 = vpack.c.bf16 %v1027, %v1027
        %1044 = vxpose.xlu0.c.b16.start [1/8] %v1041, 128
        %1045 = vxpose.xlu0.c.b16.cont [2/8] 0, 128
        %1046 = vxpose.xlu0.c.b16.cont [3/8] 0, 128
        %1047 = vxpose.xlu0.c.b16.cont [4/8] 0, 128
        %1048 = vxpose.xlu0.c.b16.cont [5/8] 0, 128
        %1049 = vxpose.xlu0.c.b16.cont [6/8] 0, 128
        %1050 = vxpose.xlu0.c.b16.cont [7/8] 0, 128
        %1051 = vxpose.xlu0.c.b16.end [8/8] 0, 128
        %v1052 = vpop.trf.xlu0
        %v1053 = vpop.trf.xlu0
        %v1054 = vpop.trf.xlu0
        %v1055 = vpop.trf.xlu0
        %v1056 = vpop.trf.xlu0
        %v1057 = vpop.trf.xlu0
        %v1058 = vpop.trf.xlu0
        %v1059 = vpop.trf.xlu0
        %vm1060 = vcmask 64512
        %v1062 = vsel %vm1060, %v1052, 0
        %v1065 = vsel %vm1060, %v1053, 0
        %v1068 = vsel %vm1060, %v1054, 0
        %v1071 = vsel %vm1060, %v1055, 0
        %v1074 = vsel %vm1060, %v1056, 0
        %v1077 = vsel %vm1060, %v1057, 0
        %v1080 = vsel %vm1060, %v1058, 0
        %v1083 = vsel %vm1060, %v1059, 0
        %vm1085 = vcmask 1043456
        %v1087 = vsel %vm1085, %v1042, 0
        %1089 = vmatprep.subr.bf16.mxu0 0
        %1090 = vmatpush1.bf16.msra.mxu0 %v1087
        %1091 = vmatprep.subr.bf16.mxu0 0
        %1092 = vmatpush1.bf16.msra.mxu0 0
        %1093 = vmatprep.subr.bf16.mxu0 0
        %1094 = vmatpush1.bf16.msra.mxu0 0
        %1095 = vmatprep.subr.bf16.mxu0 0
        %1096 = vmatpush1.bf16.msra.mxu0 0
        %1097 = vmatprep.subr.bf16.mxu0 0
        %1098 = vmatpush1.bf16.msra.mxu0 0
        %1099 = vmatprep.subr.bf16.mxu0 0
        %1100 = vmatpush1.bf16.msra.mxu0 0
        %1101 = vmatprep.subr.bf16.mxu0 0
        %1102 = vmatpush1.bf16.msra.mxu0 0
        %1103 = vmatprep.subr.bf16.mxu0 0
        %1104 = vmatpush1.bf16.msra.mxu0 0
        %1105 = vmatprep.subr.bf16.mxu0 0
        %1106 = vmatpush1.bf16.msra.mxu0 0
        %1107 = vmatprep.subr.bf16.mxu0 0
        %1108 = vmatpush1.bf16.msra.mxu0 0
        %1109 = vmatprep.subr.bf16.mxu0 0
        %1110 = vmatpush1.bf16.msra.mxu0 0
        %1111 = vmatprep.subr.bf16.mxu0 0
        %1112 = vmatpush1.bf16.msra.mxu0 0
        %1113 = vmatprep.subr.bf16.mxu0 0
        %1114 = vmatpush1.bf16.msra.mxu0 0
        %1115 = vmatprep.subr.bf16.mxu0 0
        %1116 = vmatpush1.bf16.msra.mxu0 0
        %1117 = vmatprep.subr.bf16.mxu0 0
        %1118 = vmatpush1.bf16.msra.mxu0 0
        %1119 = vmatprep.subr.bf16.mxu0 0
        %1120 = vmatpush1.bf16.msra.mxu0 0
        %1121 = vmatprep.mubr.bf16.mxu0 0
        %1122 = vmatmul.mubr.bf16.gmra.mrb[0].mxu0 %v1062
        %v1123 = vpop.f32.mrb[0].mxu0
        %v1124 = vadd.f32 0.0, %v1123
        %v1125 = vpop.f32.mrb[0].mxu0
        %v1126 = vpop.f32.mrb[0].mxu0
        %v1127 = vadd.f32 0.0, %v1126
        %v1128 = vpop.f32.mrb[0].mxu0
        %1129 = vmatprep.mubr.bf16.mxu0 0
        %1130 = vmatmul.mubr.bf16.gmra.mrb[0].mxu0 %v1065
        %v1131 = vpop.f32.mrb[0].mxu0
        %v1132 = vadd.f32 0.0, %v1131
        %v1133 = vpop.f32.mrb[0].mxu0
        %v1134 = vpop.f32.mrb[0].mxu0
        %v1135 = vadd.f32 0.0, %v1134
        %v1136 = vpop.f32.mrb[0].mxu0
        %1137 = vmatprep.mubr.bf16.mxu0 0
        %1138 = vmatmul.mubr.bf16.gmra.mrb[0].mxu0 %v1068
        %v1139 = vpop.f32.mrb[0].mxu0
        %v1140 = vadd.f32 0.0, %v1139
        %v1141 = vpop.f32.mrb[0].mxu0
        %v1142 = vpop.f32.mrb[0].mxu0
        %v1143 = vadd.f32 0.0, %v1142
        %v1144 = vpop.f32.mrb[0].mxu0
        %1145 = vmatprep.mubr.bf16.mxu0 0
        %1146 = vmatmul.mubr.bf16.gmra.mrb[0].mxu0 %v1071
        %v1147 = vpop.f32.mrb[0].mxu0
        %v1148 = vadd.f32 0.0, %v1147
        %v1149 = vpop.f32.mrb[0].mxu0
        %v1150 = vpop.f32.mrb[0].mxu0
        %v1151 = vadd.f32 0.0, %v1150
        %v1152 = vpop.f32.mrb[0].mxu0
        %1153 = vmatprep.mubr.bf16.mxu0 0
        %1154 = vmatmul.mubr.bf16.gmra.mrb[0].mxu0 %v1074
        %v1155 = vpop.f32.mrb[0].mxu0
        %v1156 = vadd.f32 0.0, %v1155
        %v1157 = vpop.f32.mrb[0].mxu0
        %v1158 = vpop.f32.mrb[0].mxu0
        %v1159 = vadd.f32 0.0, %v1158
        %v1160 = vpop.f32.mrb[0].mxu0
        %1161 = vmatprep.mubr.bf16.mxu0 0
        %1162 = vmatmul.mubr.bf16.gmra.mrb[0].mxu0 %v1077
        %v1163 = vpop.f32.mrb[0].mxu0
        %v1164 = vadd.f32 0.0, %v1163
        %v1165 = vpop.f32.mrb[0].mxu0
        %v1166 = vpop.f32.mrb[0].mxu0
        %v1167 = vadd.f32 0.0, %v1166
        %v1168 = vpop.f32.mrb[0].mxu0
        %1169 = vmatprep.mubr.bf16.mxu0 0
        %1170 = vmatmul.mubr.bf16.gmra.mrb[0].mxu0 %v1080
        %v1171 = vpop.f32.mrb[0].mxu0
        %v1172 = vadd.f32 0.0, %v1171
        %v1173 = vpop.f32.mrb[0].mxu0
        %v1174 = vpop.f32.mrb[0].mxu0
        %v1175 = vadd.f32 0.0, %v1174
        %v1176 = vpop.f32.mrb[0].mxu0
        %1177 = vmatprep.mubr.bf16.mxu0 0
        %1178 = vmatmul.mubr.bf16.gmra.mrb[0].mxu0 %v1083
        %v1179 = vpop.f32.mrb[0].mxu0
        %v1180 = vadd.f32 0.0, %v1179
        %v1181 = vpop.f32.mrb[0].mxu0
        %v1182 = vpop.f32.mrb[0].mxu0
        %v1183 = vadd.f32 0.0, %v1182
        %v1184 = vpop.f32.mrb[0].mxu0
        %1185 = vdwg.mxu0
        %1186 = vmax.xlane.f32.xlu0 %v1124
        %v1187 = vpop.xlane.xlu0 %1186
        %1188 = vmax.xlane.f32.xlu0 %v1127
        %v1189 = vpop.xlane.xlu0 %1188
        %1190 = vmax.xlane.f32.xlu0 %v1132
        %v1191 = vpop.xlane.xlu0 %1190
        %1192 = vmax.xlane.f32.xlu0 %v1135
        %v1193 = vpop.xlane.xlu0 %1192
        %1194 = vmax.xlane.f32.xlu0 %v1140
        %v1195 = vpop.xlane.xlu0 %1194
        %1196 = vmax.xlane.f32.xlu0 %v1143
        %v1197 = vpop.xlane.xlu0 %1196
        %1198 = vmax.xlane.f32.xlu0 %v1148
        %v1199 = vpop.xlane.xlu0 %1198
        %1200 = vmax.xlane.f32.xlu0 %v1151
        %v1201 = vpop.xlane.xlu0 %1200
        %1202 = vmax.xlane.f32.xlu0 %v1156
        %v1203 = vpop.xlane.xlu0 %1202
        %1204 = vmax.xlane.f32.xlu0 %v1159
        %v1205 = vpop.xlane.xlu0 %1204
        %1206 = vmax.xlane.f32.xlu0 %v1164
        %v1207 = vpop.xlane.xlu0 %1206
        %1208 = vmax.xlane.f32.xlu0 %v1167
        %v1209 = vpop.xlane.xlu0 %1208
        %1210 = vmax.xlane.f32.xlu0 %v1172
        %v1211 = vpop.xlane.xlu0 %1210
        %1212 = vmax.xlane.f32.xlu0 %v1175
        %v1213 = vpop.xlane.xlu0 %1212
        %1214 = vmax.xlane.f32.xlu0 %v1180
        %v1215 = vpop.xlane.xlu0 %1214
        %1216 = vmax.xlane.f32.xlu0 %v1183
        %v1217 = vpop.xlane.xlu0 %1216
        %v1218 = vsub.f32 %v1124, %v1187
        %v1219 = vsub.f32 %v1127, %v1189
        %v1220 = vsub.f32 %v1132, %v1191
        %v1221 = vsub.f32 %v1135, %v1193
        %v1222 = vsub.f32 %v1140, %v1195
        %v1223 = vsub.f32 %v1143, %v1197
        %v1224 = vsub.f32 %v1148, %v1199
        %v1225 = vsub.f32 %v1151, %v1201
        %v1226 = vsub.f32 %v1156, %v1203
        %v1227 = vsub.f32 %v1159, %v1205
        %v1228 = vsub.f32 %v1164, %v1207
        %v1229 = vsub.f32 %v1167, %v1209
        %v1230 = vsub.f32 %v1172, %v1211
        %v1231 = vsub.f32 %v1175, %v1213
        %v1232 = vsub.f32 %v1180, %v1215
        %v1233 = vsub.f32 %v1183, %v1217
        %v1234 = vmul.f32 %v1218, 1.442695
        %v1235 = vpow.pop %v1234
        %v1236 = vmul.f32 %v1219, 1.442695
        %v1237 = vpow.pop %v1236
        %v1238 = vmul.f32 %v1220, 1.442695
        %v1239 = vpow.pop %v1238
        %v1240 = vmul.f32 %v1221, 1.442695
        %v1241 = vpow.pop %v1240
        %v1242 = vmul.f32 %v1222, 1.442695
        %v1243 = vpow.pop %v1242
        %v1244 = vmul.f32 %v1223, 1.442695
        %v1245 = vpow.pop %v1244
        %v1246 = vmul.f32 %v1224, 1.442695
        %v1247 = vpow.pop %v1246
        %v1248 = vmul.f32 %v1225, 1.442695
        %v1249 = vpow.pop %v1248
        %v1250 = vmul.f32 %v1226, 1.442695
        %v1251 = vpow.pop %v1250
        %v1252 = vmul.f32 %v1227, 1.442695
        %v1253 = vpow.pop %v1252
        %v1254 = vmul.f32 %v1228, 1.442695
        %v1255 = vpow.pop %v1254
        %v1256 = vmul.f32 %v1229, 1.442695
        %v1257 = vpow.pop %v1256
        %v1258 = vmul.f32 %v1230, 1.442695
        %v1259 = vpow.pop %v1258
        %v1260 = vmul.f32 %v1231, 1.442695
        %v1261 = vpow.pop %v1260
        %v1262 = vmul.f32 %v1232, 1.442695
        %v1263 = vpow.pop %v1262
        %v1264 = vmul.f32 %v1233, 1.442695
        %v1265 = vpow.pop %v1264
        %1266 = vadd.xlane.f32.xlu0 %v1235
        %v1267 = vpop.xlane.xlu0 %1266
        %1268 = vadd.xlane.f32.xlu0 %v1237
        %v1269 = vpop.xlane.xlu0 %1268
        %1270 = vadd.xlane.f32.xlu0 %v1239
        %v1271 = vpop.xlane.xlu0 %1270
        %1272 = vadd.xlane.f32.xlu0 %v1241
        %v1273 = vpop.xlane.xlu0 %1272
        %1274 = vadd.xlane.f32.xlu0 %v1243
        %v1275 = vpop.xlane.xlu0 %1274
        %1276 = vadd.xlane.f32.xlu0 %v1245
        %v1277 = vpop.xlane.xlu0 %1276
        %1278 = vadd.xlane.f32.xlu0 %v1247
        %v1279 = vpop.xlane.xlu0 %1278
        %1280 = vadd.xlane.f32.xlu0 %v1249
        %v1281 = vpop.xlane.xlu0 %1280
        %1282 = vadd.xlane.f32.xlu0 %v1251
        %v1283 = vpop.xlane.xlu0 %1282
        %1284 = vadd.xlane.f32.xlu0 %v1253
        %v1285 = vpop.xlane.xlu0 %1284
        %1286 = vadd.xlane.f32.xlu0 %v1255
        %v1287 = vpop.xlane.xlu0 %1286
        %1288 = vadd.xlane.f32.xlu0 %v1257
        %v1289 = vpop.xlane.xlu0 %1288
        %1290 = vadd.xlane.f32.xlu0 %v1259
        %v1291 = vpop.xlane.xlu0 %1290
        %1292 = vadd.xlane.f32.xlu0 %v1261
        %v1293 = vpop.xlane.xlu0 %1292
        %1294 = vadd.xlane.f32.xlu0 %v1263
        %v1295 = vpop.xlane.xlu0 %1294
        %1296 = vadd.xlane.f32.xlu0 %v1265
        %v1297 = vpop.xlane.xlu0 %1296
        %v1298 = vrcp.pop %v1267
        %v1299 = vrcp.pop %v1269
        %v1300 = vrcp.pop %v1271
        %v1301 = vrcp.pop %v1273
        %v1302 = vrcp.pop %v1275
        %v1303 = vrcp.pop %v1277
        %v1304 = vrcp.pop %v1279
        %v1305 = vrcp.pop %v1281
        %v1306 = vrcp.pop %v1283
        %v1307 = vrcp.pop %v1285
        %v1308 = vrcp.pop %v1287
        %v1309 = vrcp.pop %v1289
        %v1310 = vrcp.pop %v1291
        %v1311 = vrcp.pop %v1293
        %v1312 = vrcp.pop %v1295
        %v1313 = vrcp.pop %v1297
        %v1314 = vmul.f32 %v1235, %v1298
        %v1315 = vmul.f32 %v1237, %v1299
        %v1316 = vmul.f32 %v1239, %v1300
        %v1317 = vmul.f32 %v1241, %v1301
        %v1318 = vmul.f32 %v1243, %v1302
        %v1319 = vmul.f32 %v1245, %v1303
        %v1320 = vmul.f32 %v1247, %v1304
        %v1321 = vmul.f32 %v1249, %v1305
        %v1322 = vmul.f32 %v1251, %v1306
        %v1323 = vmul.f32 %v1253, %v1307
        %v1324 = vmul.f32 %v1255, %v1308
        %v1325 = vmul.f32 %v1257, %v1309
        %v1326 = vmul.f32 %v1259, %v1310
        %v1327 = vmul.f32 %v1261, %v1311
        %v1328 = vmul.f32 %v1263, %v1312
        %v1329 = vmul.f32 %v1265, %v1313
        %v1330 = vpack.c.bf16 %v1315, %v1314
        %v1331 = vpack.c.bf16 %v1317, %v1316
        %v1332 = vpack.c.bf16 %v1319, %v1318
        %v1333 = vpack.c.bf16 %v1321, %v1320
        %v1334 = vpack.c.bf16 %v1323, %v1322
        %v1335 = vpack.c.bf16 %v1325, %v1324
        %v1336 = vpack.c.bf16 %v1327, %v1326
        %v1337 = vpack.c.bf16 %v1329, %v1328
        %1338 = vmatprep.subr.bf16.mxu0 0
        %1339 = vmatpush1.bf16.xpose.msra.mxu0 %v1330
        %1340 = vmatprep.subr.bf16.mxu0 0
        %1341 = vmatpush1.bf16.xpose.msra.mxu0 %v1331
        %1342 = vmatprep.subr.bf16.mxu0 0
        %1343 = vmatpush1.bf16.xpose.msra.mxu0 %v1332
        %1344 = vmatprep.subr.bf16.mxu0 0
        %1345 = vmatpush1.bf16.xpose.msra.mxu0 %v1333
        %1346 = vmatprep.subr.bf16.mxu0 0
        %1347 = vmatpush1.bf16.xpose.msra.mxu0 %v1334
        %1348 = vmatprep.subr.bf16.mxu0 0
        %1349 = vmatpush1.bf16.xpose.msra.mxu0 %v1335
        %1350 = vmatprep.subr.bf16.mxu0 0
        %1351 = vmatpush1.bf16.xpose.msra.mxu0 %v1336
        %1352 = vmatprep.subr.bf16.mxu0 0
        %1353 = vmatpush1.bf16.xpose.msra.mxu0 %v1337
        %1354 = vmatprep.subr.bf16.mxu0 0
        %1355 = vmatpush1.bf16.xpose.msra.mxu0 0
        %1356 = vmatprep.subr.bf16.mxu0 0
        %1357 = vmatpush1.bf16.xpose.msra.mxu0 0
        %1358 = vmatprep.subr.bf16.mxu0 0
        %1359 = vmatpush1.bf16.xpose.msra.mxu0 0
        %1360 = vmatprep.subr.bf16.mxu0 0
        %1361 = vmatpush1.bf16.xpose.msra.mxu0 0
        %1362 = vmatprep.subr.bf16.mxu0 0
        %1363 = vmatpush1.bf16.xpose.msra.mxu0 0
        %1364 = vmatprep.subr.bf16.mxu0 0
        %1365 = vmatpush1.bf16.xpose.msra.mxu0 0
        %1366 = vmatprep.subr.bf16.mxu0 0
        %1367 = vmatpush1.bf16.xpose.msra.mxu0 0
        %1368 = vmatprep.subr.bf16.mxu0 0
        %1369 = vmatpush1.bf16.xpose.msra.mxu0 0
        %1370 = vmatprep.mubr.bf16.mxu0 0
        %1371 = vmatmul.mubr.bf16.gmra.mrb[0].mxu0 %v1043
        %v1372 = vpop.f32.mrb[0].mxu0
        %v1373 = vadd.f32 0.0, %v1372
        %v1374 = vpop.f32.mrb[0].mxu0
        %v1375 = vpop.f32.mrb[0].mxu0
        %v1376 = vpop.f32.mrb[0].mxu0
        %1377 = vdwg.mxu0
        %1378 = vadd.xlane.f32.xlu0 %v1373
        %v1379 = vpop.xlane.xlu0 %1378
        %v1380 = vrot.slane %v1379, 4
        %v1381 = vadd.f32 %v1379, %v1380
        %v1382 = vrot.slane %v1381, 2
        %v1383 = vadd.f32 %v1381, %v1382
        %v1384 = vrot.slane %v1383, 1
        %v1385 = vadd.f32 %v1383, %v1384
        %s1386 = vtos %v1385
        %v1387 = vrcp.pop 1024.0
        %s1388 = vtos %v1387
        %s1389 = smul.f32 %s1386, %s1388
        %v1390 = vstv %s1389
        %v1391 = vsub.f32 %v1373, %v1390
        %v1392 = vmul.f32 %v1391, %v1391
        %1393 = vadd.xlane.f32.xlu0 %v1392
        %v1394 = vpop.xlane.xlu0 %1393
        %v1395 = vrot.slane %v1394, 4
        %v1396 = vadd.f32 %v1394, %v1395
        %v1397 = vrot.slane %v1396, 2
        %v1398 = vadd.f32 %v1396, %v1397
        %v1399 = vrot.slane %v1398, 1
        %v1400 = vadd.f32 %v1398, %v1399
        %s1401 = vtos %v1400
        %v1402 = vrcp.pop 1024.0
        %s1403 = vtos %v1402
        %s1404 = smul.f32 %s1401, %s1403
        %s1405 = sadd.f32 %s1404, 1e-05
        %v1406 = vstv %s1405
        %v1407 = vrsqrt.pop %v1406
        %s1408 = vtos %v1407
        %v1409 = vstv %s1408
        %v1410 = vmul.f32 %v1391, %v1409
        %v1411 = vpack.c.bf16 %v998, %v998
        %v1412 = vpack.c.bf16 %v1014, %v1014
        %v1413 = vpack.c.bf16 %v1030, %v1030
        %1414 = vxpose.xlu0.c.b16.start [1/8] %v1411, 128
        %1415 = vxpose.xlu0.c.b16.cont [2/8] 0, 128
        %1416 = vxpose.xlu0.c.b16.cont [3/8] 0, 128
        %1417 = vxpose.xlu0.c.b16.cont [4/8] 0, 128
        %1418 = vxpose.xlu0.c.b16.cont [5/8] 0, 128
        %1419 = vxpose.xlu0.c.b16.cont [6/8] 0, 128
        %1420 = vxpose.xlu0.c.b16.cont [7/8] 0, 128
        %1421 = vxpose.xlu0.c.b16.end [8/8] 0, 128
        %v1422 = vpop.trf.xlu0
        %v1423 = vpop.trf.xlu0
        %v1424 = vpop.trf.xlu0
        %v1425 = vpop.trf.xlu0
        %v1426 = vpop.trf.xlu0
        %v1427 = vpop.trf.xlu0
        %v1428 = vpop.trf.xlu0
        %v1429 = vpop.trf.xlu0
        %v1431 = vsel %vm1060, %v1422, 0
        %v1434 = vsel %vm1060, %v1423, 0
        %v1437 = vsel %vm1060, %v1424, 0
        %v1440 = vsel %vm1060, %v1425, 0
        %v1443 = vsel %vm1060, %v1426, 0
        %v1446 = vsel %vm1060, %v1427, 0
        %v1449 = vsel %vm1060, %v1428, 0
        %v1452 = vsel %vm1060, %v1429, 0
        %v1455 = vsel %vm1085, %v1412, 0
        %1457 = vmatprep.subr.bf16.mxu0 0
        %1458 = vmatpush1.bf16.msra.mxu0 %v1455
        %1459 = vmatprep.subr.bf16.mxu0 0
        %1460 = vmatpush1.bf16.msra.mxu0 0
        %1461 = vmatprep.subr.bf16.mxu0 0
        %1462 = vmatpush1.bf16.msra.mxu0 0
        %1463 = vmatprep.subr.bf16.mxu0 0
        %1464 = vmatpush1.bf16.msra.mxu0 0
        %1465 = vmatprep.subr.bf16.mxu0 0
        %1466 = vmatpush1.bf16.msra.mxu0 0
        %1467 = vmatprep.subr.bf16.mxu0 0
        %1468 = vmatpush1.bf16.msra.mxu0 0
        %1469 = vmatprep.subr.bf16.mxu0 0
        %1470 = vmatpush1.bf16.msra.mxu0 0
        %1471 = vmatprep.subr.bf16.mxu0 0
        %1472 = vmatpush1.bf16.msra.mxu0 0
        %1473 = vmatprep.subr.bf16.mxu0 0
        %1474 = vmatpush1.bf16.msra.mxu0 0
        %1475 = vmatprep.subr.bf16.mxu0 0
        %1476 = vmatpush1.bf16.msra.mxu0 0
        %1477 = vmatprep.subr.bf16.mxu0 0
        %1478 = vmatpush1.bf16.msra.mxu0 0
        %1479 = vmatprep.subr.bf16.mxu0 0
        %1480 = vmatpush1.bf16.msra.mxu0 0
        %1481 = vmatprep.subr.bf16.mxu0 0
        %1482 = vmatpush1.bf16.msra.mxu0 0
        %1483 = vmatprep.subr.bf16.mxu0 0
        %1484 = vmatpush1.bf16.msra.mxu0 0
        %1485 = vmatprep.subr.bf16.mxu0 0
        %1486 = vmatpush1.bf16.msra.mxu0 0
        %1487 = vmatprep.subr.bf16.mxu0 0
        %1488 = vmatpush1.bf16.msra.mxu0 0
        %1489 = vmatprep.mubr.bf16.mxu0 0
        %1490 = vmatmul.mubr.bf16.gmra.mrb[0].mxu0 %v1431
        %v1491 = vpop.f32.mrb[0].mxu0
        %v1492 = vadd.f32 0.0, %v1491
        %v1493 = vpop.f32.mrb[0].mxu0
        %v1494 = vpop.f32.mrb[0].mxu0
        %v1495 = vadd.f32 0.0, %v1494
        %v1496 = vpop.f32.mrb[0].mxu0
        %1497 = vmatprep.mubr.bf16.mxu0 0
        %1498 = vmatmul.mubr.bf16.gmra.mrb[0].mxu0 %v1434
        %v1499 = vpop.f32.mrb[0].mxu0
        %v1500 = vadd.f32 0.0, %v1499
        %v1501 = vpop.f32.mrb[0].mxu0
        %v1502 = vpop.f32.mrb[0].mxu0
        %v1503 = vadd.f32 0.0, %v1502
        %v1504 = vpop.f32.mrb[0].mxu0
        %1505 = vmatprep.mubr.bf16.mxu0 0
        %1506 = vmatmul.mubr.bf16.gmra.mrb[0].mxu0 %v1437
        %v1507 = vpop.f32.mrb[0].mxu0
        %v1508 = vadd.f32 0.0, %v1507
        %v1509 = vpop.f32.mrb[0].mxu0
        %v1510 = vpop.f32.mrb[0].mxu0
        %v1511 = vadd.f32 0.0, %v1510
        %v1512 = vpop.f32.mrb[0].mxu0
        %1513 = vmatprep.mubr.bf16.mxu0 0
        %1514 = vmatmul.mubr.bf16.gmra.mrb[0].mxu0 %v1440
        %v1515 = vpop.f32.mrb[0].mxu0
        %v1516 = vadd.f32 0.0, %v1515
        %v1517 = vpop.f32.mrb[0].mxu0
        %v1518 = vpop.f32.mrb[0].mxu0
        %v1519 = vadd.f32 0.0, %v1518
        %v1520 = vpop.f32.mrb[0].mxu0
        %1521 = vmatprep.mubr.bf16.mxu0 0
        %1522 = vmatmul.mubr.bf16.gmra.mrb[0].mxu0 %v1443
        %v1523 = vpop.f32.mrb[0].mxu0
        %v1524 = vadd.f32 0.0, %v1523
        %v1525 = vpop.f32.mrb[0].mxu0
        %v1526 = vpop.f32.mrb[0].mxu0
        %v1527 = vadd.f32 0.0, %v1526
        %v1528 = vpop.f32.mrb[0].mxu0
        %1529 = vmatprep.mubr.bf16.mxu0 0
        %1530 = vmatmul.mubr.bf16.gmra.mrb[0].mxu0 %v1446
        %v1531 = vpop.f32.mrb[0].mxu0
        %v1532 = vadd.f32 0.0, %v1531
        %v1533 = vpop.f32.mrb[0].mxu0
        %v1534 = vpop.f32.mrb[0].mxu0
        %v1535 = vadd.f32 0.0, %v1534
        %v1536 = vpop.f32.mrb[0].mxu0
        %1537 = vmatprep.mubr.bf16.mxu0 0
        %1538 = vmatmul.mubr.bf16.gmra.mrb[0].mxu0 %v1449
        %v1539 = vpop.f32.mrb[0].mxu0
        %v1540 = vadd.f32 0.0, %v1539
        %v1541 = vpop.f32.mrb[0].mxu0
        %v1542 = vpop.f32.mrb[0].mxu0
        %v1543 = vadd.f32 0.0, %v1542
        %v1544 = vpop.f32.mrb[0].mxu0
        %1545 = vmatprep.mubr.bf16.mxu0 0
        %1546 = vmatmul.mubr.bf16.gmra.mrb[0].mxu0 %v1452
        %v1547 = vpop.f32.mrb[0].mxu0
        %v1548 = vadd.f32 0.0, %v1547
        %v1549 = vpop.f32.mrb[0].mxu0
        %v1550 = vpop.f32.mrb[0].mxu0
        %v1551 = vadd.f32 0.0, %v1550
        %v1552 = vpop.f32.mrb[0].mxu0
        %1553 = vdwg.mxu0
        %1554 = vmax.xlane.f32.xlu0 %v1492
        %v1555 = vpop.xlane.xlu0 %1554
        %1556 = vmax.xlane.f32.xlu0 %v1495
        %v1557 = vpop.xlane.xlu0 %1556
        %1558 = vmax.xlane.f32.xlu0 %v1500
        %v1559 = vpop.xlane.xlu0 %1558
        %1560 = vmax.xlane.f32.xlu0 %v1503
        %v1561 = vpop.xlane.xlu0 %1560
        %1562 = vmax.xlane.f32.xlu0 %v1508
        %v1563 = vpop.xlane.xlu0 %1562
        %1564 = vmax.xlane.f32.xlu0 %v1511
        %v1565 = vpop.xlane.xlu0 %1564
        %1566 = vmax.xlane.f32.xlu0 %v1516
        %v1567 = vpop.xlane.xlu0 %1566
        %1568 = vmax.xlane.f32.xlu0 %v1519
        %v1569 = vpop.xlane.xlu0 %1568
        %1570 = vmax.xlane.f32.xlu0 %v1524
        %v1571 = vpop.xlane.xlu0 %1570
        %1572 = vmax.xlane.f32.xlu0 %v1527
        %v1573 = vpop.xlane.xlu0 %1572
        %1574 = vmax.xlane.f32.xlu0 %v1532
        %v1575 = vpop.xlane.xlu0 %1574
        %1576 = vmax.xlane.f32.xlu0 %v1535
        %v1577 = vpop.xlane.xlu0 %1576
        %1578 = vmax.xlane.f32.xlu0 %v1540
        %v1579 = vpop.xlane.xlu0 %1578
        %1580 = vmax.xlane.f32.xlu0 %v1543
        %v1581 = vpop.xlane.xlu0 %1580
        %1582 = vmax.xlane.f32.xlu0 %v1548
        %v1583 = vpop.xlane.xlu0 %1582
        %1584 = vmax.xlane.f32.xlu0 %v1551
        %v1585 = vpop.xlane.xlu0 %1584
        %v1586 = vsub.f32 %v1492, %v1555
        %v1587 = vsub.f32 %v1495, %v1557
        %v1588 = vsub.f32 %v1500, %v1559
        %v1589 = vsub.f32 %v1503, %v1561
        %v1590 = vsub.f32 %v1508, %v1563
        %v1591 = vsub.f32 %v1511, %v1565
        %v1592 = vsub.f32 %v1516, %v1567
        %v1593 = vsub.f32 %v1519, %v1569
        %v1594 = vsub.f32 %v1524, %v1571
        %v1595 = vsub.f32 %v1527, %v1573
        %v1596 = vsub.f32 %v1532, %v1575
        %v1597 = vsub.f32 %v1535, %v1577
        %v1598 = vsub.f32 %v1540, %v1579
        %v1599 = vsub.f32 %v1543, %v1581
        %v1600 = vsub.f32 %v1548, %v1583
        %v1601 = vsub.f32 %v1551, %v1585
        %v1602 = vmul.f32 %v1586, 1.442695
        %v1603 = vpow.pop %v1602
        %v1604 = vmul.f32 %v1587, 1.442695
        %v1605 = vpow.pop %v1604
        %v1606 = vmul.f32 %v1588, 1.442695
        %v1607 = vpow.pop %v1606
        %v1608 = vmul.f32 %v1589, 1.442695
        %v1609 = vpow.pop %v1608
        %v1610 = vmul.f32 %v1590, 1.442695
        %v1611 = vpow.pop %v1610
        %v1612 = vmul.f32 %v1591, 1.442695
        %v1613 = vpow.pop %v1612
        %v1614 = vmul.f32 %v1592, 1.442695
        %v1615 = vpow.pop %v1614
        %v1616 = vmul.f32 %v1593, 1.442695
        %v1617 = vpow.pop %v1616
        %v1618 = vmul.f32 %v1594, 1.442695
        %v1619 = vpow.pop %v1618
        %v1620 = vmul.f32 %v1595, 1.442695
        %v1621 = vpow.pop %v1620
        %v1622 = vmul.f32 %v1596, 1.442695
        %v1623 = vpow.pop %v1622
        %v1624 = vmul.f32 %v1597, 1.442695
        %v1625 = vpow.pop %v1624
        %v1626 = vmul.f32 %v1598, 1.442695
        %v1627 = vpow.pop %v1626
        %v1628 = vmul.f32 %v1599, 1.442695
        %v1629 = vpow.pop %v1628
        %v1630 = vmul.f32 %v1600, 1.442695
        %v1631 = vpow.pop %v1630
        %v1632 = vmul.f32 %v1601, 1.442695
        %v1633 = vpow.pop %v1632
        %1634 = vadd.xlane.f32.xlu0 %v1603
        %v1635 = vpop.xlane.xlu0 %1634
        %1636 = vadd.xlane.f32.xlu0 %v1605
        %v1637 = vpop.xlane.xlu0 %1636
        %1638 = vadd.xlane.f32.xlu0 %v1607
        %v1639 = vpop.xlane.xlu0 %1638
        %1640 = vadd.xlane.f32.xlu0 %v1609
        %v1641 = vpop.xlane.xlu0 %1640
        %1642 = vadd.xlane.f32.xlu0 %v1611
        %v1643 = vpop.xlane.xlu0 %1642
        %1644 = vadd.xlane.f32.xlu0 %v1613
        %v1645 = vpop.xlane.xlu0 %1644
        %1646 = vadd.xlane.f32.xlu0 %v1615
        %v1647 = vpop.xlane.xlu0 %1646
        %1648 = vadd.xlane.f32.xlu0 %v1617
        %v1649 = vpop.xlane.xlu0 %1648
        %1650 = vadd.xlane.f32.xlu0 %v1619
        %v1651 = vpop.xlane.xlu0 %1650
        %1652 = vadd.xlane.f32.xlu0 %v1621
        %v1653 = vpop.xlane.xlu0 %1652
        %1654 = vadd.xlane.f32.xlu0 %v1623
        %v1655 = vpop.xlane.xlu0 %1654
        %1656 = vadd.xlane.f32.xlu0 %v1625
        %v1657 = vpop.xlane.xlu0 %1656
        %1658 = vadd.xlane.f32.xlu0 %v1627
        %v1659 = vpop.xlane.xlu0 %1658
        %1660 = vadd.xlane.f32.xlu0 %v1629
        %v1661 = vpop.xlane.xlu0 %1660
        %1662 = vadd.xlane.f32.xlu0 %v1631
        %v1663 = vpop.xlane.xlu0 %1662
        %1664 = vadd.xlane.f32.xlu0 %v1633
        %v1665 = vpop.xlane.xlu0 %1664
        %v1666 = vrcp.pop %v1635
        %v1667 = vrcp.pop %v1637
        %v1668 = vrcp.pop %v1639
        %v1669 = vrcp.pop %v1641
        %v1670 = vrcp.pop %v1643
        %v1671 = vrcp.pop %v1645
        %v1672 = vrcp.pop %v1647
        %v1673 = vrcp.pop %v1649
        %v1674 = vrcp.pop %v1651
        %v1675 = vrcp.pop %v1653
        %v1676 = vrcp.pop %v1655
        %v1677 = vrcp.pop %v1657
        %v1678 = vrcp.pop %v1659
        %v1679 = vrcp.pop %v1661
        %v1680 = vrcp.pop %v1663
        %v1681 = vrcp.pop %v1665
        %v1682 = vmul.f32 %v1603, %v1666
        %v1683 = vmul.f32 %v1605, %v1667
        %v1684 = vmul.f32 %v1607, %v1668
        %v1685 = vmul.f32 %v1609, %v1669
        %v1686 = vmul.f32 %v1611, %v1670
        %v1687 = vmul.f32 %v1613, %v1671
        %v1688 = vmul.f32 %v1615, %v1672
        %v1689 = vmul.f32 %v1617, %v1673
        %v1690 = vmul.f32 %v1619, %v1674
        %v1691 = vmul.f32 %v1621, %v1675
        %v1692 = vmul.f32 %v1623, %v1676
        %v1693 = vmul.f32 %v1625, %v1677
        %v1694 = vmul.f32 %v1627, %v1678
        %v1695 = vmul.f32 %v1629, %v1679
        %v1696 = vmul.f32 %v1631, %v1680
        %v1697 = vmul.f32 %v1633, %v1681
        %v1698 = vpack.c.bf16 %v1683, %v1682
        %v1699 = vpack.c.bf16 %v1685, %v1684
        %v1700 = vpack.c.bf16 %v1687, %v1686
        %v1701 = vpack.c.bf16 %v1689, %v1688
        %v1702 = vpack.c.bf16 %v1691, %v1690
        %v1703 = vpack.c.bf16 %v1693, %v1692
        %v1704 = vpack.c.bf16 %v1695, %v1694
        %v1705 = vpack.c.bf16 %v1697, %v1696
        %1706 = vmatprep.subr.bf16.mxu0 0
        %1707 = vmatpush1.bf16.xpose.msra.mxu0 %v1698
        %1708 = vmatprep.subr.bf16.mxu0 0
        %1709 = vmatpush1.bf16.xpose.msra.mxu0 %v1699
        %1710 = vmatprep.subr.bf16.mxu0 0
        %1711 = vmatpush1.bf16.xpose.msra.mxu0 %v1700
        %1712 = vmatprep.subr.bf16.mxu0 0
        %1713 = vmatpush1.bf16.xpose.msra.mxu0 %v1701
        %1714 = vmatprep.subr.bf16.mxu0 0
        %1715 = vmatpush1.bf16.xpose.msra.mxu0 %v1702
        %1716 = vmatprep.subr.bf16.mxu0 0
        %1717 = vmatpush1.bf16.xpose.msra.mxu0 %v1703
        %1718 = vmatprep.subr.bf16.mxu0 0
        %1719 = vmatpush1.bf16.xpose.msra.mxu0 %v1704
        %1720 = vmatprep.subr.bf16.mxu0 0
        %1721 = vmatpush1.bf16.xpose.msra.mxu0 %v1705
        %1722 = vmatprep.subr.bf16.mxu0 0
        %1723 = vmatpush1.bf16.xpose.msra.mxu0 0
        %1724 = vmatprep.subr.bf16.mxu0 0
        %1725 = vmatpush1.bf16.xpose.msra.mxu0 0
        %1726 = vmatprep.subr.bf16.mxu0 0
        %1727 = vmatpush1.bf16.xpose.msra.mxu0 0
        %1728 = vmatprep.subr.bf16.mxu0 0
        %1729 = vmatpush1.bf16.xpose.msra.mxu0 0
        %1730 = vmatprep.subr.bf16.mxu0 0
        %1731 = vmatpush1.bf16.xpose.msra.mxu0 0
        %1732 = vmatprep.subr.bf16.mxu0 0
        %1733 = vmatpush1.bf16.xpose.msra.mxu0 0
        %1734 = vmatprep.subr.bf16.mxu0 0
        %1735 = vmatpush1.bf16.xpose.msra.mxu0 0
        %1736 = vmatprep.subr.bf16.mxu0 0
        %1737 = vmatpush1.bf16.xpose.msra.mxu0 0
        %1738 = vmatprep.mubr.bf16.mxu0 0
        %1739 = vmatmul.mubr.bf16.gmra.mrb[0].mxu0 %v1413
        %v1740 = vpop.f32.mrb[0].mxu0
        %v1741 = vadd.f32 0.0, %v1740
        %v1742 = vpop.f32.mrb[0].mxu0
        %v1743 = vpop.f32.mrb[0].mxu0
        %v1744 = vpop.f32.mrb[0].mxu0
        %1745 = vdwg.mxu0
        %1746 = vadd.xlane.f32.xlu0 %v1741
        %v1747 = vpop.xlane.xlu0 %1746
        %v1748 = vrot.slane %v1747, 4
        %v1749 = vadd.f32 %v1747, %v1748
        %v1750 = vrot.slane %v1749, 2
        %v1751 = vadd.f32 %v1749, %v1750
        %v1752 = vrot.slane %v1751, 1
        %v1753 = vadd.f32 %v1751, %v1752
        %s1754 = vtos %v1753
        %v1755 = vrcp.pop 1024.0
        %s1756 = vtos %v1755
        %s1757 = smul.f32 %s1754, %s1756
        %v1758 = vstv %s1757
        %v1759 = vsub.f32 %v1741, %v1758
        %v1760 = vmul.f32 %v1759, %v1759
        %1761 = vadd.xlane.f32.xlu0 %v1760
        %v1762 = vpop.xlane.xlu0 %1761
        %v1763 = vrot.slane %v1762, 4
        %v1764 = vadd.f32 %v1762, %v1763
        %v1765 = vrot.slane %v1764, 2
        %v1766 = vadd.f32 %v1764, %v1765
        %v1767 = vrot.slane %v1766, 1
        %v1768 = vadd.f32 %v1766, %v1767
        %s1769 = vtos %v1768
        %v1770 = vrcp.pop 1024.0
        %s1771 = vtos %v1770
        %s1772 = smul.f32 %s1769, %s1771
        %s1773 = sadd.f32 %s1772, 1e-05
        %v1774 = vstv %s1773
        %v1775 = vrsqrt.pop %v1774
        %s1776 = vtos %v1775
        %v1777 = vstv %s1776
        %v1778 = vmul.f32 %v1759, %v1777
        %v1779 = vpack.c.bf16 %v1003, %v1003
        %v1780 = vpack.c.bf16 %v1019, %v1019
        %v1781 = vpack.c.bf16 %v1035, %v1035
        %1782 = vxpose.xlu0.c.b16.start [1/8] %v1779, 128
        %1783 = vxpose.xlu0.c.b16.cont [2/8] 0, 128
        %1784 = vxpose.xlu0.c.b16.cont [3/8] 0, 128
        %1785 = vxpose.xlu0.c.b16.cont [4/8] 0, 128
        %1786 = vxpose.xlu0.c.b16.cont [5/8] 0, 128
        %1787 = vxpose.xlu0.c.b16.cont [6/8] 0, 128
        %1788 = vxpose.xlu0.c.b16.cont [7/8] 0, 128
        %1789 = vxpose.xlu0.c.b16.end [8/8] 0, 128
        %v1790 = vpop.trf.xlu0
        %v1791 = vpop.trf.xlu0
        %v1792 = vpop.trf.xlu0
        %v1793 = vpop.trf.xlu0
        %v1794 = vpop.trf.xlu0
        %v1795 = vpop.trf.xlu0
        %v1796 = vpop.trf.xlu0
        %v1797 = vpop.trf.xlu0
        %v1799 = vsel %vm1060, %v1790, 0
        %v1802 = vsel %vm1060, %v1791, 0
        %v1805 = vsel %vm1060, %v1792, 0
        %v1808 = vsel %vm1060, %v1793, 0
        %v1811 = vsel %vm1060, %v1794, 0
        %v1814 = vsel %vm1060, %v1795, 0
        %v1817 = vsel %vm1060, %v1796, 0
        %v1820 = vsel %vm1060, %v1797, 0
        %v1823 = vsel %vm1085, %v1780, 0
        %1825 = vmatprep.subr.bf16.mxu0 0
        %1826 = vmatpush1.bf16.msra.mxu0 %v1823
        %1827 = vmatprep.subr.bf16.mxu0 0
        %1828 = vmatpush1.bf16.msra.mxu0 0
        %1829 = vmatprep.subr.bf16.mxu0 0
        %1830 = vmatpush1.bf16.msra.mxu0 0
        %1831 = vmatprep.subr.bf16.mxu0 0
        %1832 = vmatpush1.bf16.msra.mxu0 0
        %1833 = vmatprep.subr.bf16.mxu0 0
        %1834 = vmatpush1.bf16.msra.mxu0 0
        %1835 = vmatprep.subr.bf16.mxu0 0
        %1836 = vmatpush1.bf16.msra.mxu0 0
        %1837 = vmatprep.subr.bf16.mxu0 0
        %1838 = vmatpush1.bf16.msra.mxu0 0
        %1839 = vmatprep.subr.bf16.mxu0 0
        %1840 = vmatpush1.bf16.msra.mxu0 0
        %1841 = vmatprep.subr.bf16.mxu0 0
        %1842 = vmatpush1.bf16.msra.mxu0 0
        %1843 = vmatprep.subr.bf16.mxu0 0
        %1844 = vmatpush1.bf16.msra.mxu0 0
        %1845 = vmatprep.subr.bf16.mxu0 0
        %1846 = vmatpush1.bf16.msra.mxu0 0
        %1847 = vmatprep.subr.bf16.mxu0 0
        %1848 = vmatpush1.bf16.msra.mxu0 0
        %1849 = vmatprep.subr.bf16.mxu0 0
        %1850 = vmatpush1.bf16.msra.mxu0 0
        %1851 = vmatprep.subr.bf16.mxu0 0
        %1852 = vmatpush1.bf16.msra.mxu0 0
        %1853 = vmatprep.subr.bf16.mxu0 0
        %1854 = vmatpush1.bf16.msra.mxu0 0
        %1855 = vmatprep.subr.bf16.mxu0 0
        %1856 = vmatpush1.bf16.msra.mxu0 0
        %1857 = vmatprep.mubr.bf16.mxu0 0
        %1858 = vmatmul.mubr.bf16.gmra.mrb[0].mxu0 %v1799
        %v1859 = vpop.f32.mrb[0].mxu0
        %v1860 = vadd.f32 0.0, %v1859
        %v1861 = vpop.f32.mrb[0].mxu0
        %v1862 = vpop.f32.mrb[0].mxu0
        %v1863 = vadd.f32 0.0, %v1862
        %v1864 = vpop.f32.mrb[0].mxu0
        %1865 = vmatprep.mubr.bf16.mxu0 0
        %1866 = vmatmul.mubr.bf16.gmra.mrb[0].mxu0 %v1802
        %v1867 = vpop.f32.mrb[0].mxu0
        %v1868 = vadd.f32 0.0, %v1867
        %v1869 = vpop.f32.mrb[0].mxu0
        %v1870 = vpop.f32.mrb[0].mxu0
        %v1871 = vadd.f32 0.0, %v1870
        %v1872 = vpop.f32.mrb[0].mxu0
        %1873 = vmatprep.mubr.bf16.mxu0 0
        %1874 = vmatmul.mubr.bf16.gmra.mrb[0].mxu0 %v1805
        %v1875 = vpop.f32.mrb[0].mxu0
        %v1876 = vadd.f32 0.0, %v1875
        %v1877 = vpop.f32.mrb[0].mxu0
        %v1878 = vpop.f32.mrb[0].mxu0
        %v1879 = vadd.f32 0.0, %v1878
        %v1880 = vpop.f32.mrb[0].mxu0
        %1881 = vmatprep.mubr.bf16.mxu0 0
        %1882 = vmatmul.mubr.bf16.gmra.mrb[0].mxu0 %v1808
        %v1883 = vpop.f32.mrb[0].mxu0
        %v1884 = vadd.f32 0.0, %v1883
        %v1885 = vpop.f32.mrb[0].mxu0
        %v1886 = vpop.f32.mrb[0].mxu0
        %v1887 = vadd.f32 0.0, %v1886
        %v1888 = vpop.f32.mrb[0].mxu0
        %1889 = vmatprep.mubr.bf16.mxu0 0
        %1890 = vmatmul.mubr.bf16.gmra.mrb[0].mxu0 %v1811
        %v1891 = vpop.f32.mrb[0].mxu0
        %v1892 = vadd.f32 0.0, %v1891
        %v1893 = vpop.f32.mrb[0].mxu0
        %v1894 = vpop.f32.mrb[0].mxu0
        %v1895 = vadd.f32 0.0, %v1894
        %v1896 = vpop.f32.mrb[0].mxu0
        %1897 = vmatprep.mubr.bf16.mxu0 0
        %1898 = vmatmul.mubr.bf16.gmra.mrb[0].mxu0 %v1814
        %v1899 = vpop.f32.mrb[0].mxu0
        %v1900 = vadd.f32 0.0, %v1899
        %v1901 = vpop.f32.mrb[0].mxu0
        %v1902 = vpop.f32.mrb[0].mxu0
        %v1903 = vadd.f32 0.0, %v1902
        %v1904 = vpop.f32.mrb[0].mxu0
        %1905 = vmatprep.mubr.bf16.mxu0 0
        %1906 = vmatmul.mubr.bf16.gmra.mrb[0].mxu0 %v1817
        %v1907 = vpop.f32.mrb[0].mxu0
        %v1908 = vadd.f32 0.0, %v1907
        %v1909 = vpop.f32.mrb[0].mxu0
        %v1910 = vpop.f32.mrb[0].mxu0
        %v1911 = vadd.f32 0.0, %v1910
        %v1912 = vpop.f32.mrb[0].mxu0
        %1913 = vmatprep.mubr.bf16.mxu0 0
        %1914 = vmatmul.mubr.bf16.gmra.mrb[0].mxu0 %v1820
        %v1915 = vpop.f32.mrb[0].mxu0
        %v1916 = vadd.f32 0.0, %v1915
        %v1917 = vpop.f32.mrb[0].mxu0
        %v1918 = vpop.f32.mrb[0].mxu0
        %v1919 = vadd.f32 0.0, %v1918
        %v1920 = vpop.f32.mrb[0].mxu0
        %1921 = vdwg.mxu0
        %1922 = vmax.xlane.f32.xlu0 %v1860
        %v1923 = vpop.xlane.xlu0 %1922
        %1924 = vmax.xlane.f32.xlu0 %v1863
        %v1925 = vpop.xlane.xlu0 %1924
        %1926 = vmax.xlane.f32.xlu0 %v1868
        %v1927 = vpop.xlane.xlu0 %1926
        %1928 = vmax.xlane.f32.xlu0 %v1871
        %v1929 = vpop.xlane.xlu0 %1928
        %1930 = vmax.xlane.f32.xlu0 %v1876
        %v1931 = vpop.xlane.xlu0 %1930
        %1932 = vmax.xlane.f32.xlu0 %v1879
        %v1933 = vpop.xlane.xlu0 %1932
        %1934 = vmax.xlane.f32.xlu0 %v1884
        %v1935 = vpop.xlane.xlu0 %1934
        %1936 = vmax.xlane.f32.xlu0 %v1887
        %v1937 = vpop.xlane.xlu0 %1936
        %1938 = vmax.xlane.f32.xlu0 %v1892
        %v1939 = vpop.xlane.xlu0 %1938
        %1940 = vmax.xlane.f32.xlu0 %v1895
        %v1941 = vpop.xlane.xlu0 %1940
        %1942 = vmax.xlane.f32.xlu0 %v1900
        %v1943 = vpop.xlane.xlu0 %1942
        %1944 = vmax.xlane.f32.xlu0 %v1903
        %v1945 = vpop.xlane.xlu0 %1944
        %1946 = vmax.xlane.f32.xlu0 %v1908
        %v1947 = vpop.xlane.xlu0 %1946
        %1948 = vmax.xlane.f32.xlu0 %v1911
        %v1949 = vpop.xlane.xlu0 %1948
        %1950 = vmax.xlane.f32.xlu0 %v1916
        %v1951 = vpop.xlane.xlu0 %1950
        %1952 = vmax.xlane.f32.xlu0 %v1919
        %v1953 = vpop.xlane.xlu0 %1952
        %v1954 = vsub.f32 %v1860, %v1923
        %v1955 = vsub.f32 %v1863, %v1925
        %v1956 = vsub.f32 %v1868, %v1927
        %v1957 = vsub.f32 %v1871, %v1929
        %v1958 = vsub.f32 %v1876, %v1931
        %v1959 = vsub.f32 %v1879, %v1933
        %v1960 = vsub.f32 %v1884, %v1935
        %v1961 = vsub.f32 %v1887, %v1937
        %v1962 = vsub.f32 %v1892, %v1939
        %v1963 = vsub.f32 %v1895, %v1941
        %v1964 = vsub.f32 %v1900, %v1943
        %v1965 = vsub.f32 %v1903, %v1945
        %v1966 = vsub.f32 %v1908, %v1947
        %v1967 = vsub.f32 %v1911, %v1949
        %v1968 = vsub.f32 %v1916, %v1951
        %v1969 = vsub.f32 %v1919, %v1953
        %v1970 = vmul.f32 %v1954, 1.442695
        %v1971 = vpow.pop %v1970
        %v1972 = vmul.f32 %v1955, 1.442695
        %v1973 = vpow.pop %v1972
        %v1974 = vmul.f32 %v1956, 1.442695
        %v1975 = vpow.pop %v1974
        %v1976 = vmul.f32 %v1957, 1.442695
        %v1977 = vpow.pop %v1976
        %v1978 = vmul.f32 %v1958, 1.442695
        %v1979 = vpow.pop %v1978
        %v1980 = vmul.f32 %v1959, 1.442695
        %v1981 = vpow.pop %v1980
        %v1982 = vmul.f32 %v1960, 1.442695
        %v1983 = vpow.pop %v1982
        %v1984 = vmul.f32 %v1961, 1.442695
        %v1985 = vpow.pop %v1984
        %v1986 = vmul.f32 %v1962, 1.442695
        %v1987 = vpow.pop %v1986
        %v1988 = vmul.f32 %v1963, 1.442695
        %v1989 = vpow.pop %v1988
        %v1990 = vmul.f32 %v1964, 1.442695
        %v1991 = vpow.pop %v1990
        %v1992 = vmul.f32 %v1965, 1.442695
        %v1993 = vpow.pop %v1992
        %v1994 = vmul.f32 %v1966, 1.442695
        %v1995 = vpow.pop %v1994
        %v1996 = vmul.f32 %v1967, 1.442695
        %v1997 = vpow.pop %v1996
        %v1998 = vmul.f32 %v1968, 1.442695
        %v1999 = vpow.pop %v1998
        %v2000 = vmul.f32 %v1969, 1.442695
        %v2001 = vpow.pop %v2000
        %2002 = vadd.xlane.f32.xlu0 %v1971
        %v2003 = vpop.xlane.xlu0 %2002
        %2004 = vadd.xlane.f32.xlu0 %v1973
        %v2005 = vpop.xlane.xlu0 %2004
        %2006 = vadd.xlane.f32.xlu0 %v1975
        %v2007 = vpop.xlane.xlu0 %2006
        %2008 = vadd.xlane.f32.xlu0 %v1977
        %v2009 = vpop.xlane.xlu0 %2008
        %2010 = vadd.xlane.f32.xlu0 %v1979
        %v2011 = vpop.xlane.xlu0 %2010
        %2012 = vadd.xlane.f32.xlu0 %v1981
        %v2013 = vpop.xlane.xlu0 %2012
        %2014 = vadd.xlane.f32.xlu0 %v1983
        %v2015 = vpop.xlane.xlu0 %2014
        %2016 = vadd.xlane.f32.xlu0 %v1985
        %v2017 = vpop.xlane.xlu0 %2016
        %2018 = vadd.xlane.f32.xlu0 %v1987
        %v2019 = vpop.xlane.xlu0 %2018
        %2020 = vadd.xlane.f32.xlu0 %v1989
        %v2021 = vpop.xlane.xlu0 %2020
        %2022 = vadd.xlane.f32.xlu0 %v1991
        %v2023 = vpop.xlane.xlu0 %2022
        %2024 = vadd.xlane.f32.xlu0 %v1993
        %v2025 = vpop.xlane.xlu0 %2024
        %2026 = vadd.xlane.f32.xlu0 %v1995
        %v2027 = vpop.xlane.xlu0 %2026
        %2028 = vadd.xlane.f32.xlu0 %v1997
        %v2029 = vpop.xlane.xlu0 %2028
        %2030 = vadd.xlane.f32.xlu0 %v1999
        %v2031 = vpop.xlane.xlu0 %2030
        %2032 = vadd.xlane.f32.xlu0 %v2001
        %v2033 = vpop.xlane.xlu0 %2032
        %v2034 = vrcp.pop %v2003
        %v2035 = vrcp.pop %v2005
        %v2036 = vrcp.pop %v2007
        %v2037 = vrcp.pop %v2009
        %v2038 = vrcp.pop %v2011
        %v2039 = vrcp.pop %v2013
        %v2040 = vrcp.pop %v2015
        %v2041 = vrcp.pop %v2017
        %v2042 = vrcp.pop %v2019
        %v2043 = vrcp.pop %v2021
        %v2044 = vrcp.pop %v2023
        %v2045 = vrcp.pop %v2025
        %v2046 = vrcp.pop %v2027
        %v2047 = vrcp.pop %v2029
        %v2048 = vrcp.pop %v2031
        %v2049 = vrcp.pop %v2033
        %v2050 = vmul.f32 %v1971, %v2034
        %v2051 = vmul.f32 %v1973, %v2035
        %v2052 = vmul.f32 %v1975, %v2036
        %v2053 = vmul.f32 %v1977, %v2037
        %v2054 = vmul.f32 %v1979, %v2038
        %v2055 = vmul.f32 %v1981, %v2039
        %v2056 = vmul.f32 %v1983, %v2040
        %v2057 = vmul.f32 %v1985, %v2041
        %v2058 = vmul.f32 %v1987, %v2042
        %v2059 = vmul.f32 %v1989, %v2043
        %v2060 = vmul.f32 %v1991, %v2044
        %v2061 = vmul.f32 %v1993, %v2045
        %v2062 = vmul.f32 %v1995, %v2046
        %v2063 = vmul.f32 %v1997, %v2047
        %v2064 = vmul.f32 %v1999, %v2048
        %v2065 = vmul.f32 %v2001, %v2049
        %v2066 = vpack.c.bf16 %v2051, %v2050
        %v2067 = vpack.c.bf16 %v2053, %v2052
        %v2068 = vpack.c.bf16 %v2055, %v2054
        %v2069 = vpack.c.bf16 %v2057, %v2056
        %v2070 = vpack.c.bf16 %v2059, %v2058
        %v2071 = vpack.c.bf16 %v2061, %v2060
        %v2072 = vpack.c.bf16 %v2063, %v2062
        %v2073 = vpack.c.bf16 %v2065, %v2064
        %2074 = vmatprep.subr.bf16.mxu0 0
        %2075 = vmatpush1.bf16.xpose.msra.mxu0 %v2066
        %2076 = vmatprep.subr.bf16.mxu0 0
        %2077 = vmatpush1.bf16.xpose.msra.mxu0 %v2067
        %2078 = vmatprep.subr.bf16.mxu0 0
        %2079 = vmatpush1.bf16.xpose.msra.mxu0 %v2068
        %2080 = vmatprep.subr.bf16.mxu0 0
        %2081 = vmatpush1.bf16.xpose.msra.mxu0 %v2069
        %2082 = vmatprep.subr.bf16.mxu0 0
        %2083 = vmatpush1.bf16.xpose.msra.mxu0 %v2070
        %2084 = vmatprep.subr.bf16.mxu0 0
        %2085 = vmatpush1.bf16.xpose.msra.mxu0 %v2071
        %2086 = vmatprep.subr.bf16.mxu0 0
        %2087 = vmatpush1.bf16.xpose.msra.mxu0 %v2072
        %2088 = vmatprep.subr.bf16.mxu0 0
        %2089 = vmatpush1.bf16.xpose.msra.mxu0 %v2073
        %2090 = vmatprep.subr.bf16.mxu0 0
        %2091 = vmatpush1.bf16.xpose.msra.mxu0 0
        %2092 = vmatprep.subr.bf16.mxu0 0
        %2093 = vmatpush1.bf16.xpose.msra.mxu0 0
        %2094 = vmatprep.subr.bf16.mxu0 0
        %2095 = vmatpush1.bf16.xpose.msra.mxu0 0
        %2096 = vmatprep.subr.bf16.mxu0 0
        %2097 = vmatpush1.bf16.xpose.msra.mxu0 0
        %2098 = vmatprep.subr.bf16.mxu0 0
        %2099 = vmatpush1.bf16.xpose.msra.mxu0 0
        %2100 = vmatprep.subr.bf16.mxu0 0
        %2101 = vmatpush1.bf16.xpose.msra.mxu0 0
        %2102 = vmatprep.subr.bf16.mxu0 0
        %2103 = vmatpush1.bf16.xpose.msra.mxu0 0
        %2104 = vmatprep.subr.bf16.mxu0 0
        %2105 = vmatpush1.bf16.xpose.msra.mxu0 0
        %2106 = vmatprep.mubr.bf16.mxu0 0
        %2107 = vmatmul.mubr.bf16.gmra.mrb[0].mxu0 %v1781
        %v2108 = vpop.f32.mrb[0].mxu0
        %v2109 = vadd.f32 0.0, %v2108
        %v2110 = vpop.f32.mrb[0].mxu0
        %v2111 = vpop.f32.mrb[0].mxu0
        %v2112 = vpop.f32.mrb[0].mxu0
        %2113 = vdwg.mxu0
        %2114 = vadd.xlane.f32.xlu0 %v2109
        %v2115 = vpop.xlane.xlu0 %2114
        %v2116 = vrot.slane %v2115, 4
        %v2117 = vadd.f32 %v2115, %v2116
        %v2118 = vrot.slane %v2117, 2
        %v2119 = vadd.f32 %v2117, %v2118
        %v2120 = vrot.slane %v2119, 1
        %v2121 = vadd.f32 %v2119, %v2120
        %s2122 = vtos %v2121
        %v2123 = vrcp.pop 1024.0
        %s2124 = vtos %v2123
        %s2125 = smul.f32 %s2122, %s2124
        %v2126 = vstv %s2125
        %v2127 = vsub.f32 %v2109, %v2126
        %v2128 = vmul.f32 %v2127, %v2127
        %2129 = vadd.xlane.f32.xlu0 %v2128
        %v2130 = vpop.xlane.xlu0 %2129
        %v2131 = vrot.slane %v2130, 4
        %v2132 = vadd.f32 %v2130, %v2131
        %v2133 = vrot.slane %v2132, 2
        %v2134 = vadd.f32 %v2132, %v2133
        %v2135 = vrot.slane %v2134, 1
        %v2136 = vadd.f32 %v2134, %v2135
        %s2137 = vtos %v2136
        %v2138 = vrcp.pop 1024.0
        %s2139 = vtos %v2138
        %s2140 = smul.f32 %s2137, %s2139
        %s2141 = sadd.f32 %s2140, 1e-05
        %v2142 = vstv %s2141
        %v2143 = vrsqrt.pop %v2142
        %s2144 = vtos %v2143
        %v2145 = vstv %s2144
        %v2146 = vmul.f32 %v2127, %v2145
        %v2147 = vpack.c.bf16 %v1006, %v1006
        %v2148 = vpack.c.bf16 %v1022, %v1022
        %v2149 = vpack.c.bf16 %v1038, %v1038
        %2150 = vxpose.xlu0.c.b16.start [1/8] %v2147, 128
        %2151 = vxpose.xlu0.c.b16.cont [2/8] 0, 128
        %2152 = vxpose.xlu0.c.b16.cont [3/8] 0, 128
        %2153 = vxpose.xlu0.c.b16.cont [4/8] 0, 128
        %2154 = vxpose.xlu0.c.b16.cont [5/8] 0, 128
        %2155 = vxpose.xlu0.c.b16.cont [6/8] 0, 128
        %2156 = vxpose.xlu0.c.b16.cont [7/8] 0, 128
        %2157 = vxpose.xlu0.c.b16.end [8/8] 0, 128
        %v2158 = vpop.trf.xlu0
        %v2159 = vpop.trf.xlu0
        %v2160 = vpop.trf.xlu0
        %v2161 = vpop.trf.xlu0
        %v2162 = vpop.trf.xlu0
        %v2163 = vpop.trf.xlu0
        %v2164 = vpop.trf.xlu0
        %v2165 = vpop.trf.xlu0
        %v2167 = vsel %vm1060, %v2158, 0
        %v2170 = vsel %vm1060, %v2159, 0
        %v2173 = vsel %vm1060, %v2160, 0
        %v2176 = vsel %vm1060, %v2161, 0
        %v2179 = vsel %vm1060, %v2162, 0
        %v2182 = vsel %vm1060, %v2163, 0
        %v2185 = vsel %vm1060, %v2164, 0
        %v2188 = vsel %vm1060, %v2165, 0
        %v2191 = vsel %vm1085, %v2148, 0
        %2193 = vmatprep.subr.bf16.mxu0 0
        %2194 = vmatpush1.bf16.msra.mxu0 %v2191
        %2195 = vmatprep.subr.bf16.mxu0 0
        %2196 = vmatpush1.bf16.msra.mxu0 0
        %2197 = vmatprep.subr.bf16.mxu0 0
        %2198 = vmatpush1.bf16.msra.mxu0 0
        %2199 = vmatprep.subr.bf16.mxu0 0
        %2200 = vmatpush1.bf16.msra.mxu0 0
        %2201 = vmatprep.subr.bf16.mxu0 0
        %2202 = vmatpush1.bf16.msra.mxu0 0
        %2203 = vmatprep.subr.bf16.mxu0 0
        %2204 = vmatpush1.bf16.msra.mxu0 0
        %2205 = vmatprep.subr.bf16.mxu0 0
        %2206 = vmatpush1.bf16.msra.mxu0 0
        %2207 = vmatprep.subr.bf16.mxu0 0
        %2208 = vmatpush1.bf16.msra.mxu0 0
        %2209 = vmatprep.subr.bf16.mxu0 0
        %2210 = vmatpush1.bf16.msra.mxu0 0
        %2211 = vmatprep.subr.bf16.mxu0 0
        %2212 = vmatpush1.bf16.msra.mxu0 0
        %2213 = vmatprep.subr.bf16.mxu0 0
        %2214 = vmatpush1.bf16.msra.mxu0 0
        %2215 = vmatprep.subr.bf16.mxu0 0
        %2216 = vmatpush1.bf16.msra.mxu0 0
        %2217 = vmatprep.subr.bf16.mxu0 0
        %2218 = vmatpush1.bf16.msra.mxu0 0
        %2219 = vmatprep.subr.bf16.mxu0 0
        %2220 = vmatpush1.bf16.msra.mxu0 0
        %2221 = vmatprep.subr.bf16.mxu0 0
        %2222 = vmatpush1.bf16.msra.mxu0 0
        %2223 = vmatprep.subr.bf16.mxu0 0
        %2224 = vmatpush1.bf16.msra.mxu0 0
        %2225 = vmatprep.mubr.bf16.mxu0 0
        %2226 = vmatmul.mubr.bf16.gmra.mrb[0].mxu0 %v2167
        %v2227 = vpop.f32.mrb[0].mxu0
        %v2228 = vadd.f32 0.0, %v2227
        %v2229 = vpop.f32.mrb[0].mxu0
        %v2230 = vpop.f32.mrb[0].mxu0
        %v2231 = vadd.f32 0.0, %v2230
        %v2232 = vpop.f32.mrb[0].mxu0
        %2233 = vmatprep.mubr.bf16.mxu0 0
        %2234 = vmatmul.mubr.bf16.gmra.mrb[0].mxu0 %v2170
        %v2235 = vpop.f32.mrb[0].mxu0
        %v2236 = vadd.f32 0.0, %v2235
        %v2237 = vpop.f32.mrb[0].mxu0
        %v2238 = vpop.f32.mrb[0].mxu0
        %v2239 = vadd.f32 0.0, %v2238
        %v2240 = vpop.f32.mrb[0].mxu0
        %2241 = vmatprep.mubr.bf16.mxu0 0
        %2242 = vmatmul.mubr.bf16.gmra.mrb[0].mxu0 %v2173
        %v2243 = vpop.f32.mrb[0].mxu0
        %v2244 = vadd.f32 0.0, %v2243
        %v2245 = vpop.f32.mrb[0].mxu0
        %v2246 = vpop.f32.mrb[0].mxu0
        %v2247 = vadd.f32 0.0, %v2246
        %v2248 = vpop.f32.mrb[0].mxu0
        %2249 = vmatprep.mubr.bf16.mxu0 0
        %2250 = vmatmul.mubr.bf16.gmra.mrb[0].mxu0 %v2176
        %v2251 = vpop.f32.mrb[0].mxu0
        %v2252 = vadd.f32 0.0, %v2251
        %v2253 = vpop.f32.mrb[0].mxu0
        %v2254 = vpop.f32.mrb[0].mxu0
        %v2255 = vadd.f32 0.0, %v2254
        %v2256 = vpop.f32.mrb[0].mxu0
        %2257 = vmatprep.mubr.bf16.mxu0 0
        %2258 = vmatmul.mubr.bf16.gmra.mrb[0].mxu0 %v2179
        %v2259 = vpop.f32.mrb[0].mxu0
        %v2260 = vadd.f32 0.0, %v2259
        %v2261 = vpop.f32.mrb[0].mxu0
        %v2262 = vpop.f32.mrb[0].mxu0
        %v2263 = vadd.f32 0.0, %v2262
        %v2264 = vpop.f32.mrb[0].mxu0
        %2265 = vmatprep.mubr.bf16.mxu0 0
        %2266 = vmatmul.mubr.bf16.gmra.mrb[0].mxu0 %v2182
        %v2267 = vpop.f32.mrb[0].mxu0
        %v2268 = vadd.f32 0.0, %v2267
        %v2269 = vpop.f32.mrb[0].mxu0
        %v2270 = vpop.f32.mrb[0].mxu0
        %v2271 = vadd.f32 0.0, %v2270
        %v2272 = vpop.f32.mrb[0].mxu0
        %2273 = vmatprep.mubr.bf16.mxu0 0
        %2274 = vmatmul.mubr.bf16.gmra.mrb[0].mxu0 %v2185
        %v2275 = vpop.f32.mrb[0].mxu0
        %v2276 = vadd.f32 0.0, %v2275
        %v2277 = vpop.f32.mrb[0].mxu0
        %v2278 = vpop.f32.mrb[0].mxu0
        %v2279 = vadd.f32 0.0, %v2278
        %v2280 = vpop.f32.mrb[0].mxu0
        %2281 = vmatprep.mubr.bf16.mxu0 0
        %2282 = vmatmul.mubr.bf16.gmra.mrb[0].mxu0 %v2188
        %v2283 = vpop.f32.mrb[0].mxu0
        %v2284 = vadd.f32 0.0, %v2283
        %v2285 = vpop.f32.mrb[0].mxu0
        %v2286 = vpop.f32.mrb[0].mxu0
        %v2287 = vadd.f32 0.0, %v2286
        %v2288 = vpop.f32.mrb[0].mxu0
        %2289 = vdwg.mxu0
        %2290 = vmax.xlane.f32.xlu0 %v2228
        %v2291 = vpop.xlane.xlu0 %2290
        %2292 = vmax.xlane.f32.xlu0 %v2231
        %v2293 = vpop.xlane.xlu0 %2292
        %2294 = vmax.xlane.f32.xlu0 %v2236
        %v2295 = vpop.xlane.xlu0 %2294
        %2296 = vmax.xlane.f32.xlu0 %v2239
        %v2297 = vpop.xlane.xlu0 %2296
        %2298 = vmax.xlane.f32.xlu0 %v2244
        %v2299 = vpop.xlane.xlu0 %2298
        %2300 = vmax.xlane.f32.xlu0 %v2247
        %v2301 = vpop.xlane.xlu0 %2300
        %2302 = vmax.xlane.f32.xlu0 %v2252
        %v2303 = vpop.xlane.xlu0 %2302
        %2304 = vmax.xlane.f32.xlu0 %v2255
        %v2305 = vpop.xlane.xlu0 %2304
        %2306 = vmax.xlane.f32.xlu0 %v2260
        %v2307 = vpop.xlane.xlu0 %2306
        %2308 = vmax.xlane.f32.xlu0 %v2263
        %v2309 = vpop.xlane.xlu0 %2308
        %2310 = vmax.xlane.f32.xlu0 %v2268
        %v2311 = vpop.xlane.xlu0 %2310
        %2312 = vmax.xlane.f32.xlu0 %v2271
        %v2313 = vpop.xlane.xlu0 %2312
        %2314 = vmax.xlane.f32.xlu0 %v2276
        %v2315 = vpop.xlane.xlu0 %2314
        %2316 = vmax.xlane.f32.xlu0 %v2279
        %v2317 = vpop.xlane.xlu0 %2316
        %2318 = vmax.xlane.f32.xlu0 %v2284
        %v2319 = vpop.xlane.xlu0 %2318
        %2320 = vmax.xlane.f32.xlu0 %v2287
        %v2321 = vpop.xlane.xlu0 %2320
        %v2322 = vsub.f32 %v2228, %v2291
        %v2323 = vsub.f32 %v2231, %v2293
        %v2324 = vsub.f32 %v2236, %v2295
        %v2325 = vsub.f32 %v2239, %v2297
        %v2326 = vsub.f32 %v2244, %v2299
        %v2327 = vsub.f32 %v2247, %v2301
        %v2328 = vsub.f32 %v2252, %v2303
        %v2329 = vsub.f32 %v2255, %v2305
        %v2330 = vsub.f32 %v2260, %v2307
        %v2331 = vsub.f32 %v2263, %v2309
        %v2332 = vsub.f32 %v2268, %v2311
        %v2333 = vsub.f32 %v2271, %v2313
        %v2334 = vsub.f32 %v2276, %v2315
        %v2335 = vsub.f32 %v2279, %v2317
        %v2336 = vsub.f32 %v2284, %v2319
        %v2337 = vsub.f32 %v2287, %v2321
        %v2338 = vmul.f32 %v2322, 1.442695
        %v2339 = vpow.pop %v2338
        %v2340 = vmul.f32 %v2323, 1.442695
        %v2341 = vpow.pop %v2340
        %v2342 = vmul.f32 %v2324, 1.442695
        %v2343 = vpow.pop %v2342
        %v2344 = vmul.f32 %v2325, 1.442695
        %v2345 = vpow.pop %v2344
        %v2346 = vmul.f32 %v2326, 1.442695
        %v2347 = vpow.pop %v2346
        %v2348 = vmul.f32 %v2327, 1.442695
        %v2349 = vpow.pop %v2348
        %v2350 = vmul.f32 %v2328, 1.442695
        %v2351 = vpow.pop %v2350
        %v2352 = vmul.f32 %v2329, 1.442695
        %v2353 = vpow.pop %v2352
        %v2354 = vmul.f32 %v2330, 1.442695
        %v2355 = vpow.pop %v2354
        %v2356 = vmul.f32 %v2331, 1.442695
        %v2357 = vpow.pop %v2356
        %v2358 = vmul.f32 %v2332, 1.442695
        %v2359 = vpow.pop %v2358
        %v2360 = vmul.f32 %v2333, 1.442695
        %v2361 = vpow.pop %v2360
        %v2362 = vmul.f32 %v2334, 1.442695
        %v2363 = vpow.pop %v2362
        %v2364 = vmul.f32 %v2335, 1.442695
        %v2365 = vpow.pop %v2364
        %v2366 = vmul.f32 %v2336, 1.442695
        %v2367 = vpow.pop %v2366
        %v2368 = vmul.f32 %v2337, 1.442695
        %v2369 = vpow.pop %v2368
        %2370 = vadd.xlane.f32.xlu0 %v2339
        %v2371 = vpop.xlane.xlu0 %2370
        %2372 = vadd.xlane.f32.xlu0 %v2341
        %v2373 = vpop.xlane.xlu0 %2372
        %2374 = vadd.xlane.f32.xlu0 %v2343
        %v2375 = vpop.xlane.xlu0 %2374
        %2376 = vadd.xlane.f32.xlu0 %v2345
        %v2377 = vpop.xlane.xlu0 %2376
        %2378 = vadd.xlane.f32.xlu0 %v2347
        %v2379 = vpop.xlane.xlu0 %2378
        %2380 = vadd.xlane.f32.xlu0 %v2349
        %v2381 = vpop.xlane.xlu0 %2380
        %2382 = vadd.xlane.f32.xlu0 %v2351
        %v2383 = vpop.xlane.xlu0 %2382
        %2384 = vadd.xlane.f32.xlu0 %v2353
        %v2385 = vpop.xlane.xlu0 %2384
        %2386 = vadd.xlane.f32.xlu0 %v2355
        %v2387 = vpop.xlane.xlu0 %2386
        %2388 = vadd.xlane.f32.xlu0 %v2357
        %v2389 = vpop.xlane.xlu0 %2388
        %2390 = vadd.xlane.f32.xlu0 %v2359
        %v2391 = vpop.xlane.xlu0 %2390
        %2392 = vadd.xlane.f32.xlu0 %v2361
        %v2393 = vpop.xlane.xlu0 %2392
        %2394 = vadd.xlane.f32.xlu0 %v2363
        %v2395 = vpop.xlane.xlu0 %2394
        %2396 = vadd.xlane.f32.xlu0 %v2365
        %v2397 = vpop.xlane.xlu0 %2396
        %2398 = vadd.xlane.f32.xlu0 %v2367
        %v2399 = vpop.xlane.xlu0 %2398
        %2400 = vadd.xlane.f32.xlu0 %v2369
        %v2401 = vpop.xlane.xlu0 %2400
        %v2402 = vrcp.pop %v2371
        %v2403 = vrcp.pop %v2373
        %v2404 = vrcp.pop %v2375
        %v2405 = vrcp.pop %v2377
        %v2406 = vrcp.pop %v2379
        %v2407 = vrcp.pop %v2381
        %v2408 = vrcp.pop %v2383
        %v2409 = vrcp.pop %v2385
        %v2410 = vrcp.pop %v2387
        %v2411 = vrcp.pop %v2389
        %v2412 = vrcp.pop %v2391
        %v2413 = vrcp.pop %v2393
        %v2414 = vrcp.pop %v2395
        %v2415 = vrcp.pop %v2397
        %v2416 = vrcp.pop %v2399
        %v2417 = vrcp.pop %v2401
        %v2418 = vmul.f32 %v2339, %v2402
        %v2419 = vmul.f32 %v2341, %v2403
        %v2420 = vmul.f32 %v2343, %v2404
        %v2421 = vmul.f32 %v2345, %v2405
        %v2422 = vmul.f32 %v2347, %v2406
        %v2423 = vmul.f32 %v2349, %v2407
        %v2424 = vmul.f32 %v2351, %v2408
        %v2425 = vmul.f32 %v2353, %v2409
        %v2426 = vmul.f32 %v2355, %v2410
        %v2427 = vmul.f32 %v2357, %v2411
        %v2428 = vmul.f32 %v2359, %v2412
        %v2429 = vmul.f32 %v2361, %v2413
        %v2430 = vmul.f32 %v2363, %v2414
        %v2431 = vmul.f32 %v2365, %v2415
        %v2432 = vmul.f32 %v2367, %v2416
        %v2433 = vmul.f32 %v2369, %v2417
        %v2434 = vpack.c.bf16 %v2419, %v2418
        %v2435 = vpack.c.bf16 %v2421, %v2420
        %v2436 = vpack.c.bf16 %v2423, %v2422
        %v2437 = vpack.c.bf16 %v2425, %v2424
        %v2438 = vpack.c.bf16 %v2427, %v2426
        %v2439 = vpack.c.bf16 %v2429, %v2428
        %v2440 = vpack.c.bf16 %v2431, %v2430
        %v2441 = vpack.c.bf16 %v2433, %v2432
        %2442 = vmatprep.subr.bf16.mxu0 0
        %2443 = vmatpush1.bf16.xpose.msra.mxu0 %v2434
        %2444 = vmatprep.subr.bf16.mxu0 0
        %2445 = vmatpush1.bf16.xpose.msra.mxu0 %v2435
        %2446 = vmatprep.subr.bf16.mxu0 0
        %2447 = vmatpush1.bf16.xpose.msra.mxu0 %v2436
        %2448 = vmatprep.subr.bf16.mxu0 0
        %2449 = vmatpush1.bf16.xpose.msra.mxu0 %v2437
        %2450 = vmatprep.subr.bf16.mxu0 0
        %2451 = vmatpush1.bf16.xpose.msra.mxu0 %v2438
        %2452 = vmatprep.subr.bf16.mxu0 0
        %2453 = vmatpush1.bf16.xpose.msra.mxu0 %v2439
        %2454 = vmatprep.subr.bf16.mxu0 0
        %2455 = vmatpush1.bf16.xpose.msra.mxu0 %v2440
        %2456 = vmatprep.subr.bf16.mxu0 0
        %2457 = vmatpush1.bf16.xpose.msra.mxu0 %v2441
        %2458 = vmatprep.subr.bf16.mxu0 0
        %2459 = vmatpush1.bf16.xpose.msra.mxu0 0
        %2460 = vmatprep.subr.bf16.mxu0 0
        %2461 = vmatpush1.bf16.xpose.msra.mxu0 0
        %2462 = vmatprep.subr.bf16.mxu0 0
        %2463 = vmatpush1.bf16.xpose.msra.mxu0 0
        %2464 = vmatprep.subr.bf16.mxu0 0
        %2465 = vmatpush1.bf16.xpose.msra.mxu0 0
        %2466 = vmatprep.subr.bf16.mxu0 0
        %2467 = vmatpush1.bf16.xpose.msra.mxu0 0
        %2468 = vmatprep.subr.bf16.mxu0 0
        %2469 = vmatpush1.bf16.xpose.msra.mxu0 0
        %2470 = vmatprep.subr.bf16.mxu0 0
        %2471 = vmatpush1.bf16.xpose.msra.mxu0 0
        %2472 = vmatprep.subr.bf16.mxu0 0
        %2473 = vmatpush1.bf16.xpose.msra.mxu0 0
        %2474 = vmatprep.mubr.bf16.mxu0 0
        %2475 = vmatmul.mubr.bf16.gmra.mrb[0].mxu0 %v2149
        %v2476 = vpop.f32.mrb[0].mxu0
        %v2477 = vadd.f32 0.0, %v2476
        %v2478 = vpop.f32.mrb[0].mxu0
        %v2479 = vpop.f32.mrb[0].mxu0
        %v2480 = vpop.f32.mrb[0].mxu0
        %2481 = vdwg.mxu0
        %2482 = vadd.xlane.f32.xlu0 %v2477
        %v2483 = vpop.xlane.xlu0 %2482
        %v2484 = vrot.slane %v2483, 4
        %v2485 = vadd.f32 %v2483, %v2484
        %v2486 = vrot.slane %v2485, 2
        %v2487 = vadd.f32 %v2485, %v2486
        %v2488 = vrot.slane %v2487, 1
        %v2489 = vadd.f32 %v2487, %v2488
        %s2490 = vtos %v2489
        %v2491 = vrcp.pop 1024.0
        %s2492 = vtos %v2491
        %s2493 = smul.f32 %s2490, %s2492
        %v2494 = vstv %s2493
        %v2495 = vsub.f32 %v2477, %v2494
        %v2496 = vmul.f32 %v2495, %v2495
        %2497 = vadd.xlane.f32.xlu0 %v2496
        %v2498 = vpop.xlane.xlu0 %2497
        %v2499 = vrot.slane %v2498, 4
        %v2500 = vadd.f32 %v2498, %v2499
        %v2501 = vrot.slane %v2500, 2
        %v2502 = vadd.f32 %v2500, %v2501
        %v2503 = vrot.slane %v2502, 1
        %v2504 = vadd.f32 %v2502, %v2503
        %s2505 = vtos %v2504
        %v2506 = vrcp.pop 1024.0
        %s2507 = vtos %v2506
        %s2508 = smul.f32 %s2505, %s2507
        %s2509 = sadd.f32 %s2508, 1e-05
        %v2510 = vstv %s2509
        %v2511 = vrsqrt.pop %v2510
        %s2512 = vtos %v2511
        %v2513 = vstv %s2512
        %v2514 = vmul.f32 %v2495, %v2513
        %v2515 = vld [vmem:[%s10] sm:$0xff]
        %v2516 = vld [vmem:[%s10 + $0x8] sm:$0xff]
        %v2517 = vld [vmem:[%s10 + $0x10] sm:$0xff]
        %v2518 = vld [vmem:[%s10 + $0x18] sm:$0xff]
        %v2519 = vld [vmem:[%s10 + $0x20] sm:$0xff]
        %v2520 = vld [vmem:[%s10 + $0x28] sm:$0xff]
        %v2521 = vld [vmem:[%s10 + $0x30] sm:$0xff]
        %v2522 = vld [vmem:[%s10 + $0x38] sm:$0xff]
        %2524 = vset.pattern.permute.xlu0 0
        %2525 = vperm.xlu0 %2524, %v2515
        %v2526 = vpop.permute.xlu0 %2525
        %2529 = vset.pattern.permute.xlu0 0
        %2530 = vperm.xlu0 %2529, %v2516
        %v2531 = vpop.permute.xlu0 %2530
        %2534 = vset.pattern.permute.xlu0 0
        %2535 = vperm.xlu0 %2534, %v2517
        %v2536 = vpop.permute.xlu0 %2535
        %2539 = vset.pattern.permute.xlu0 0
        %2540 = vperm.xlu0 %2539, %v2518
        %v2541 = vpop.permute.xlu0 %2540
        %v2543 = vmul.f32 %v1410, %v2526
        %v2544 = vmul.f32 %v1778, %v2531
        %v2545 = vmul.f32 %v2146, %v2536
        %v2546 = vmul.f32 %v2514, %v2541
        %2548 = vset.pattern.permute.xlu0 0
        %2549 = vperm.xlu0 %2548, %v2519
        %v2550 = vpop.permute.xlu0 %2549
        %2553 = vset.pattern.permute.xlu0 0
        %2554 = vperm.xlu0 %2553, %v2520
        %v2555 = vpop.permute.xlu0 %2554
        %2558 = vset.pattern.permute.xlu0 0
        %2559 = vperm.xlu0 %2558, %v2521
        %v2560 = vpop.permute.xlu0 %2559
        %2563 = vset.pattern.permute.xlu0 0
        %2564 = vperm.xlu0 %2563, %v2522
        %v2565 = vpop.permute.xlu0 %2564
        %v2567 = vadd.f32 %v2543, %v2550
        %v2568 = vadd.f32 %v2544, %v2555
        %v2569 = vadd.f32 %v2545, %v2560
        %v2570 = vadd.f32 %v2546, %v2565
        %v2571 = vadd.f32 %v2567, %v894
        %v2572 = vadd.f32 %v2568, %v895
        %v2573 = vadd.f32 %v2569, %v896
        %v2574 = vadd.f32 %v2570, %v897
        %v2575 = vld [vmem:[%s11] sm:$0xf]
        %v2576 = vld [vmem:[%s11 + $0x4] sm:$0xf]
        %v2577 = vld [vmem:[%s11 + $0x8] sm:$0xf]
        %v2578 = vld [vmem:[%s11 + $0xc] sm:$0xf]
        %v2579 = vld [vmem:[%s11 + $0x10] sm:$0xf]
        %v2580 = vld [vmem:[%s11 + $0x14] sm:$0xf]
        %v2581 = vld [vmem:[%s11 + $0x18] sm:$0xf]
        %v2582 = vld [vmem:[%s11 + $0x1c] sm:$0xf]
        %v2583 = vld [vmem:[%s11 + $0x20] sm:$0xf]
        %v2584 = vld [vmem:[%s11 + $0x24] sm:$0xf]
        %v2585 = vld [vmem:[%s11 + $0x28] sm:$0xf]
        %v2586 = vld [vmem:[%s11 + $0x2c] sm:$0xf]
        %v2587 = vld [vmem:[%s11 + $0x30] sm:$0xf]
        %v2588 = vld [vmem:[%s11 + $0x34] sm:$0xf]
        %v2589 = vld [vmem:[%s11 + $0x38] sm:$0xf]
        %v2590 = vld [vmem:[%s11 + $0x3c] sm:$0xf]
        %v2591 = vld [vmem:[%s11 + $0x40] sm:$0xf]
        %v2592 = vld [vmem:[%s11 + $0x44] sm:$0xf]
        %v2593 = vld [vmem:[%s11 + $0x48] sm:$0xf]
        %v2594 = vld [vmem:[%s11 + $0x4c] sm:$0xf]
        %v2595 = vld [vmem:[%s11 + $0x50] sm:$0xf]
        %v2596 = vld [vmem:[%s11 + $0x54] sm:$0xf]
        %v2597 = vld [vmem:[%s11 + $0x58] sm:$0xf]
        %v2598 = vld [vmem:[%s11 + $0x5c] sm:$0xf]
        %v2599 = vpack.c.bf16 %v493, %v492
        %v2600 = vpack.c.bf16 %v495, %v494
        %v2601 = vpack.c.bf16 %v2572, %v2571
        %v2602 = vpack.c.bf16 %v2574, %v2573
        %v2627 = vunpack.c.l.b16 %v2575
        %v2628 = vunpack.c.l.b16 %v2576
        %v2629 = vunpack.c.l.b16 %v2577
        %v2630 = vunpack.c.l.b16 %v2578
        %v2631 = vunpack.c.l.b16 %v2579
        %v2632 = vunpack.c.l.b16 %v2580
        %v2633 = vunpack.c.l.b16 %v2581
        %v2634 = vunpack.c.l.b16 %v2582
        %v2635 = vunpack.c.l.b16 %v2583
        %v2636 = vunpack.c.l.b16 %v2584
        %v2637 = vunpack.c.l.b16 %v2585
        %v2638 = vunpack.c.l.b16 %v2586
        %v2639 = vunpack.c.l.b16 %v2587
        %v2640 = vunpack.c.l.b16 %v2588
        %v2641 = vunpack.c.l.b16 %v2589
        %v2642 = vunpack.c.l.b16 %v2590
        %v2643 = vunpack.c.l.b16 %v2591
        %v2644 = vunpack.c.l.b16 %v2592
        %v2645 = vunpack.c.l.b16 %v2593
        %v2646 = vunpack.c.l.b16 %v2594
        %v2647 = vunpack.c.l.b16 %v2595
        %v2648 = vunpack.c.l.b16 %v2596
        %v2649 = vunpack.c.l.b16 %v2597
        %v2650 = vunpack.c.l.b16 %v2598
        %v2651 = vpack.c.b16 %v2628, %v2627
        %v2652 = vpack.c.b16 %v2630, %v2629
        %v2653 = vpack.c.b16 %v2632, %v2631
        %v2654 = vpack.c.b16 %v2634, %v2633
        %v2655 = vpack.c.b16 %v2636, %v2635
        %v2656 = vpack.c.b16 %v2638, %v2637
        %v2657 = vpack.c.b16 %v2640, %v2639
        %v2658 = vpack.c.b16 %v2642, %v2641
        %v2659 = vpack.c.b16 %v2644, %v2643
        %v2660 = vpack.c.b16 %v2646, %v2645
        %v2661 = vpack.c.b16 %v2648, %v2647
        %v2662 = vpack.c.b16 %v2650, %v2649
        %v2664 = vsel %vm538, %v2651, 0
        %v2667 = vsel %vm538, %v2652, 0
        %v2670 = vsel %vm538, %v2653, 0
        %v2673 = vsel %vm538, %v2654, 0
        %v2676 = vsel %vm538, %v2655, 0
        %v2679 = vsel %vm538, %v2656, 0
        %v2682 = vsel %vm538, %v2657, 0
        %v2685 = vsel %vm538, %v2658, 0
        %v2688 = vsel %vm538, %v2659, 0
        %v2691 = vsel %vm538, %v2660, 0
        %v2694 = vsel %vm538, %v2661, 0
        %v2697 = vsel %vm538, %v2662, 0
        %2699 = vmatprep.subr.bf16.mxu0 0
        %2700 = vmatpush1.bf16.msra.mxu0 %v2599
        %2701 = vmatprep.subr.bf16.mxu0 0
        %2702 = vmatpush1.bf16.msra.mxu0 %v2600
        %2703 = vmatprep.subr.bf16.mxu0 0
        %2704 = vmatpush1.bf16.msra.mxu0 %v2601
        %2705 = vmatprep.subr.bf16.mxu0 0
        %2706 = vmatpush1.bf16.msra.mxu0 %v2602
        %2707 = vmatprep.subr.bf16.mxu0 0
        %2708 = vmatpush1.bf16.msra.mxu0 0
        %2709 = vmatprep.subr.bf16.mxu0 0
        %2710 = vmatpush1.bf16.msra.mxu0 0
        %2711 = vmatprep.subr.bf16.mxu0 0
        %2712 = vmatpush1.bf16.msra.mxu0 0
        %2713 = vmatprep.subr.bf16.mxu0 0
        %2714 = vmatpush1.bf16.msra.mxu0 0
        %2715 = vmatprep.subr.bf16.mxu0 0
        %2716 = vmatpush1.bf16.msra.mxu0 0
        %2717 = vmatprep.subr.bf16.mxu0 0
        %2718 = vmatpush1.bf16.msra.mxu0 0
        %2719 = vmatprep.subr.bf16.mxu0 0
        %2720 = vmatpush1.bf16.msra.mxu0 0
        %2721 = vmatprep.subr.bf16.mxu0 0
        %2722 = vmatpush1.bf16.msra.mxu0 0
        %2723 = vmatprep.subr.bf16.mxu0 0
        %2724 = vmatpush1.bf16.msra.mxu0 0
        %2725 = vmatprep.subr.bf16.mxu0 0
        %2726 = vmatpush1.bf16.msra.mxu0 0
        %2727 = vmatprep.subr.bf16.mxu0 0
        %2728 = vmatpush1.bf16.msra.mxu0 0
        %2729 = vmatprep.subr.bf16.mxu0 0
        %2730 = vmatpush1.bf16.msra.mxu0 0
        %2731 = vmatprep.mubr.bf16.mxu0 0
        %2732 = vmatmul.mubr.bf16.gmra.mrb[0].mxu0 %v2664
        %v2733 = vpop.f32.mrb[0].mxu0
        %v2734 = vadd.f32 0.0, %v2733
        %v2735 = vpop.f32.mrb[0].mxu0
        %v2736 = vpop.f32.mrb[0].mxu0
        %v2737 = vadd.f32 0.0, %v2736
        %v2738 = vpop.f32.mrb[0].mxu0
        %2739 = vmatprep.mubr.bf16.mxu0 0
        %2740 = vmatmul.mubr.bf16.gmra.mrb[0].mxu0 %v2667
        %v2741 = vpop.f32.mrb[0].mxu0
        %v2742 = vadd.f32 0.0, %v2741
        %v2743 = vpop.f32.mrb[0].mxu0
        %v2744 = vpop.f32.mrb[0].mxu0
        %v2745 = vadd.f32 0.0, %v2744
        %v2746 = vpop.f32.mrb[0].mxu0
        %2747 = vmatprep.mubr.bf16.mxu0 0
        %2748 = vmatmul.mubr.bf16.gmra.mrb[0].mxu0 %v2670
        %v2749 = vpop.f32.mrb[0].mxu0
        %v2750 = vadd.f32 0.0, %v2749
        %v2751 = vpop.f32.mrb[0].mxu0
        %v2752 = vpop.f32.mrb[0].mxu0
        %v2753 = vadd.f32 0.0, %v2752
        %v2754 = vpop.f32.mrb[0].mxu0
        %2755 = vmatprep.mubr.bf16.mxu0 0
        %2756 = vmatmul.mubr.bf16.gmra.mrb[0].mxu0 %v2673
        %v2757 = vpop.f32.mrb[0].mxu0
        %v2758 = vadd.f32 0.0, %v2757
        %v2759 = vpop.f32.mrb[0].mxu0
        %v2760 = vpop.f32.mrb[0].mxu0
        %v2761 = vadd.f32 0.0, %v2760
        %v2762 = vpop.f32.mrb[0].mxu0
        %2763 = vmatprep.mubr.bf16.mxu0 0
        %2764 = vmatmul.mubr.bf16.gmra.mrb[0].mxu0 %v2676
        %v2765 = vpop.f32.mrb[0].mxu0
        %v2766 = vadd.f32 0.0, %v2765
        %v2767 = vpop.f32.mrb[0].mxu0
        %v2768 = vpop.f32.mrb[0].mxu0
        %v2769 = vadd.f32 0.0, %v2768
        %v2770 = vpop.f32.mrb[0].mxu0
        %2771 = vmatprep.mubr.bf16.mxu0 0
        %2772 = vmatmul.mubr.bf16.gmra.mrb[0].mxu0 %v2679
        %v2773 = vpop.f32.mrb[0].mxu0
        %v2774 = vadd.f32 0.0, %v2773
        %v2775 = vpop.f32.mrb[0].mxu0
        %v2776 = vpop.f32.mrb[0].mxu0
        %v2777 = vadd.f32 0.0, %v2776
        %v2778 = vpop.f32.mrb[0].mxu0
        %2779 = vmatprep.mubr.bf16.mxu0 0
        %2780 = vmatmul.mubr.bf16.gmra.mrb[0].mxu0 %v2682
        %v2781 = vpop.f32.mrb[0].mxu0
        %v2782 = vadd.f32 0.0, %v2781
        %v2783 = vpop.f32.mrb[0].mxu0
        %v2784 = vpop.f32.mrb[0].mxu0
        %v2785 = vadd.f32 0.0, %v2784
        %v2786 = vpop.f32.mrb[0].mxu0
        %2787 = vmatprep.mubr.bf16.mxu0 0
        %2788 = vmatmul.mubr.bf16.gmra.mrb[0].mxu0 %v2685
        %v2789 = vpop.f32.mrb[0].mxu0
        %v2790 = vadd.f32 0.0, %v2789
        %v2791 = vpop.f32.mrb[0].mxu0
        %v2792 = vpop.f32.mrb[0].mxu0
        %v2793 = vadd.f32 0.0, %v2792
        %v2794 = vpop.f32.mrb[0].mxu0
        %2795 = vmatprep.mubr.bf16.mxu0 0
        %2796 = vmatmul.mubr.bf16.gmra.mrb[0].mxu0 %v2688
        %v2797 = vpop.f32.mrb[0].mxu0
        %v2798 = vadd.f32 0.0, %v2797
        %v2799 = vpop.f32.mrb[0].mxu0
        %v2800 = vpop.f32.mrb[0].mxu0
        %v2801 = vadd.f32 0.0, %v2800
        %v2802 = vpop.f32.mrb[0].mxu0
        %2803 = vmatprep.mubr.bf16.mxu0 0
        %2804 = vmatmul.mubr.bf16.gmra.mrb[0].mxu0 %v2691
        %v2805 = vpop.f32.mrb[0].mxu0
        %v2806 = vadd.f32 0.0, %v2805
        %v2807 = vpop.f32.mrb[0].mxu0
        %v2808 = vpop.f32.mrb[0].mxu0
        %v2809 = vadd.f32 0.0, %v2808
        %v2810 = vpop.f32.mrb[0].mxu0
        %2811 = vmatprep.mubr.bf16.mxu0 0
        %2812 = vmatmul.mubr.bf16.gmra.mrb[0].mxu0 %v2694
        %v2813 = vpop.f32.mrb[0].mxu0
        %v2814 = vadd.f32 0.0, %v2813
        %v2815 = vpop.f32.mrb[0].mxu0
        %v2816 = vpop.f32.mrb[0].mxu0
        %v2817 = vadd.f32 0.0, %v2816
        %v2818 = vpop.f32.mrb[0].mxu0
        %2819 = vmatprep.mubr.bf16.mxu0 0
        %2820 = vmatmul.mubr.bf16.gmra.mrb[0].mxu0 %v2697
        %v2821 = vpop.f32.mrb[0].mxu0
        %v2822 = vadd.f32 0.0, %v2821
        %v2823 = vpop.f32.mrb[0].mxu0
        %v2824 = vpop.f32.mrb[0].mxu0
        %v2825 = vadd.f32 0.0, %v2824
        %v2826 = vpop.f32.mrb[0].mxu0
        %2827 = vdwg.mxu0
        %v2828 = vpack.c.bf16 %v2737, %v2734
        %v2829 = vpack.c.bf16 %v2769, %v2766
        %v2830 = vpack.c.bf16 %v2801, %v2798
        %2831 = vxpose.xlu0.c.b16.start [1/8] %v2828, 128
        %2832 = vxpose.xlu0.c.b16.cont [2/8] 0, 128
        %2833 = vxpose.xlu0.c.b16.cont [3/8] 0, 128
        %2834 = vxpose.xlu0.c.b16.cont [4/8] 0, 128
        %2835 = vxpose.xlu0.c.b16.cont [5/8] 0, 128
        %2836 = vxpose.xlu0.c.b16.cont [6/8] 0, 128
        %2837 = vxpose.xlu0.c.b16.cont [7/8] 0, 128
        %2838 = vxpose.xlu0.c.b16.end [8/8] 0, 128
        %v2839 = vpop.trf.xlu0
        %v2840 = vpop.trf.xlu0
        %v2841 = vpop.trf.xlu0
        %v2842 = vpop.trf.xlu0
        %v2843 = vpop.trf.xlu0
        %v2844 = vpop.trf.xlu0
        %v2845 = vpop.trf.xlu0
        %v2846 = vpop.trf.xlu0
        %vm2847 = vcmask 130048
        %v2849 = vsel %vm2847, %v2839, 0
        %v2852 = vsel %vm2847, %v2840, 0
        %v2855 = vsel %vm2847, %v2841, 0
        %v2858 = vsel %vm2847, %v2842, 0
        %v2861 = vsel %vm2847, %v2843, 0
        %v2864 = vsel %vm2847, %v2844, 0
        %v2867 = vsel %vm2847, %v2845, 0
        %v2870 = vsel %vm2847, %v2846, 0
        %2872 = vmatprep.subr.bf16.mxu0 0
        %2873 = vmatpush1.bf16.msra.mxu0 %v2829
        %2874 = vmatprep.subr.bf16.mxu0 0
        %2875 = vmatpush1.bf16.msra.mxu0 0
        %2876 = vmatprep.subr.bf16.mxu0 0
        %2877 = vmatpush1.bf16.msra.mxu0 0
        %2878 = vmatprep.subr.bf16.mxu0 0
        %2879 = vmatpush1.bf16.msra.mxu0 0
        %2880 = vmatprep.subr.bf16.mxu0 0
        %2881 = vmatpush1.bf16.msra.mxu0 0
        %2882 = vmatprep.subr.bf16.mxu0 0
        %2883 = vmatpush1.bf16.msra.mxu0 0
        %2884 = vmatprep.subr.bf16.mxu0 0
        %2885 = vmatpush1.bf16.msra.mxu0 0
        %2886 = vmatprep.subr.bf16.mxu0 0
        %2887 = vmatpush1.bf16.msra.mxu0 0
        %2888 = vmatprep.subr.bf16.mxu0 0
        %2889 = vmatpush1.bf16.msra.mxu0 0
        %2890 = vmatprep.subr.bf16.mxu0 0
        %2891 = vmatpush1.bf16.msra.mxu0 0
        %2892 = vmatprep.subr.bf16.mxu0 0
        %2893 = vmatpush1.bf16.msra.mxu0 0
        %2894 = vmatprep.subr.bf16.mxu0 0
        %2895 = vmatpush1.bf16.msra.mxu0 0
        %2896 = vmatprep.subr.bf16.mxu0 0
        %2897 = vmatpush1.bf16.msra.mxu0 0
        %2898 = vmatprep.subr.bf16.mxu0 0
        %2899 = vmatpush1.bf16.msra.mxu0 0
        %2900 = vmatprep.subr.bf16.mxu0 0
        %2901 = vmatpush1.bf16.msra.mxu0 0
        %2902 = vmatprep.subr.bf16.mxu0 0
        %2903 = vmatpush1.bf16.msra.mxu0 0
        %2904 = vmatprep.mubr.bf16.mxu0 0
        %2905 = vmatmul.mubr.bf16.gmra.mrb[0].mxu0 %v2849
        %v2906 = vpop.f32.mrb[0].mxu0
        %v2907 = vadd.f32 0.0, %v2906
        %v2908 = vpop.f32.mrb[0].mxu0
        %v2909 = vpop.f32.mrb[0].mxu0
        %v2910 = vadd.f32 0.0, %v2909
        %v2911 = vpop.f32.mrb[0].mxu0
        %2912 = vmatprep.mubr.bf16.mxu0 0
        %2913 = vmatmul.mubr.bf16.gmra.mrb[0].mxu0 %v2852
        %v2914 = vpop.f32.mrb[0].mxu0
        %v2915 = vadd.f32 0.0, %v2914
        %v2916 = vpop.f32.mrb[0].mxu0
        %v2917 = vpop.f32.mrb[0].mxu0
        %v2918 = vadd.f32 0.0, %v2917
        %v2919 = vpop.f32.mrb[0].mxu0
        %2920 = vmatprep.mubr.bf16.mxu0 0
        %2921 = vmatmul.mubr.bf16.gmra.mrb[0].mxu0 %v2855
        %v2922 = vpop.f32.mrb[0].mxu0
        %v2923 = vadd.f32 0.0, %v2922
        %v2924 = vpop.f32.mrb[0].mxu0
        %v2925 = vpop.f32.mrb[0].mxu0
        %v2926 = vadd.f32 0.0, %v2925
        %v2927 = vpop.f32.mrb[0].mxu0
        %2928 = vmatprep.mubr.bf16.mxu0 0
        %2929 = vmatmul.mubr.bf16.gmra.mrb[0].mxu0 %v2858
        %v2930 = vpop.f32.mrb[0].mxu0
        %v2931 = vadd.f32 0.0, %v2930
        %v2932 = vpop.f32.mrb[0].mxu0
        %v2933 = vpop.f32.mrb[0].mxu0
        %v2934 = vadd.f32 0.0, %v2933
        %v2935 = vpop.f32.mrb[0].mxu0
        %2936 = vmatprep.mubr.bf16.mxu0 0
        %2937 = vmatmul.mubr.bf16.gmra.mrb[0].mxu0 %v2861
        %v2938 = vpop.f32.mrb[0].mxu0
        %v2939 = vadd.f32 0.0, %v2938
        %v2940 = vpop.f32.mrb[0].mxu0
        %v2941 = vpop.f32.mrb[0].mxu0
        %v2942 = vadd.f32 0.0, %v2941
        %v2943 = vpop.f32.mrb[0].mxu0
        %2944 = vmatprep.mubr.bf16.mxu0 0
        %2945 = vmatmul.mubr.bf16.gmra.mrb[0].mxu0 %v2864
        %v2946 = vpop.f32.mrb[0].mxu0
        %v2947 = vadd.f32 0.0, %v2946
        %v2948 = vpop.f32.mrb[0].mxu0
        %v2949 = vpop.f32.mrb[0].mxu0
        %v2950 = vadd.f32 0.0, %v2949
        %v2951 = vpop.f32.mrb[0].mxu0
        %2952 = vmatprep.mubr.bf16.mxu0 0
        %2953 = vmatmul.mubr.bf16.gmra.mrb[0].mxu0 %v2867
        %v2954 = vpop.f32.mrb[0].mxu0
        %v2955 = vadd.f32 0.0, %v2954
        %v2956 = vpop.f32.mrb[0].mxu0
        %v2957 = vpop.f32.mrb[0].mxu0
        %v2958 = vadd.f32 0.0, %v2957
        %v2959 = vpop.f32.mrb[0].mxu0
        %2960 = vmatprep.mubr.bf16.mxu0 0
        %2961 = vmatmul.mubr.bf16.gmra.mrb[0].mxu0 %v2870
        %v2962 = vpop.f32.mrb[0].mxu0
        %v2963 = vadd.f32 0.0, %v2962
        %v2964 = vpop.f32.mrb[0].mxu0
        %v2965 = vpop.f32.mrb[0].mxu0
        %v2966 = vadd.f32 0.0, %v2965
        %v2967 = vpop.f32.mrb[0].mxu0
        %2968 = vdwg.mxu0
        %2969 = vmax.xlane.f32.xlu0 %v2907
        %v2970 = vpop.xlane.xlu0 %2969
        %2971 = vmax.xlane.f32.xlu0 %v2910
        %v2972 = vpop.xlane.xlu0 %2971
        %2973 = vmax.xlane.f32.xlu0 %v2915
        %v2974 = vpop.xlane.xlu0 %2973
        %2975 = vmax.xlane.f32.xlu0 %v2918
        %v2976 = vpop.xlane.xlu0 %2975
        %2977 = vmax.xlane.f32.xlu0 %v2923
        %v2978 = vpop.xlane.xlu0 %2977
        %2979 = vmax.xlane.f32.xlu0 %v2926
        %v2980 = vpop.xlane.xlu0 %2979
        %2981 = vmax.xlane.f32.xlu0 %v2931
        %v2982 = vpop.xlane.xlu0 %2981
        %2983 = vmax.xlane.f32.xlu0 %v2934
        %v2984 = vpop.xlane.xlu0 %2983
        %2985 = vmax.xlane.f32.xlu0 %v2939
        %v2986 = vpop.xlane.xlu0 %2985
        %2987 = vmax.xlane.f32.xlu0 %v2942
        %v2988 = vpop.xlane.xlu0 %2987
        %2989 = vmax.xlane.f32.xlu0 %v2947
        %v2990 = vpop.xlane.xlu0 %2989
        %2991 = vmax.xlane.f32.xlu0 %v2950
        %v2992 = vpop.xlane.xlu0 %2991
        %2993 = vmax.xlane.f32.xlu0 %v2955
        %v2994 = vpop.xlane.xlu0 %2993
        %2995 = vmax.xlane.f32.xlu0 %v2958
        %v2996 = vpop.xlane.xlu0 %2995
        %2997 = vmax.xlane.f32.xlu0 %v2963
        %v2998 = vpop.xlane.xlu0 %2997
        %2999 = vmax.xlane.f32.xlu0 %v2966
        %v3000 = vpop.xlane.xlu0 %2999
        %v3001 = vsub.f32 %v2907, %v2970
        %v3002 = vsub.f32 %v2910, %v2972
        %v3003 = vsub.f32 %v2915, %v2974
        %v3004 = vsub.f32 %v2918, %v2976
        %v3005 = vsub.f32 %v2923, %v2978
        %v3006 = vsub.f32 %v2926, %v2980
        %v3007 = vsub.f32 %v2931, %v2982
        %v3008 = vsub.f32 %v2934, %v2984
        %v3009 = vsub.f32 %v2939, %v2986
        %v3010 = vsub.f32 %v2942, %v2988
        %v3011 = vsub.f32 %v2947, %v2990
        %v3012 = vsub.f32 %v2950, %v2992
        %v3013 = vsub.f32 %v2955, %v2994
        %v3014 = vsub.f32 %v2958, %v2996
        %v3015 = vsub.f32 %v2963, %v2998
        %v3016 = vsub.f32 %v2966, %v3000
        %v3017 = vmul.f32 %v3001, 1.442695
        %v3018 = vpow.pop %v3017
        %v3019 = vmul.f32 %v3002, 1.442695
        %v3020 = vpow.pop %v3019
        %v3021 = vmul.f32 %v3003, 1.442695
        %v3022 = vpow.pop %v3021
        %v3023 = vmul.f32 %v3004, 1.442695
        %v3024 = vpow.pop %v3023
        %v3025 = vmul.f32 %v3005, 1.442695
        %v3026 = vpow.pop %v3025
        %v3027 = vmul.f32 %v3006, 1.442695
        %v3028 = vpow.pop %v3027
        %v3029 = vmul.f32 %v3007, 1.442695
        %v3030 = vpow.pop %v3029
        %v3031 = vmul.f32 %v3008, 1.442695
        %v3032 = vpow.pop %v3031
        %v3033 = vmul.f32 %v3009, 1.442695
        %v3034 = vpow.pop %v3033
        %v3035 = vmul.f32 %v3010, 1.442695
        %v3036 = vpow.pop %v3035
        %v3037 = vmul.f32 %v3011, 1.442695
        %v3038 = vpow.pop %v3037
        %v3039 = vmul.f32 %v3012, 1.442695
        %v3040 = vpow.pop %v3039
        %v3041 = vmul.f32 %v3013, 1.442695
        %v3042 = vpow.pop %v3041
        %v3043 = vmul.f32 %v3014, 1.442695
        %v3044 = vpow.pop %v3043
        %v3045 = vmul.f32 %v3015, 1.442695
        %v3046 = vpow.pop %v3045
        %v3047 = vmul.f32 %v3016, 1.442695
        %v3048 = vpow.pop %v3047
        %3049 = vadd.xlane.f32.xlu0 %v3018
        %v3050 = vpop.xlane.xlu0 %3049
        %3051 = vadd.xlane.f32.xlu0 %v3020
        %v3052 = vpop.xlane.xlu0 %3051
        %3053 = vadd.xlane.f32.xlu0 %v3022
        %v3054 = vpop.xlane.xlu0 %3053
        %3055 = vadd.xlane.f32.xlu0 %v3024
        %v3056 = vpop.xlane.xlu0 %3055
        %3057 = vadd.xlane.f32.xlu0 %v3026
        %v3058 = vpop.xlane.xlu0 %3057
        %3059 = vadd.xlane.f32.xlu0 %v3028
        %v3060 = vpop.xlane.xlu0 %3059
        %3061 = vadd.xlane.f32.xlu0 %v3030
        %v3062 = vpop.xlane.xlu0 %3061
        %3063 = vadd.xlane.f32.xlu0 %v3032
        %v3064 = vpop.xlane.xlu0 %3063
        %3065 = vadd.xlane.f32.xlu0 %v3034
        %v3066 = vpop.xlane.xlu0 %3065
        %3067 = vadd.xlane.f32.xlu0 %v3036
        %v3068 = vpop.xlane.xlu0 %3067
        %3069 = vadd.xlane.f32.xlu0 %v3038
        %v3070 = vpop.xlane.xlu0 %3069
        %3071 = vadd.xlane.f32.xlu0 %v3040
        %v3072 = vpop.xlane.xlu0 %3071
        %3073 = vadd.xlane.f32.xlu0 %v3042
        %v3074 = vpop.xlane.xlu0 %3073
        %3075 = vadd.xlane.f32.xlu0 %v3044
        %v3076 = vpop.xlane.xlu0 %3075
        %3077 = vadd.xlane.f32.xlu0 %v3046
        %v3078 = vpop.xlane.xlu0 %3077
        %3079 = vadd.xlane.f32.xlu0 %v3048
        %v3080 = vpop.xlane.xlu0 %3079
        %v3081 = vrcp.pop %v3050
        %v3082 = vrcp.pop %v3052
        %v3083 = vrcp.pop %v3054
        %v3084 = vrcp.pop %v3056
        %v3085 = vrcp.pop %v3058
        %v3086 = vrcp.pop %v3060
        %v3087 = vrcp.pop %v3062
        %v3088 = vrcp.pop %v3064
        %v3089 = vrcp.pop %v3066
        %v3090 = vrcp.pop %v3068
        %v3091 = vrcp.pop %v3070
        %v3092 = vrcp.pop %v3072
        %v3093 = vrcp.pop %v3074
        %v3094 = vrcp.pop %v3076
        %v3095 = vrcp.pop %v3078
        %v3096 = vrcp.pop %v3080
        %v3097 = vmul.f32 %v3018, %v3081
        %v3098 = vmul.f32 %v3020, %v3082
        %v3099 = vmul.f32 %v3022, %v3083
        %v3100 = vmul.f32 %v3024, %v3084
        %v3101 = vmul.f32 %v3026, %v3085
        %v3102 = vmul.f32 %v3028, %v3086
        %v3103 = vmul.f32 %v3030, %v3087
        %v3104 = vmul.f32 %v3032, %v3088
        %v3105 = vmul.f32 %v3034, %v3089
        %v3106 = vmul.f32 %v3036, %v3090
        %v3107 = vmul.f32 %v3038, %v3091
        %v3108 = vmul.f32 %v3040, %v3092
        %v3109 = vmul.f32 %v3042, %v3093
        %v3110 = vmul.f32 %v3044, %v3094
        %v3111 = vmul.f32 %v3046, %v3095
        %v3112 = vmul.f32 %v3048, %v3096
        %v3113 = vpack.c.bf16 %v3098, %v3097
        %v3114 = vpack.c.bf16 %v3100, %v3099
        %v3115 = vpack.c.bf16 %v3102, %v3101
        %v3116 = vpack.c.bf16 %v3104, %v3103
        %v3117 = vpack.c.bf16 %v3106, %v3105
        %v3118 = vpack.c.bf16 %v3108, %v3107
        %v3119 = vpack.c.bf16 %v3110, %v3109
        %v3120 = vpack.c.bf16 %v3112, %v3111
        %3121 = vmatprep.subr.bf16.mxu0 0
        %3122 = vmatpush1.bf16.xpose.msra.mxu0 %v3113
        %3123 = vmatprep.subr.bf16.mxu0 0
        %3124 = vmatpush1.bf16.xpose.msra.mxu0 %v3114
        %3125 = vmatprep.subr.bf16.mxu0 0
        %3126 = vmatpush1.bf16.xpose.msra.mxu0 %v3115
        %3127 = vmatprep.subr.bf16.mxu0 0
        %3128 = vmatpush1.bf16.xpose.msra.mxu0 %v3116
        %3129 = vmatprep.subr.bf16.mxu0 0
        %3130 = vmatpush1.bf16.xpose.msra.mxu0 %v3117
        %3131 = vmatprep.subr.bf16.mxu0 0
        %3132 = vmatpush1.bf16.xpose.msra.mxu0 %v3118
        %3133 = vmatprep.subr.bf16.mxu0 0
        %3134 = vmatpush1.bf16.xpose.msra.mxu0 %v3119
        %3135 = vmatprep.subr.bf16.mxu0 0
        %3136 = vmatpush1.bf16.xpose.msra.mxu0 %v3120
        %3137 = vmatprep.subr.bf16.mxu0 0
        %3138 = vmatpush1.bf16.xpose.msra.mxu0 0
        %3139 = vmatprep.subr.bf16.mxu0 0
        %3140 = vmatpush1.bf16.xpose.msra.mxu0 0
        %3141 = vmatprep.subr.bf16.mxu0 0
        %3142 = vmatpush1.bf16.xpose.msra.mxu0 0
        %3143 = vmatprep.subr.bf16.mxu0 0
        %3144 = vmatpush1.bf16.xpose.msra.mxu0 0
        %3145 = vmatprep.subr.bf16.mxu0 0
        %3146 = vmatpush1.bf16.xpose.msra.mxu0 0
        %3147 = vmatprep.subr.bf16.mxu0 0
        %3148 = vmatpush1.bf16.xpose.msra.mxu0 0
        %3149 = vmatprep.subr.bf16.mxu0 0
        %3150 = vmatpush1.bf16.xpose.msra.mxu0 0
        %3151 = vmatprep.subr.bf16.mxu0 0
        %3152 = vmatpush1.bf16.xpose.msra.mxu0 0
        %3153 = vmatprep.mubr.bf16.mxu0 0
        %3154 = vmatmul.mubr.bf16.gmra.mrb[0].mxu0 %v2830
        %v3155 = vpop.f32.mrb[0].mxu0
        %v3156 = vadd.f32 0.0, %v3155
        %v3157 = vpop.f32.mrb[0].mxu0
        %v3158 = vpop.f32.mrb[0].mxu0
        %v3159 = vadd.f32 0.0, %v3158
        %v3160 = vpop.f32.mrb[0].mxu0
        %3161 = vdwg.mxu0
        %v3162 = vadd.f32 %v3156, %v3159
        %3163 = vadd.xlane.f32.xlu0 %v3162
        %v3164 = vpop.xlane.xlu0 %3163
        %v3165 = vrot.slane %v3164, 4
        %v3166 = vadd.f32 %v3164, %v3165
        %v3167 = vrot.slane %v3166, 2
        %v3168 = vadd.f32 %v3166, %v3167
        %v3169 = vrot.slane %v3168, 1
        %v3170 = vadd.f32 %v3168, %v3169
        %s3171 = vtos %v3170
        %v3172 = vrcp.pop 2048.0
        %s3173 = vtos %v3172
        %s3174 = smul.f32 %s3171, %s3173
        %v3175 = vstv %s3174
        %v3176 = vsub.f32 %v3156, %v3175
        %v3177 = vsub.f32 %v3159, %v3175
        %v3178 = vmul.f32 %v3176, %v3176
        %v3179 = vmul.f32 %v3177, %v3177
        %v3180 = vadd.f32 %v3178, %v3179
        %3181 = vadd.xlane.f32.xlu0 %v3180
        %v3182 = vpop.xlane.xlu0 %3181
        %v3183 = vrot.slane %v3182, 4
        %v3184 = vadd.f32 %v3182, %v3183
        %v3185 = vrot.slane %v3184, 2
        %v3186 = vadd.f32 %v3184, %v3185
        %v3187 = vrot.slane %v3186, 1
        %v3188 = vadd.f32 %v3186, %v3187
        %s3189 = vtos %v3188
        %v3190 = vrcp.pop 2048.0
        %s3191 = vtos %v3190
        %s3192 = smul.f32 %s3189, %s3191
        %s3193 = sadd.f32 %s3192, 1e-05
        %v3194 = vstv %s3193
        %v3195 = vrsqrt.pop %v3194
        %s3196 = vtos %v3195
        %v3197 = vstv %s3196
        %v3198 = vmul.f32 %v3176, %v3197
        %v3199 = vmul.f32 %v3177, %v3197
        %v3200 = vpack.c.bf16 %v2745, %v2742
        %v3201 = vpack.c.bf16 %v2777, %v2774
        %v3202 = vpack.c.bf16 %v2809, %v2806
        %3203 = vxpose.xlu0.c.b16.start [1/8] %v3200, 128
        %3204 = vxpose.xlu0.c.b16.cont [2/8] 0, 128
        %3205 = vxpose.xlu0.c.b16.cont [3/8] 0, 128
        %3206 = vxpose.xlu0.c.b16.cont [4/8] 0, 128
        %3207 = vxpose.xlu0.c.b16.cont [5/8] 0, 128
        %3208 = vxpose.xlu0.c.b16.cont [6/8] 0, 128
        %3209 = vxpose.xlu0.c.b16.cont [7/8] 0, 128
        %3210 = vxpose.xlu0.c.b16.end [8/8] 0, 128
        %v3211 = vpop.trf.xlu0
        %v3212 = vpop.trf.xlu0
        %v3213 = vpop.trf.xlu0
        %v3214 = vpop.trf.xlu0
        %v3215 = vpop.trf.xlu0
        %v3216 = vpop.trf.xlu0
        %v3217 = vpop.trf.xlu0
        %v3218 = vpop.trf.xlu0
        %v3220 = vsel %vm2847, %v3211, 0
        %v3223 = vsel %vm2847, %v3212, 0
        %v3226 = vsel %vm2847, %v3213, 0
        %v3229 = vsel %vm2847, %v3214, 0
        %v3232 = vsel %vm2847, %v3215, 0
        %v3235 = vsel %vm2847, %v3216, 0
        %v3238 = vsel %vm2847, %v3217, 0
        %v3241 = vsel %vm2847, %v3218, 0
        %3243 = vmatprep.subr.bf16.mxu0 0
        %3244 = vmatpush1.bf16.msra.mxu0 %v3201
        %3245 = vmatprep.subr.bf16.mxu0 0
        %3246 = vmatpush1.bf16.msra.mxu0 0
        %3247 = vmatprep.subr.bf16.mxu0 0
        %3248 = vmatpush1.bf16.msra.mxu0 0
        %3249 = vmatprep.subr.bf16.mxu0 0
        %3250 = vmatpush1.bf16.msra.mxu0 0
        %3251 = vmatprep.subr.bf16.mxu0 0
        %3252 = vmatpush1.bf16.msra.mxu0 0
        %3253 = vmatprep.subr.bf16.mxu0 0
        %3254 = vmatpush1.bf16.msra.mxu0 0
        %3255 = vmatprep.subr.bf16.mxu0 0
        %3256 = vmatpush1.bf16.msra.mxu0 0
        %3257 = vmatprep.subr.bf16.mxu0 0
        %3258 = vmatpush1.bf16.msra.mxu0 0
        %3259 = vmatprep.subr.bf16.mxu0 0
        %3260 = vmatpush1.bf16.msra.mxu0 0
        %3261 = vmatprep.subr.bf16.mxu0 0
        %3262 = vmatpush1.bf16.msra.mxu0 0
        %3263 = vmatprep.subr.bf16.mxu0 0
        %3264 = vmatpush1.bf16.msra.mxu0 0
        %3265 = vmatprep.subr.bf16.mxu0 0
        %3266 = vmatpush1.bf16.msra.mxu0 0
        %3267 = vmatprep.subr.bf16.mxu0 0
        %3268 = vmatpush1.bf16.msra.mxu0 0
        %3269 = vmatprep.subr.bf16.mxu0 0
        %3270 = vmatpush1.bf16.msra.mxu0 0
        %3271 = vmatprep.subr.bf16.mxu0 0
        %3272 = vmatpush1.bf16.msra.mxu0 0
        %3273 = vmatprep.subr.bf16.mxu0 0
        %3274 = vmatpush1.bf16.msra.mxu0 0
        %3275 = vmatprep.mubr.bf16.mxu0 0
        %3276 = vmatmul.mubr.bf16.gmra.mrb[0].mxu0 %v3220
        %v3277 = vpop.f32.mrb[0].mxu0
        %v3278 = vadd.f32 0.0, %v3277
        %v3279 = vpop.f32.mrb[0].mxu0
        %v3280 = vpop.f32.mrb[0].mxu0
        %v3281 = vadd.f32 0.0, %v3280
        %v3282 = vpop.f32.mrb[0].mxu0
        %3283 = vmatprep.mubr.bf16.mxu0 0
        %3284 = vmatmul.mubr.bf16.gmra.mrb[0].mxu0 %v3223
        %v3285 = vpop.f32.mrb[0].mxu0
        %v3286 = vadd.f32 0.0, %v3285
        %v3287 = vpop.f32.mrb[0].mxu0
        %v3288 = vpop.f32.mrb[0].mxu0
        %v3289 = vadd.f32 0.0, %v3288
        %v3290 = vpop.f32.mrb[0].mxu0
        %3291 = vmatprep.mubr.bf16.mxu0 0
        %3292 = vmatmul.mubr.bf16.gmra.mrb[0].mxu0 %v3226
        %v3293 = vpop.f32.mrb[0].mxu0
        %v3294 = vadd.f32 0.0, %v3293
        %v3295 = vpop.f32.mrb[0].mxu0
        %v3296 = vpop.f32.mrb[0].mxu0
        %v3297 = vadd.f32 0.0, %v3296
        %v3298 = vpop.f32.mrb[0].mxu0
        %3299 = vmatprep.mubr.bf16.mxu0 0
        %3300 = vmatmul.mubr.bf16.gmra.mrb[0].mxu0 %v3229
        %v3301 = vpop.f32.mrb[0].mxu0
        %v3302 = vadd.f32 0.0, %v3301
        %v3303 = vpop.f32.mrb[0].mxu0
        %v3304 = vpop.f32.mrb[0].mxu0
        %v3305 = vadd.f32 0.0, %v3304
        %v3306 = vpop.f32.mrb[0].mxu0
        %3307 = vmatprep.mubr.bf16.mxu0 0
        %3308 = vmatmul.mubr.bf16.gmra.mrb[0].mxu0 %v3232
        %v3309 = vpop.f32.mrb[0].mxu0
        %v3310 = vadd.f32 0.0, %v3309
        %v3311 = vpop.f32.mrb[0].mxu0
        %v3312 = vpop.f32.mrb[0].mxu0
        %v3313 = vadd.f32 0.0, %v3312
        %v3314 = vpop.f32.mrb[0].mxu0
        %3315 = vmatprep.mubr.bf16.mxu0 0
        %3316 = vmatmul.mubr.bf16.gmra.mrb[0].mxu0 %v3235
        %v3317 = vpop.f32.mrb[0].mxu0
        %v3318 = vadd.f32 0.0, %v3317
        %v3319 = vpop.f32.mrb[0].mxu0
        %v3320 = vpop.f32.mrb[0].mxu0
        %v3321 = vadd.f32 0.0, %v3320
        %v3322 = vpop.f32.mrb[0].mxu0
        %3323 = vmatprep.mubr.bf16.mxu0 0
        %3324 = vmatmul.mubr.bf16.gmra.mrb[0].mxu0 %v3238
        %v3325 = vpop.f32.mrb[0].mxu0
        %v3326 = vadd.f32 0.0, %v3325
        %v3327 = vpop.f32.mrb[0].mxu0
        %v3328 = vpop.f32.mrb[0].mxu0
        %v3329 = vadd.f32 0.0, %v3328
        %v3330 = vpop.f32.mrb[0].mxu0
        %3331 = vmatprep.mubr.bf16.mxu0 0
        %3332 = vmatmul.mubr.bf16.gmra.mrb[0].mxu0 %v3241
        %v3333 = vpop.f32.mrb[0].mxu0
        %v3334 = vadd.f32 0.0, %v3333
        %v3335 = vpop.f32.mrb[0].mxu0
        %v3336 = vpop.f32.mrb[0].mxu0
        %v3337 = vadd.f32 0.0, %v3336
        %v3338 = vpop.f32.mrb[0].mxu0
        %3339 = vdwg.mxu0
        %3340 = vmax.xlane.f32.xlu0 %v3278
        %v3341 = vpop.xlane.xlu0 %3340
        %3342 = vmax.xlane.f32.xlu0 %v3281
        %v3343 = vpop.xlane.xlu0 %3342
        %3344 = vmax.xlane.f32.xlu0 %v3286
        %v3345 = vpop.xlane.xlu0 %3344
        %3346 = vmax.xlane.f32.xlu0 %v3289
        %v3347 = vpop.xlane.xlu0 %3346
        %3348 = vmax.xlane.f32.xlu0 %v3294
        %v3349 = vpop.xlane.xlu0 %3348
        %3350 = vmax.xlane.f32.xlu0 %v3297
        %v3351 = vpop.xlane.xlu0 %3350
        %3352 = vmax.xlane.f32.xlu0 %v3302
        %v3353 = vpop.xlane.xlu0 %3352
        %3354 = vmax.xlane.f32.xlu0 %v3305
        %v3355 = vpop.xlane.xlu0 %3354
        %3356 = vmax.xlane.f32.xlu0 %v3310
        %v3357 = vpop.xlane.xlu0 %3356
        %3358 = vmax.xlane.f32.xlu0 %v3313
        %v3359 = vpop.xlane.xlu0 %3358
        %3360 = vmax.xlane.f32.xlu0 %v3318
        %v3361 = vpop.xlane.xlu0 %3360
        %3362 = vmax.xlane.f32.xlu0 %v3321
        %v3363 = vpop.xlane.xlu0 %3362
        %3364 = vmax.xlane.f32.xlu0 %v3326
        %v3365 = vpop.xlane.xlu0 %3364
        %3366 = vmax.xlane.f32.xlu0 %v3329
        %v3367 = vpop.xlane.xlu0 %3366
        %3368 = vmax.xlane.f32.xlu0 %v3334
        %v3369 = vpop.xlane.xlu0 %3368
        %3370 = vmax.xlane.f32.xlu0 %v3337
        %v3371 = vpop.xlane.xlu0 %3370
        %v3372 = vsub.f32 %v3278, %v3341
        %v3373 = vsub.f32 %v3281, %v3343
        %v3374 = vsub.f32 %v3286, %v3345
        %v3375 = vsub.f32 %v3289, %v3347
        %v3376 = vsub.f32 %v3294, %v3349
        %v3377 = vsub.f32 %v3297, %v3351
        %v3378 = vsub.f32 %v3302, %v3353
        %v3379 = vsub.f32 %v3305, %v3355
        %v3380 = vsub.f32 %v3310, %v3357
        %v3381 = vsub.f32 %v3313, %v3359
        %v3382 = vsub.f32 %v3318, %v3361
        %v3383 = vsub.f32 %v3321, %v3363
        %v3384 = vsub.f32 %v3326, %v3365
        %v3385 = vsub.f32 %v3329, %v3367
        %v3386 = vsub.f32 %v3334, %v3369
        %v3387 = vsub.f32 %v3337, %v3371
        %v3388 = vmul.f32 %v3372, 1.442695
        %v3389 = vpow.pop %v3388
        %v3390 = vmul.f32 %v3373, 1.442695
        %v3391 = vpow.pop %v3390
        %v3392 = vmul.f32 %v3374, 1.442695
        %v3393 = vpow.pop %v3392
        %v3394 = vmul.f32 %v3375, 1.442695
        %v3395 = vpow.pop %v3394
        %v3396 = vmul.f32 %v3376, 1.442695
        %v3397 = vpow.pop %v3396
        %v3398 = vmul.f32 %v3377, 1.442695
        %v3399 = vpow.pop %v3398
        %v3400 = vmul.f32 %v3378, 1.442695
        %v3401 = vpow.pop %v3400
        %v3402 = vmul.f32 %v3379, 1.442695
        %v3403 = vpow.pop %v3402
        %v3404 = vmul.f32 %v3380, 1.442695
        %v3405 = vpow.pop %v3404
        %v3406 = vmul.f32 %v3381, 1.442695
        %v3407 = vpow.pop %v3406
        %v3408 = vmul.f32 %v3382, 1.442695
        %v3409 = vpow.pop %v3408
        %v3410 = vmul.f32 %v3383, 1.442695
        %v3411 = vpow.pop %v3410
        %v3412 = vmul.f32 %v3384, 1.442695
        %v3413 = vpow.pop %v3412
        %v3414 = vmul.f32 %v3385, 1.442695
        %v3415 = vpow.pop %v3414
        %v3416 = vmul.f32 %v3386, 1.442695
        %v3417 = vpow.pop %v3416
        %v3418 = vmul.f32 %v3387, 1.442695
        %v3419 = vpow.pop %v3418
        %3420 = vadd.xlane.f32.xlu0 %v3389
        %v3421 = vpop.xlane.xlu0 %3420
        %3422 = vadd.xlane.f32.xlu0 %v3391
        %v3423 = vpop.xlane.xlu0 %3422
        %3424 = vadd.xlane.f32.xlu0 %v3393
        %v3425 = vpop.xlane.xlu0 %3424
        %3426 = vadd.xlane.f32.xlu0 %v3395
        %v3427 = vpop.xlane.xlu0 %3426
        %3428 = vadd.xlane.f32.xlu0 %v3397
        %v3429 = vpop.xlane.xlu0 %3428
        %3430 = vadd.xlane.f32.xlu0 %v3399
        %v3431 = vpop.xlane.xlu0 %3430
        %3432 = vadd.xlane.f32.xlu0 %v3401
        %v3433 = vpop.xlane.xlu0 %3432
        %3434 = vadd.xlane.f32.xlu0 %v3403
        %v3435 = vpop.xlane.xlu0 %3434
        %3436 = vadd.xlane.f32.xlu0 %v3405
        %v3437 = vpop.xlane.xlu0 %3436
        %3438 = vadd.xlane.f32.xlu0 %v3407
        %v3439 = vpop.xlane.xlu0 %3438
        %3440 = vadd.xlane.f32.xlu0 %v3409
        %v3441 = vpop.xlane.xlu0 %3440
        %3442 = vadd.xlane.f32.xlu0 %v3411
        %v3443 = vpop.xlane.xlu0 %3442
        %3444 = vadd.xlane.f32.xlu0 %v3413
        %v3445 = vpop.xlane.xlu0 %3444
        %3446 = vadd.xlane.f32.xlu0 %v3415
        %v3447 = vpop.xlane.xlu0 %3446
        %3448 = vadd.xlane.f32.xlu0 %v3417
        %v3449 = vpop.xlane.xlu0 %3448
        %3450 = vadd.xlane.f32.xlu0 %v3419
        %v3451 = vpop.xlane.xlu0 %3450
        %v3452 = vrcp.pop %v3421
        %v3453 = vrcp.pop %v3423
        %v3454 = vrcp.pop %v3425
        %v3455 = vrcp.pop %v3427
        %v3456 = vrcp.pop %v3429
        %v3457 = vrcp.pop %v3431
        %v3458 = vrcp.pop %v3433
        %v3459 = vrcp.pop %v3435
        %v3460 = vrcp.pop %v3437
        %v3461 = vrcp.pop %v3439
        %v3462 = vrcp.pop %v3441
        %v3463 = vrcp.pop %v3443
        %v3464 = vrcp.pop %v3445
        %v3465 = vrcp.pop %v3447
        %v3466 = vrcp.pop %v3449
        %v3467 = vrcp.pop %v3451
        %v3468 = vmul.f32 %v3389, %v3452
        %v3469 = vmul.f32 %v3391, %v3453
        %v3470 = vmul.f32 %v3393, %v3454
        %v3471 = vmul.f32 %v3395, %v3455
        %v3472 = vmul.f32 %v3397, %v3456
        %v3473 = vmul.f32 %v3399, %v3457
        %v3474 = vmul.f32 %v3401, %v3458
        %v3475 = vmul.f32 %v3403, %v3459
        %v3476 = vmul.f32 %v3405, %v3460
        %v3477 = vmul.f32 %v3407, %v3461
        %v3478 = vmul.f32 %v3409, %v3462
        %v3479 = vmul.f32 %v3411, %v3463
        %v3480 = vmul.f32 %v3413, %v3464
        %v3481 = vmul.f32 %v3415, %v3465
        %v3482 = vmul.f32 %v3417, %v3466
        %v3483 = vmul.f32 %v3419, %v3467
        %v3484 = vpack.c.bf16 %v3469, %v3468
        %v3485 = vpack.c.bf16 %v3471, %v3470
        %v3486 = vpack.c.bf16 %v3473, %v3472
        %v3487 = vpack.c.bf16 %v3475, %v3474
        %v3488 = vpack.c.bf16 %v3477, %v3476
        %v3489 = vpack.c.bf16 %v3479, %v3478
        %v3490 = vpack.c.bf16 %v3481, %v3480
        %v3491 = vpack.c.bf16 %v3483, %v3482
        %3492 = vmatprep.subr.bf16.mxu0 0
        %3493 = vmatpush1.bf16.xpose.msra.mxu0 %v3484
        %3494 = vmatprep.subr.bf16.mxu0 0
        %3495 = vmatpush1.bf16.xpose.msra.mxu0 %v3485
        %3496 = vmatprep.subr.bf16.mxu0 0
        %3497 = vmatpush1.bf16.xpose.msra.mxu0 %v3486
        %3498 = vmatprep.subr.bf16.mxu0 0
        %3499 = vmatpush1.bf16.xpose.msra.mxu0 %v3487
        %3500 = vmatprep.subr.bf16.mxu0 0
        %3501 = vmatpush1.bf16.xpose.msra.mxu0 %v3488
        %3502 = vmatprep.subr.bf16.mxu0 0
        %3503 = vmatpush1.bf16.xpose.msra.mxu0 %v3489
        %3504 = vmatprep.subr.bf16.mxu0 0
        %3505 = vmatpush1.bf16.xpose.msra.mxu0 %v3490
        %3506 = vmatprep.subr.bf16.mxu0 0
        %3507 = vmatpush1.bf16.xpose.msra.mxu0 %v3491
        %3508 = vmatprep.subr.bf16.mxu0 0
        %3509 = vmatpush1.bf16.xpose.msra.mxu0 0
        %3510 = vmatprep.subr.bf16.mxu0 0
        %3511 = vmatpush1.bf16.xpose.msra.mxu0 0
        %3512 = vmatprep.subr.bf16.mxu0 0
        %3513 = vmatpush1.bf16.xpose.msra.mxu0 0
        %3514 = vmatprep.subr.bf16.mxu0 0
        %3515 = vmatpush1.bf16.xpose.msra.mxu0 0
        %3516 = vmatprep.subr.bf16.mxu0 0
        %3517 = vmatpush1.bf16.xpose.msra.mxu0 0
        %3518 = vmatprep.subr.bf16.mxu0 0
        %3519 = vmatpush1.bf16.xpose.msra.mxu0 0
        %3520 = vmatprep.subr.bf16.mxu0 0
        %3521 = vmatpush1.bf16.xpose.msra.mxu0 0
        %3522 = vmatprep.subr.bf16.mxu0 0
        %3523 = vmatpush1.bf16.xpose.msra.mxu0 0
        %3524 = vmatprep.mubr.bf16.mxu0 0
        %3525 = vmatmul.mubr.bf16.gmra.mrb[0].mxu0 %v3202
        %v3526 = vpop.f32.mrb[0].mxu0
        %v3527 = vadd.f32 0.0, %v3526
        %v3528 = vpop.f32.mrb[0].mxu0
        %v3529 = vpop.f32.mrb[0].mxu0
        %v3530 = vadd.f32 0.0, %v3529
        %v3531 = vpop.f32.mrb[0].mxu0
        %3532 = vdwg.mxu0
        %v3533 = vadd.f32 %v3527, %v3530
        %3534 = vadd.xlane.f32.xlu0 %v3533
        %v3535 = vpop.xlane.xlu0 %3534
        %v3536 = vrot.slane %v3535, 4
        %v3537 = vadd.f32 %v3535, %v3536
        %v3538 = vrot.slane %v3537, 2
        %v3539 = vadd.f32 %v3537, %v3538
        %v3540 = vrot.slane %v3539, 1
        %v3541 = vadd.f32 %v3539, %v3540
        %s3542 = vtos %v3541
        %v3543 = vrcp.pop 2048.0
        %s3544 = vtos %v3543
        %s3545 = smul.f32 %s3542, %s3544
        %v3546 = vstv %s3545
        %v3547 = vsub.f32 %v3527, %v3546
        %v3548 = vsub.f32 %v3530, %v3546
        %v3549 = vmul.f32 %v3547, %v3547
        %v3550 = vmul.f32 %v3548, %v3548
        %v3551 = vadd.f32 %v3549, %v3550
        %3552 = vadd.xlane.f32.xlu0 %v3551
        %v3553 = vpop.xlane.xlu0 %3552
        %v3554 = vrot.slane %v3553, 4
        %v3555 = vadd.f32 %v3553, %v3554
        %v3556 = vrot.slane %v3555, 2
        %v3557 = vadd.f32 %v3555, %v3556
        %v3558 = vrot.slane %v3557, 1
        %v3559 = vadd.f32 %v3557, %v3558
        %s3560 = vtos %v3559
        %v3561 = vrcp.pop 2048.0
        %s3562 = vtos %v3561
        %s3563 = smul.f32 %s3560, %s3562
        %s3564 = sadd.f32 %s3563, 1e-05
        %v3565 = vstv %s3564
        %v3566 = vrsqrt.pop %v3565
        %s3567 = vtos %v3566
        %v3568 = vstv %s3567
        %v3569 = vmul.f32 %v3547, %v3568
        %v3570 = vmul.f32 %v3548, %v3568
        %v3571 = vpack.c.bf16 %v2753, %v2750
        %v3572 = vpack.c.bf16 %v2785, %v2782
        %v3573 = vpack.c.bf16 %v2817, %v2814
        %3574 = vxpose.xlu0.c.b16.start [1/8] %v3571, 128
        %3575 = vxpose.xlu0.c.b16.cont [2/8] 0, 128
        %3576 = vxpose.xlu0.c.b16.cont [3/8] 0, 128
        %3577 = vxpose.xlu0.c.b16.cont [4/8] 0, 128
        %3578 = vxpose.xlu0.c.b16.cont [5/8] 0, 128
        %3579 = vxpose.xlu0.c.b16.cont [6/8] 0, 128
        %3580 = vxpose.xlu0.c.b16.cont [7/8] 0, 128
        %3581 = vxpose.xlu0.c.b16.end [8/8] 0, 128
        %v3582 = vpop.trf.xlu0
        %v3583 = vpop.trf.xlu0
        %v3584 = vpop.trf.xlu0
        %v3585 = vpop.trf.xlu0
        %v3586 = vpop.trf.xlu0
        %v3587 = vpop.trf.xlu0
        %v3588 = vpop.trf.xlu0
        %v3589 = vpop.trf.xlu0
        %v3591 = vsel %vm2847, %v3582, 0
        %v3594 = vsel %vm2847, %v3583, 0
        %v3597 = vsel %vm2847, %v3584, 0
        %v3600 = vsel %vm2847, %v3585, 0
        %v3603 = vsel %vm2847, %v3586, 0
        %v3606 = vsel %vm2847, %v3587, 0
        %v3609 = vsel %vm2847, %v3588, 0
        %v3612 = vsel %vm2847, %v3589, 0
        %3614 = vmatprep.subr.bf16.mxu0 0
        %3615 = vmatpush1.bf16.msra.mxu0 %v3572
        %3616 = vmatprep.subr.bf16.mxu0 0
        %3617 = vmatpush1.bf16.msra.mxu0 0
        %3618 = vmatprep.subr.bf16.mxu0 0
        %3619 = vmatpush1.bf16.msra.mxu0 0
        %3620 = vmatprep.subr.bf16.mxu0 0
        %3621 = vmatpush1.bf16.msra.mxu0 0
        %3622 = vmatprep.subr.bf16.mxu0 0
        %3623 = vmatpush1.bf16.msra.mxu0 0
        %3624 = vmatprep.subr.bf16.mxu0 0
        %3625 = vmatpush1.bf16.msra.mxu0 0
        %3626 = vmatprep.subr.bf16.mxu0 0
        %3627 = vmatpush1.bf16.msra.mxu0 0
        %3628 = vmatprep.subr.bf16.mxu0 0
        %3629 = vmatpush1.bf16.msra.mxu0 0
        %3630 = vmatprep.subr.bf16.mxu0 0
        %3631 = vmatpush1.bf16.msra.mxu0 0
        %3632 = vmatprep.subr.bf16.mxu0 0
        %3633 = vmatpush1.bf16.msra.mxu0 0
        %3634 = vmatprep.subr.bf16.mxu0 0
        %3635 = vmatpush1.bf16.msra.mxu0 0
        %3636 = vmatprep.subr.bf16.mxu0 0
        %3637 = vmatpush1.bf16.msra.mxu0 0
        %3638 = vmatprep.subr.bf16.mxu0 0
        %3639 = vmatpush1.bf16.msra.mxu0 0
        %3640 = vmatprep.subr.bf16.mxu0 0
        %3641 = vmatpush1.bf16.msra.mxu0 0
        %3642 = vmatprep.subr.bf16.mxu0 0
        %3643 = vmatpush1.bf16.msra.mxu0 0
        %3644 = vmatprep.subr.bf16.mxu0 0
        %3645 = vmatpush1.bf16.msra.mxu0 0
        %3646 = vmatprep.mubr.bf16.mxu0 0
        %3647 = vmatmul.mubr.bf16.gmra.mrb[0].mxu0 %v3591
        %v3648 = vpop.f32.mrb[0].mxu0
        %v3649 = vadd.f32 0.0, %v3648
        %v3650 = vpop.f32.mrb[0].mxu0
        %v3651 = vpop.f32.mrb[0].mxu0
        %v3652 = vadd.f32 0.0, %v3651
        %v3653 = vpop.f32.mrb[0].mxu0
        %3654 = vmatprep.mubr.bf16.mxu0 0
        %3655 = vmatmul.mubr.bf16.gmra.mrb[0].mxu0 %v3594
        %v3656 = vpop.f32.mrb[0].mxu0
        %v3657 = vadd.f32 0.0, %v3656
        %v3658 = vpop.f32.mrb[0].mxu0
        %v3659 = vpop.f32.mrb[0].mxu0
        %v3660 = vadd.f32 0.0, %v3659
        %v3661 = vpop.f32.mrb[0].mxu0
        %3662 = vmatprep.mubr.bf16.mxu0 0
        %3663 = vmatmul.mubr.bf16.gmra.mrb[0].mxu0 %v3597
        %v3664 = vpop.f32.mrb[0].mxu0
        %v3665 = vadd.f32 0.0, %v3664
        %v3666 = vpop.f32.mrb[0].mxu0
        %v3667 = vpop.f32.mrb[0].mxu0
        %v3668 = vadd.f32 0.0, %v3667
        %v3669 = vpop.f32.mrb[0].mxu0
        %3670 = vmatprep.mubr.bf16.mxu0 0
        %3671 = vmatmul.mubr.bf16.gmra.mrb[0].mxu0 %v3600
        %v3672 = vpop.f32.mrb[0].mxu0
        %v3673 = vadd.f32 0.0, %v3672
        %v3674 = vpop.f32.mrb[0].mxu0
        %v3675 = vpop.f32.mrb[0].mxu0
        %v3676 = vadd.f32 0.0, %v3675
        %v3677 = vpop.f32.mrb[0].mxu0
        %3678 = vmatprep.mubr.bf16.mxu0 0
        %3679 = vmatmul.mubr.bf16.gmra.mrb[0].mxu0 %v3603
        %v3680 = vpop.f32.mrb[0].mxu0
        %v3681 = vadd.f32 0.0, %v3680
        %v3682 = vpop.f32.mrb[0].mxu0
        %v3683 = vpop.f32.mrb[0].mxu0
        %v3684 = vadd.f32 0.0, %v3683
        %v3685 = vpop.f32.mrb[0].mxu0
        %3686 = vmatprep.mubr.bf16.mxu0 0
        %3687 = vmatmul.mubr.bf16.gmra.mrb[0].mxu0 %v3606
        %v3688 = vpop.f32.mrb[0].mxu0
        %v3689 = vadd.f32 0.0, %v3688
        %v3690 = vpop.f32.mrb[0].mxu0
        %v3691 = vpop.f32.mrb[0].mxu0
        %v3692 = vadd.f32 0.0, %v3691
        %v3693 = vpop.f32.mrb[0].mxu0
        %3694 = vmatprep.mubr.bf16.mxu0 0
        %3695 = vmatmul.mubr.bf16.gmra.mrb[0].mxu0 %v3609
        %v3696 = vpop.f32.mrb[0].mxu0
        %v3697 = vadd.f32 0.0, %v3696
        %v3698 = vpop.f32.mrb[0].mxu0
        %v3699 = vpop.f32.mrb[0].mxu0
        %v3700 = vadd.f32 0.0, %v3699
        %v3701 = vpop.f32.mrb[0].mxu0
        %3702 = vmatprep.mubr.bf16.mxu0 0
        %3703 = vmatmul.mubr.bf16.gmra.mrb[0].mxu0 %v3612
        %v3704 = vpop.f32.mrb[0].mxu0
        %v3705 = vadd.f32 0.0, %v3704
        %v3706 = vpop.f32.mrb[0].mxu0
        %v3707 = vpop.f32.mrb[0].mxu0
        %v3708 = vadd.f32 0.0, %v3707
        %v3709 = vpop.f32.mrb[0].mxu0
        %3710 = vdwg.mxu0
        %3711 = vmax.xlane.f32.xlu0 %v3649
        %v3712 = vpop.xlane.xlu0 %3711
        %3713 = vmax.xlane.f32.xlu0 %v3652
        %v3714 = vpop.xlane.xlu0 %3713
        %3715 = vmax.xlane.f32.xlu0 %v3657
        %v3716 = vpop.xlane.xlu0 %3715
        %3717 = vmax.xlane.f32.xlu0 %v3660
        %v3718 = vpop.xlane.xlu0 %3717
        %3719 = vmax.xlane.f32.xlu0 %v3665
        %v3720 = vpop.xlane.xlu0 %3719
        %3721 = vmax.xlane.f32.xlu0 %v3668
        %v3722 = vpop.xlane.xlu0 %3721
        %3723 = vmax.xlane.f32.xlu0 %v3673
        %v3724 = vpop.xlane.xlu0 %3723
        %3725 = vmax.xlane.f32.xlu0 %v3676
        %v3726 = vpop.xlane.xlu0 %3725
        %3727 = vmax.xlane.f32.xlu0 %v3681
        %v3728 = vpop.xlane.xlu0 %3727
        %3729 = vmax.xlane.f32.xlu0 %v3684
        %v3730 = vpop.xlane.xlu0 %3729
        %3731 = vmax.xlane.f32.xlu0 %v3689
        %v3732 = vpop.xlane.xlu0 %3731
        %3733 = vmax.xlane.f32.xlu0 %v3692
        %v3734 = vpop.xlane.xlu0 %3733
        %3735 = vmax.xlane.f32.xlu0 %v3697
        %v3736 = vpop.xlane.xlu0 %3735
        %3737 = vmax.xlane.f32.xlu0 %v3700
        %v3738 = vpop.xlane.xlu0 %3737
        %3739 = vmax.xlane.f32.xlu0 %v3705
        %v3740 = vpop.xlane.xlu0 %3739
        %3741 = vmax.xlane.f32.xlu0 %v3708
        %v3742 = vpop.xlane.xlu0 %3741
        %v3743 = vsub.f32 %v3649, %v3712
        %v3744 = vsub.f32 %v3652, %v3714
        %v3745 = vsub.f32 %v3657, %v3716
        %v3746 = vsub.f32 %v3660, %v3718
        %v3747 = vsub.f32 %v3665, %v3720
        %v3748 = vsub.f32 %v3668, %v3722
        %v3749 = vsub.f32 %v3673, %v3724
        %v3750 = vsub.f32 %v3676, %v3726
        %v3751 = vsub.f32 %v3681, %v3728
        %v3752 = vsub.f32 %v3684, %v3730
        %v3753 = vsub.f32 %v3689, %v3732
        %v3754 = vsub.f32 %v3692, %v3734
        %v3755 = vsub.f32 %v3697, %v3736
        %v3756 = vsub.f32 %v3700, %v3738
        %v3757 = vsub.f32 %v3705, %v3740
        %v3758 = vsub.f32 %v3708, %v3742
        %v3759 = vmul.f32 %v3743, 1.442695
        %v3760 = vpow.pop %v3759
        %v3761 = vmul.f32 %v3744, 1.442695
        %v3762 = vpow.pop %v3761
        %v3763 = vmul.f32 %v3745, 1.442695
        %v3764 = vpow.pop %v3763
        %v3765 = vmul.f32 %v3746, 1.442695
        %v3766 = vpow.pop %v3765
        %v3767 = vmul.f32 %v3747, 1.442695
        %v3768 = vpow.pop %v3767
        %v3769 = vmul.f32 %v3748, 1.442695
        %v3770 = vpow.pop %v3769
        %v3771 = vmul.f32 %v3749, 1.442695
        %v3772 = vpow.pop %v3771
        %v3773 = vmul.f32 %v3750, 1.442695
        %v3774 = vpow.pop %v3773
        %v3775 = vmul.f32 %v3751, 1.442695
        %v3776 = vpow.pop %v3775
        %v3777 = vmul.f32 %v3752, 1.442695
        %v3778 = vpow.pop %v3777
        %v3779 = vmul.f32 %v3753, 1.442695
        %v3780 = vpow.pop %v3779
        %v3781 = vmul.f32 %v3754, 1.442695
        %v3782 = vpow.pop %v3781
        %v3783 = vmul.f32 %v3755, 1.442695
        %v3784 = vpow.pop %v3783
        %v3785 = vmul.f32 %v3756, 1.442695
        %v3786 = vpow.pop %v3785
        %v3787 = vmul.f32 %v3757, 1.442695
        %v3788 = vpow.pop %v3787
        %v3789 = vmul.f32 %v3758, 1.442695
        %v3790 = vpow.pop %v3789
        %3791 = vadd.xlane.f32.xlu0 %v3760
        %v3792 = vpop.xlane.xlu0 %3791
        %3793 = vadd.xlane.f32.xlu0 %v3762
        %v3794 = vpop.xlane.xlu0 %3793
        %3795 = vadd.xlane.f32.xlu0 %v3764
        %v3796 = vpop.xlane.xlu0 %3795
        %3797 = vadd.xlane.f32.xlu0 %v3766
        %v3798 = vpop.xlane.xlu0 %3797
        %3799 = vadd.xlane.f32.xlu0 %v3768
        %v3800 = vpop.xlane.xlu0 %3799
        %3801 = vadd.xlane.f32.xlu0 %v3770
        %v3802 = vpop.xlane.xlu0 %3801
        %3803 = vadd.xlane.f32.xlu0 %v3772
        %v3804 = vpop.xlane.xlu0 %3803
        %3805 = vadd.xlane.f32.xlu0 %v3774
        %v3806 = vpop.xlane.xlu0 %3805
        %3807 = vadd.xlane.f32.xlu0 %v3776
        %v3808 = vpop.xlane.xlu0 %3807
        %3809 = vadd.xlane.f32.xlu0 %v3778
        %v3810 = vpop.xlane.xlu0 %3809
        %3811 = vadd.xlane.f32.xlu0 %v3780
        %v3812 = vpop.xlane.xlu0 %3811
        %3813 = vadd.xlane.f32.xlu0 %v3782
        %v3814 = vpop.xlane.xlu0 %3813
        %3815 = vadd.xlane.f32.xlu0 %v3784
        %v3816 = vpop.xlane.xlu0 %3815
        %3817 = vadd.xlane.f32.xlu0 %v3786
        %v3818 = vpop.xlane.xlu0 %3817
        %3819 = vadd.xlane.f32.xlu0 %v3788
        %v3820 = vpop.xlane.xlu0 %3819
        %3821 = vadd.xlane.f32.xlu0 %v3790
        %v3822 = vpop.xlane.xlu0 %3821
        %v3823 = vrcp.pop %v3792
        %v3824 = vrcp.pop %v3794
        %v3825 = vrcp.pop %v3796
        %v3826 = vrcp.pop %v3798
        %v3827 = vrcp.pop %v3800
        %v3828 = vrcp.pop %v3802
        %v3829 = vrcp.pop %v3804
        %v3830 = vrcp.pop %v3806
        %v3831 = vrcp.pop %v3808
        %v3832 = vrcp.pop %v3810
        %v3833 = vrcp.pop %v3812
        %v3834 = vrcp.pop %v3814
        %v3835 = vrcp.pop %v3816
        %v3836 = vrcp.pop %v3818
        %v3837 = vrcp.pop %v3820
        %v3838 = vrcp.pop %v3822
        %v3839 = vmul.f32 %v3760, %v3823
        %v3840 = vmul.f32 %v3762, %v3824
        %v3841 = vmul.f32 %v3764, %v3825
        %v3842 = vmul.f32 %v3766, %v3826
        %v3843 = vmul.f32 %v3768, %v3827
        %v3844 = vmul.f32 %v3770, %v3828
        %v3845 = vmul.f32 %v3772, %v3829
        %v3846 = vmul.f32 %v3774, %v3830
        %v3847 = vmul.f32 %v3776, %v3831
        %v3848 = vmul.f32 %v3778, %v3832
        %v3849 = vmul.f32 %v3780, %v3833
        %v3850 = vmul.f32 %v3782, %v3834
        %v3851 = vmul.f32 %v3784, %v3835
        %v3852 = vmul.f32 %v3786, %v3836
        %v3853 = vmul.f32 %v3788, %v3837
        %v3854 = vmul.f32 %v3790, %v3838
        %v3855 = vpack.c.bf16 %v3840, %v3839
        %v3856 = vpack.c.bf16 %v3842, %v3841
        %v3857 = vpack.c.bf16 %v3844, %v3843
        %v3858 = vpack.c.bf16 %v3846, %v3845
        %v3859 = vpack.c.bf16 %v3848, %v3847
        %v3860 = vpack.c.bf16 %v3850, %v3849
        %v3861 = vpack.c.bf16 %v3852, %v3851
        %v3862 = vpack.c.bf16 %v3854, %v3853
        %3863 = vmatprep.subr.bf16.mxu0 0
        %3864 = vmatpush1.bf16.xpose.msra.mxu0 %v3855
        %3865 = vmatprep.subr.bf16.mxu0 0
        %3866 = vmatpush1.bf16.xpose.msra.mxu0 %v3856
        %3867 = vmatprep.subr.bf16.mxu0 0
        %3868 = vmatpush1.bf16.xpose.msra.mxu0 %v3857
        %3869 = vmatprep.subr.bf16.mxu0 0
        %3870 = vmatpush1.bf16.xpose.msra.mxu0 %v3858
        %3871 = vmatprep.subr.bf16.mxu0 0
        %3872 = vmatpush1.bf16.xpose.msra.mxu0 %v3859
        %3873 = vmatprep.subr.bf16.mxu0 0
        %3874 = vmatpush1.bf16.xpose.msra.mxu0 %v3860
        %3875 = vmatprep.subr.bf16.mxu0 0
        %3876 = vmatpush1.bf16.xpose.msra.mxu0 %v3861
        %3877 = vmatprep.subr.bf16.mxu0 0
        %3878 = vmatpush1.bf16.xpose.msra.mxu0 %v3862
        %3879 = vmatprep.subr.bf16.mxu0 0
        %3880 = vmatpush1.bf16.xpose.msra.mxu0 0
        %3881 = vmatprep.subr.bf16.mxu0 0
        %3882 = vmatpush1.bf16.xpose.msra.mxu0 0
        %3883 = vmatprep.subr.bf16.mxu0 0
        %3884 = vmatpush1.bf16.xpose.msra.mxu0 0
        %3885 = vmatprep.subr.bf16.mxu0 0
        %3886 = vmatpush1.bf16.xpose.msra.mxu0 0
        %3887 = vmatprep.subr.bf16.mxu0 0
        %3888 = vmatpush1.bf16.xpose.msra.mxu0 0
        %3889 = vmatprep.subr.bf16.mxu0 0
        %3890 = vmatpush1.bf16.xpose.msra.mxu0 0
        %3891 = vmatprep.subr.bf16.mxu0 0
        %3892 = vmatpush1.bf16.xpose.msra.mxu0 0
        %3893 = vmatprep.subr.bf16.mxu0 0
        %3894 = vmatpush1.bf16.xpose.msra.mxu0 0
        %3895 = vmatprep.mubr.bf16.mxu0 0
        %3896 = vmatmul.mubr.bf16.gmra.mrb[0].mxu0 %v3573
        %v3897 = vpop.f32.mrb[0].mxu0
        %v3898 = vadd.f32 0.0, %v3897
        %v3899 = vpop.f32.mrb[0].mxu0
        %v3900 = vpop.f32.mrb[0].mxu0
        %v3901 = vadd.f32 0.0, %v3900
        %v3902 = vpop.f32.mrb[0].mxu0
        %3903 = vdwg.mxu0
        %v3904 = vadd.f32 %v3898, %v3901
        %3905 = vadd.xlane.f32.xlu0 %v3904
        %v3906 = vpop.xlane.xlu0 %3905
        %v3907 = vrot.slane %v3906, 4
        %v3908 = vadd.f32 %v3906, %v3907
        %v3909 = vrot.slane %v3908, 2
        %v3910 = vadd.f32 %v3908, %v3909
        %v3911 = vrot.slane %v3910, 1
        %v3912 = vadd.f32 %v3910, %v3911
        %s3913 = vtos %v3912
        %v3914 = vrcp.pop 2048.0
        %s3915 = vtos %v3914
        %s3916 = smul.f32 %s3913, %s3915
        %v3917 = vstv %s3916
        %v3918 = vsub.f32 %v3898, %v3917
        %v3919 = vsub.f32 %v3901, %v3917
        %v3920 = vmul.f32 %v3918, %v3918
        %v3921 = vmul.f32 %v3919, %v3919
        %v3922 = vadd.f32 %v3920, %v3921
        %3923 = vadd.xlane.f32.xlu0 %v3922
        %v3924 = vpop.xlane.xlu0 %3923
        %v3925 = vrot.slane %v3924, 4
        %v3926 = vadd.f32 %v3924, %v3925
        %v3927 = vrot.slane %v3926, 2
        %v3928 = vadd.f32 %v3926, %v3927
        %v3929 = vrot.slane %v3928, 1
        %v3930 = vadd.f32 %v3928, %v3929
        %s3931 = vtos %v3930
        %v3932 = vrcp.pop 2048.0
        %s3933 = vtos %v3932
        %s3934 = smul.f32 %s3931, %s3933
        %s3935 = sadd.f32 %s3934, 1e-05
        %v3936 = vstv %s3935
        %v3937 = vrsqrt.pop %v3936
        %s3938 = vtos %v3937
        %v3939 = vstv %s3938
        %v3940 = vmul.f32 %v3918, %v3939
        %v3941 = vmul.f32 %v3919, %v3939
        %v3942 = vpack.c.bf16 %v2761, %v2758
        %v3943 = vpack.c.bf16 %v2793, %v2790
        %v3944 = vpack.c.bf16 %v2825, %v2822
        %3945 = vxpose.xlu0.c.b16.start [1/8] %v3942, 128
        %3946 = vxpose.xlu0.c.b16.cont [2/8] 0, 128
        %3947 = vxpose.xlu0.c.b16.cont [3/8] 0, 128
        %3948 = vxpose.xlu0.c.b16.cont [4/8] 0, 128
        %3949 = vxpose.xlu0.c.b16.cont [5/8] 0, 128
        %3950 = vxpose.xlu0.c.b16.cont [6/8] 0, 128
        %3951 = vxpose.xlu0.c.b16.cont [7/8] 0, 128
        %3952 = vxpose.xlu0.c.b16.end [8/8] 0, 128
        %v3953 = vpop.trf.xlu0
        %v3954 = vpop.trf.xlu0
        %v3955 = vpop.trf.xlu0
        %v3956 = vpop.trf.xlu0
        %v3957 = vpop.trf.xlu0
        %v3958 = vpop.trf.xlu0
        %v3959 = vpop.trf.xlu0
        %v3960 = vpop.trf.xlu0
        %v3962 = vsel %vm2847, %v3953, 0
        %v3965 = vsel %vm2847, %v3954, 0
        %v3968 = vsel %vm2847, %v3955, 0
        %v3971 = vsel %vm2847, %v3956, 0
        %v3974 = vsel %vm2847, %v3957, 0
        %v3977 = vsel %vm2847, %v3958, 0
        %v3980 = vsel %vm2847, %v3959, 0
        %v3983 = vsel %vm2847, %v3960, 0
        %3985 = vmatprep.subr.bf16.mxu0 0
        %3986 = vmatpush1.bf16.msra.mxu0 %v3943
        %3987 = vmatprep.subr.bf16.mxu0 0
        %3988 = vmatpush1.bf16.msra.mxu0 0
        %3989 = vmatprep.subr.bf16.mxu0 0
        %3990 = vmatpush1.bf16.msra.mxu0 0
        %3991 = vmatprep.subr.bf16.mxu0 0
        %3992 = vmatpush1.bf16.msra.mxu0 0
        %3993 = vmatprep.subr.bf16.mxu0 0
        %3994 = vmatpush1.bf16.msra.mxu0 0
        %3995 = vmatprep.subr.bf16.mxu0 0
        %3996 = vmatpush1.bf16.msra.mxu0 0
        %3997 = vmatprep.subr.bf16.mxu0 0
        %3998 = vmatpush1.bf16.msra.mxu0 0
        %3999 = vmatprep.subr.bf16.mxu0 0
        %4000 = vmatpush1.bf16.msra.mxu0 0
        %4001 = vmatprep.subr.bf16.mxu0 0
        %4002 = vmatpush1.bf16.msra.mxu0 0
        %4003 = vmatprep.subr.bf16.mxu0 0
        %4004 = vmatpush1.bf16.msra.mxu0 0
        %4005 = vmatprep.subr.bf16.mxu0 0
        %4006 = vmatpush1.bf16.msra.mxu0 0
        %4007 = vmatprep.subr.bf16.mxu0 0
        %4008 = vmatpush1.bf16.msra.mxu0 0
        %4009 = vmatprep.subr.bf16.mxu0 0
        %4010 = vmatpush1.bf16.msra.mxu0 0
        %4011 = vmatprep.subr.bf16.mxu0 0
        %4012 = vmatpush1.bf16.msra.mxu0 0
        %4013 = vmatprep.subr.bf16.mxu0 0
        %4014 = vmatpush1.bf16.msra.mxu0 0
        %4015 = vmatprep.subr.bf16.mxu0 0
        %4016 = vmatpush1.bf16.msra.mxu0 0
        %4017 = vmatprep.mubr.bf16.mxu0 0
        %4018 = vmatmul.mubr.bf16.gmra.mrb[0].mxu0 %v3962
        %v4019 = vpop.f32.mrb[0].mxu0
        %v4020 = vadd.f32 0.0, %v4019
        %v4021 = vpop.f32.mrb[0].mxu0
        %v4022 = vpop.f32.mrb[0].mxu0
        %v4023 = vadd.f32 0.0, %v4022
        %v4024 = vpop.f32.mrb[0].mxu0
        %4025 = vmatprep.mubr.bf16.mxu0 0
        %4026 = vmatmul.mubr.bf16.gmra.mrb[0].mxu0 %v3965
        %v4027 = vpop.f32.mrb[0].mxu0
        %v4028 = vadd.f32 0.0, %v4027
        %v4029 = vpop.f32.mrb[0].mxu0
        %v4030 = vpop.f32.mrb[0].mxu0
        %v4031 = vadd.f32 0.0, %v4030
        %v4032 = vpop.f32.mrb[0].mxu0
        %4033 = vmatprep.mubr.bf16.mxu0 0
        %4034 = vmatmul.mubr.bf16.gmra.mrb[0].mxu0 %v3968
        %v4035 = vpop.f32.mrb[0].mxu0
        %v4036 = vadd.f32 0.0, %v4035
        %v4037 = vpop.f32.mrb[0].mxu0
        %v4038 = vpop.f32.mrb[0].mxu0
        %v4039 = vadd.f32 0.0, %v4038
        %v4040 = vpop.f32.mrb[0].mxu0
        %4041 = vmatprep.mubr.bf16.mxu0 0
        %4042 = vmatmul.mubr.bf16.gmra.mrb[0].mxu0 %v3971
        %v4043 = vpop.f32.mrb[0].mxu0
        %v4044 = vadd.f32 0.0, %v4043
        %v4045 = vpop.f32.mrb[0].mxu0
        %v4046 = vpop.f32.mrb[0].mxu0
        %v4047 = vadd.f32 0.0, %v4046
        %v4048 = vpop.f32.mrb[0].mxu0
        %4049 = vmatprep.mubr.bf16.mxu0 0
        %4050 = vmatmul.mubr.bf16.gmra.mrb[0].mxu0 %v3974
        %v4051 = vpop.f32.mrb[0].mxu0
        %v4052 = vadd.f32 0.0, %v4051
        %v4053 = vpop.f32.mrb[0].mxu0
        %v4054 = vpop.f32.mrb[0].mxu0
        %v4055 = vadd.f32 0.0, %v4054
        %v4056 = vpop.f32.mrb[0].mxu0
        %4057 = vmatprep.mubr.bf16.mxu0 0
        %4058 = vmatmul.mubr.bf16.gmra.mrb[0].mxu0 %v3977
        %v4059 = vpop.f32.mrb[0].mxu0
        %v4060 = vadd.f32 0.0, %v4059
        %v4061 = vpop.f32.mrb[0].mxu0
        %v4062 = vpop.f32.mrb[0].mxu0
        %v4063 = vadd.f32 0.0, %v4062
        %v4064 = vpop.f32.mrb[0].mxu0
        %4065 = vmatprep.mubr.bf16.mxu0 0
        %4066 = vmatmul.mubr.bf16.gmra.mrb[0].mxu0 %v3980
        %v4067 = vpop.f32.mrb[0].mxu0
        %v4068 = vadd.f32 0.0, %v4067
        %v4069 = vpop.f32.mrb[0].mxu0
        %v4070 = vpop.f32.mrb[0].mxu0
        %v4071 = vadd.f32 0.0, %v4070
        %v4072 = vpop.f32.mrb[0].mxu0
        %4073 = vmatprep.mubr.bf16.mxu0 0
        %4074 = vmatmul.mubr.bf16.gmra.mrb[0].mxu0 %v3983
        %v4075 = vpop.f32.mrb[0].mxu0
        %v4076 = vadd.f32 0.0, %v4075
        %v4077 = vpop.f32.mrb[0].mxu0
        %v4078 = vpop.f32.mrb[0].mxu0
        %v4079 = vadd.f32 0.0, %v4078
        %v4080 = vpop.f32.mrb[0].mxu0
        %4081 = vdwg.mxu0
        %4082 = vmax.xlane.f32.xlu0 %v4020
        %v4083 = vpop.xlane.xlu0 %4082
        %4084 = vmax.xlane.f32.xlu0 %v4023
        %v4085 = vpop.xlane.xlu0 %4084
        %4086 = vmax.xlane.f32.xlu0 %v4028
        %v4087 = vpop.xlane.xlu0 %4086
        %4088 = vmax.xlane.f32.xlu0 %v4031
        %v4089 = vpop.xlane.xlu0 %4088
        %4090 = vmax.xlane.f32.xlu0 %v4036
        %v4091 = vpop.xlane.xlu0 %4090
        %4092 = vmax.xlane.f32.xlu0 %v4039
        %v4093 = vpop.xlane.xlu0 %4092
        %4094 = vmax.xlane.f32.xlu0 %v4044
        %v4095 = vpop.xlane.xlu0 %4094
        %4096 = vmax.xlane.f32.xlu0 %v4047
        %v4097 = vpop.xlane.xlu0 %4096
        %4098 = vmax.xlane.f32.xlu0 %v4052
        %v4099 = vpop.xlane.xlu0 %4098
        %4100 = vmax.xlane.f32.xlu0 %v4055
        %v4101 = vpop.xlane.xlu0 %4100
        %4102 = vmax.xlane.f32.xlu0 %v4060
        %v4103 = vpop.xlane.xlu0 %4102
        %4104 = vmax.xlane.f32.xlu0 %v4063
        %v4105 = vpop.xlane.xlu0 %4104
        %4106 = vmax.xlane.f32.xlu0 %v4068
        %v4107 = vpop.xlane.xlu0 %4106
        %4108 = vmax.xlane.f32.xlu0 %v4071
        %v4109 = vpop.xlane.xlu0 %4108
        %4110 = vmax.xlane.f32.xlu0 %v4076
        %v4111 = vpop.xlane.xlu0 %4110
        %4112 = vmax.xlane.f32.xlu0 %v4079
        %v4113 = vpop.xlane.xlu0 %4112
        %v4114 = vsub.f32 %v4020, %v4083
        %v4115 = vsub.f32 %v4023, %v4085
        %v4116 = vsub.f32 %v4028, %v4087
        %v4117 = vsub.f32 %v4031, %v4089
        %v4118 = vsub.f32 %v4036, %v4091
        %v4119 = vsub.f32 %v4039, %v4093
        %v4120 = vsub.f32 %v4044, %v4095
        %v4121 = vsub.f32 %v4047, %v4097
        %v4122 = vsub.f32 %v4052, %v4099
        %v4123 = vsub.f32 %v4055, %v4101
        %v4124 = vsub.f32 %v4060, %v4103
        %v4125 = vsub.f32 %v4063, %v4105
        %v4126 = vsub.f32 %v4068, %v4107
        %v4127 = vsub.f32 %v4071, %v4109
        %v4128 = vsub.f32 %v4076, %v4111
        %v4129 = vsub.f32 %v4079, %v4113
        %v4130 = vmul.f32 %v4114, 1.442695
        %v4131 = vpow.pop %v4130
        %v4132 = vmul.f32 %v4115, 1.442695
        %v4133 = vpow.pop %v4132
        %v4134 = vmul.f32 %v4116, 1.442695
        %v4135 = vpow.pop %v4134
        %v4136 = vmul.f32 %v4117, 1.442695
        %v4137 = vpow.pop %v4136
        %v4138 = vmul.f32 %v4118, 1.442695
        %v4139 = vpow.pop %v4138
        %v4140 = vmul.f32 %v4119, 1.442695
        %v4141 = vpow.pop %v4140
        %v4142 = vmul.f32 %v4120, 1.442695
        %v4143 = vpow.pop %v4142
        %v4144 = vmul.f32 %v4121, 1.442695
        %v4145 = vpow.pop %v4144
        %v4146 = vmul.f32 %v4122, 1.442695
        %v4147 = vpow.pop %v4146
        %v4148 = vmul.f32 %v4123, 1.442695
        %v4149 = vpow.pop %v4148
        %v4150 = vmul.f32 %v4124, 1.442695
        %v4151 = vpow.pop %v4150
        %v4152 = vmul.f32 %v4125, 1.442695
        %v4153 = vpow.pop %v4152
        %v4154 = vmul.f32 %v4126, 1.442695
        %v4155 = vpow.pop %v4154
        %v4156 = vmul.f32 %v4127, 1.442695
        %v4157 = vpow.pop %v4156
        %v4158 = vmul.f32 %v4128, 1.442695
        %v4159 = vpow.pop %v4158
        %v4160 = vmul.f32 %v4129, 1.442695
        %v4161 = vpow.pop %v4160
        %4162 = vadd.xlane.f32.xlu0 %v4131
        %v4163 = vpop.xlane.xlu0 %4162
        %4164 = vadd.xlane.f32.xlu0 %v4133
        %v4165 = vpop.xlane.xlu0 %4164
        %4166 = vadd.xlane.f32.xlu0 %v4135
        %v4167 = vpop.xlane.xlu0 %4166
        %4168 = vadd.xlane.f32.xlu0 %v4137
        %v4169 = vpop.xlane.xlu0 %4168
        %4170 = vadd.xlane.f32.xlu0 %v4139
        %v4171 = vpop.xlane.xlu0 %4170
        %4172 = vadd.xlane.f32.xlu0 %v4141
        %v4173 = vpop.xlane.xlu0 %4172
        %4174 = vadd.xlane.f32.xlu0 %v4143
        %v4175 = vpop.xlane.xlu0 %4174
        %4176 = vadd.xlane.f32.xlu0 %v4145
        %v4177 = vpop.xlane.xlu0 %4176
        %4178 = vadd.xlane.f32.xlu0 %v4147
        %v4179 = vpop.xlane.xlu0 %4178
        %4180 = vadd.xlane.f32.xlu0 %v4149
        %v4181 = vpop.xlane.xlu0 %4180
        %4182 = vadd.xlane.f32.xlu0 %v4151
        %v4183 = vpop.xlane.xlu0 %4182
        %4184 = vadd.xlane.f32.xlu0 %v4153
        %v4185 = vpop.xlane.xlu0 %4184
        %4186 = vadd.xlane.f32.xlu0 %v4155
        %v4187 = vpop.xlane.xlu0 %4186
        %4188 = vadd.xlane.f32.xlu0 %v4157
        %v4189 = vpop.xlane.xlu0 %4188
        %4190 = vadd.xlane.f32.xlu0 %v4159
        %v4191 = vpop.xlane.xlu0 %4190
        %4192 = vadd.xlane.f32.xlu0 %v4161
        %v4193 = vpop.xlane.xlu0 %4192
        %v4194 = vrcp.pop %v4163
        %v4195 = vrcp.pop %v4165
        %v4196 = vrcp.pop %v4167
        %v4197 = vrcp.pop %v4169
        %v4198 = vrcp.pop %v4171
        %v4199 = vrcp.pop %v4173
        %v4200 = vrcp.pop %v4175
        %v4201 = vrcp.pop %v4177
        %v4202 = vrcp.pop %v4179
        %v4203 = vrcp.pop %v4181
        %v4204 = vrcp.pop %v4183
        %v4205 = vrcp.pop %v4185
        %v4206 = vrcp.pop %v4187
        %v4207 = vrcp.pop %v4189
        %v4208 = vrcp.pop %v4191
        %v4209 = vrcp.pop %v4193
        %v4210 = vmul.f32 %v4131, %v4194
        %v4211 = vmul.f32 %v4133, %v4195
        %v4212 = vmul.f32 %v4135, %v4196
        %v4213 = vmul.f32 %v4137, %v4197
        %v4214 = vmul.f32 %v4139, %v4198
        %v4215 = vmul.f32 %v4141, %v4199
        %v4216 = vmul.f32 %v4143, %v4200
        %v4217 = vmul.f32 %v4145, %v4201
        %v4218 = vmul.f32 %v4147, %v4202
        %v4219 = vmul.f32 %v4149, %v4203
        %v4220 = vmul.f32 %v4151, %v4204
        %v4221 = vmul.f32 %v4153, %v4205
        %v4222 = vmul.f32 %v4155, %v4206
        %v4223 = vmul.f32 %v4157, %v4207
        %v4224 = vmul.f32 %v4159, %v4208
        %v4225 = vmul.f32 %v4161, %v4209
        %v4226 = vpack.c.bf16 %v4211, %v4210
        %v4227 = vpack.c.bf16 %v4213, %v4212
        %v4228 = vpack.c.bf16 %v4215, %v4214
        %v4229 = vpack.c.bf16 %v4217, %v4216
        %v4230 = vpack.c.bf16 %v4219, %v4218
        %v4231 = vpack.c.bf16 %v4221, %v4220
        %v4232 = vpack.c.bf16 %v4223, %v4222
        %v4233 = vpack.c.bf16 %v4225, %v4224
        %4234 = vmatprep.subr.bf16.mxu0 0
        %4235 = vmatpush1.bf16.xpose.msra.mxu0 %v4226
        %4236 = vmatprep.subr.bf16.mxu0 0
        %4237 = vmatpush1.bf16.xpose.msra.mxu0 %v4227
        %4238 = vmatprep.subr.bf16.mxu0 0
        %4239 = vmatpush1.bf16.xpose.msra.mxu0 %v4228
        %4240 = vmatprep.subr.bf16.mxu0 0
        %4241 = vmatpush1.bf16.xpose.msra.mxu0 %v4229
        %4242 = vmatprep.subr.bf16.mxu0 0
        %4243 = vmatpush1.bf16.xpose.msra.mxu0 %v4230
        %4244 = vmatprep.subr.bf16.mxu0 0
        %4245 = vmatpush1.bf16.xpose.msra.mxu0 %v4231
        %4246 = vmatprep.subr.bf16.mxu0 0
        %4247 = vmatpush1.bf16.xpose.msra.mxu0 %v4232
        %4248 = vmatprep.subr.bf16.mxu0 0
        %4249 = vmatpush1.bf16.xpose.msra.mxu0 %v4233
        %4250 = vmatprep.subr.bf16.mxu0 0
        %4251 = vmatpush1.bf16.xpose.msra.mxu0 0
        %4252 = vmatprep.subr.bf16.mxu0 0
        %4253 = vmatpush1.bf16.xpose.msra.mxu0 0
        %4254 = vmatprep.subr.bf16.mxu0 0
        %4255 = vmatpush1.bf16.xpose.msra.mxu0 0
        %4256 = vmatprep.subr.bf16.mxu0 0
        %4257 = vmatpush1.bf16.xpose.msra.mxu0 0
        %4258 = vmatprep.subr.bf16.mxu0 0
        %4259 = vmatpush1.bf16.xpose.msra.mxu0 0
        %4260 = vmatprep.subr.bf16.mxu0 0
        %4261 = vmatpush1.bf16.xpose.msra.mxu0 0
        %4262 = vmatprep.subr.bf16.mxu0 0
        %4263 = vmatpush1.bf16.xpose.msra.mxu0 0
        %4264 = vmatprep.subr.bf16.mxu0 0
        %4265 = vmatpush1.bf16.xpose.msra.mxu0 0
        %4266 = vmatprep.mubr.bf16.mxu0 0
        %4267 = vmatmul.mubr.bf16.gmra.mrb[0].mxu0 %v3944
        %v4268 = vpop.f32.mrb[0].mxu0
        %v4269 = vadd.f32 0.0, %v4268
        %v4270 = vpop.f32.mrb[0].mxu0
        %v4271 = vpop.f32.mrb[0].mxu0
        %v4272 = vadd.f32 0.0, %v4271
        %v4273 = vpop.f32.mrb[0].mxu0
        %4274 = vdwg.mxu0
        %v4275 = vadd.f32 %v4269, %v4272
        %4276 = vadd.xlane.f32.xlu0 %v4275
        %v4277 = vpop.xlane.xlu0 %4276
        %v4278 = vrot.slane %v4277, 4
        %v4279 = vadd.f32 %v4277, %v4278
        %v4280 = vrot.slane %v4279, 2
        %v4281 = vadd.f32 %v4279, %v4280
        %v4282 = vrot.slane %v4281, 1
        %v4283 = vadd.f32 %v4281, %v4282
        %s4284 = vtos %v4283
        %v4285 = vrcp.pop 2048.0
        %s4286 = vtos %v4285
        %s4287 = smul.f32 %s4284, %s4286
        %v4288 = vstv %s4287
        %v4289 = vsub.f32 %v4269, %v4288
        %v4290 = vsub.f32 %v4272, %v4288
        %v4291 = vmul.f32 %v4289, %v4289
        %v4292 = vmul.f32 %v4290, %v4290
        %v4293 = vadd.f32 %v4291, %v4292
        %4294 = vadd.xlane.f32.xlu0 %v4293
        %v4295 = vpop.xlane.xlu0 %4294
        %v4296 = vrot.slane %v4295, 4
        %v4297 = vadd.f32 %v4295, %v4296
        %v4298 = vrot.slane %v4297, 2
        %v4299 = vadd.f32 %v4297, %v4298
        %v4300 = vrot.slane %v4299, 1
        %v4301 = vadd.f32 %v4299, %v4300
        %s4302 = vtos %v4301
        %v4303 = vrcp.pop 2048.0
        %s4304 = vtos %v4303
        %s4305 = smul.f32 %s4302, %s4304
        %s4306 = sadd.f32 %s4305, 1e-05
        %v4307 = vstv %s4306
        %v4308 = vrsqrt.pop %v4307
        %s4309 = vtos %v4308
        %v4310 = vstv %s4309
        %v4311 = vmul.f32 %v4289, %v4310
        %v4312 = vmul.f32 %v4290, %v4310
        %v4313 = vld [vmem:[%s12] sm:$0xff]
        %v4314 = vld [vmem:[%s12 + $0x8] sm:$0xff]
        %v4315 = vld [vmem:[%s12 + $0x10] sm:$0xff]
        %v4316 = vld [vmem:[%s12 + $0x18] sm:$0xff]
        %v4317 = vld [vmem:[%s12 + $0x20] sm:$0xff]
        %v4318 = vld [vmem:[%s12 + $0x28] sm:$0xff]
        %v4319 = vld [vmem:[%s12 + $0x30] sm:$0xff]
        %v4320 = vld [vmem:[%s12 + $0x38] sm:$0xff]
        %v4321 = vld [vmem:[%s12 + $0x40] sm:$0xff]
        %v4322 = vld [vmem:[%s12 + $0x48] sm:$0xff]
        %v4323 = vld [vmem:[%s12 + $0x50] sm:$0xff]
        %v4324 = vld [vmem:[%s12 + $0x58] sm:$0xff]
        %v4325 = vld [vmem:[%s12 + $0x60] sm:$0xff]
        %v4326 = vld [vmem:[%s12 + $0x68] sm:$0xff]
        %v4327 = vld [vmem:[%s12 + $0x70] sm:$0xff]
        %v4328 = vld [vmem:[%s12 + $0x78] sm:$0xff]
        %4330 = vset.pattern.permute.xlu0 0
        %4331 = vperm.xlu0 %4330, %v4313
        %v4332 = vpop.permute.xlu0 %4331
        %4335 = vset.pattern.permute.xlu0 0
        %4336 = vperm.xlu0 %4335, %v4314
        %v4337 = vpop.permute.xlu0 %4336
        %4340 = vset.pattern.permute.xlu0 0
        %4341 = vperm.xlu0 %4340, %v4315
        %v4342 = vpop.permute.xlu0 %4341
        %4345 = vset.pattern.permute.xlu0 0
        %4346 = vperm.xlu0 %4345, %v4316
        %v4347 = vpop.permute.xlu0 %4346
        %4350 = vset.pattern.permute.xlu0 0
        %4351 = vperm.xlu0 %4350, %v4317
        %v4352 = vpop.permute.xlu0 %4351
        %4355 = vset.pattern.permute.xlu0 0
        %4356 = vperm.xlu0 %4355, %v4318
        %v4357 = vpop.permute.xlu0 %4356
        %4360 = vset.pattern.permute.xlu0 0
        %4361 = vperm.xlu0 %4360, %v4319
        %v4362 = vpop.permute.xlu0 %4361
        %4365 = vset.pattern.permute.xlu0 0
        %4366 = vperm.xlu0 %4365, %v4320
        %v4367 = vpop.permute.xlu0 %4366
        %v4369 = vmul.f32 %v3198, %v4332
        %v4370 = vmul.f32 %v3199, %v4337
        %v4371 = vmul.f32 %v3569, %v4342
        %v4372 = vmul.f32 %v3570, %v4347
        %v4373 = vmul.f32 %v3940, %v4352
        %v4374 = vmul.f32 %v3941, %v4357
        %v4375 = vmul.f32 %v4311, %v4362
        %v4376 = vmul.f32 %v4312, %v4367
        %4378 = vset.pattern.permute.xlu0 0
        %4379 = vperm.xlu0 %4378, %v4321
        %v4380 = vpop.permute.xlu0 %4379
        %4383 = vset.pattern.permute.xlu0 0
        %4384 = vperm.xlu0 %4383, %v4322
        %v4385 = vpop.permute.xlu0 %4384
        %4388 = vset.pattern.permute.xlu0 0
        %4389 = vperm.xlu0 %4388, %v4323
        %v4390 = vpop.permute.xlu0 %4389
        %4393 = vset.pattern.permute.xlu0 0
        %4394 = vperm.xlu0 %4393, %v4324
        %v4395 = vpop.permute.xlu0 %4394
        %4398 = vset.pattern.permute.xlu0 0
        %4399 = vperm.xlu0 %4398, %v4325
        %v4400 = vpop.permute.xlu0 %4399
        %4403 = vset.pattern.permute.xlu0 0
        %4404 = vperm.xlu0 %4403, %v4326
        %v4405 = vpop.permute.xlu0 %4404
        %4408 = vset.pattern.permute.xlu0 0
        %4409 = vperm.xlu0 %4408, %v4327
        %v4410 = vpop.permute.xlu0 %4409
        %4413 = vset.pattern.permute.xlu0 0
        %4414 = vperm.xlu0 %4413, %v4328
        %v4415 = vpop.permute.xlu0 %4414
        %v4417 = vadd.f32 %v4369, %v4380
        %v4418 = vadd.f32 %v4370, %v4385
        %v4419 = vadd.f32 %v4371, %v4390
        %v4420 = vadd.f32 %v4372, %v4395
        %v4421 = vadd.f32 %v4373, %v4400
        %v4422 = vadd.f32 %v4374, %v4405
        %v4423 = vadd.f32 %v4375, %v4410
        %v4424 = vadd.f32 %v4376, %v4415
        %v4425 = vadd.f32 %v4417, %v492
        %v4426 = vadd.f32 %v4418, %v493
        %v4427 = vadd.f32 %v4419, %v494
        %v4428 = vadd.f32 %v4420, %v495
        %v4429 = vadd.f32 %v4421, %v2571
        %v4430 = vadd.f32 %v4422, %v2572
        %v4431 = vadd.f32 %v4423, %v2573
        %v4432 = vadd.f32 %v4424, %v2574
        %v4433 = vpack.c.bf16 %v4426, %v4425
        %v4434 = vpack.c.bf16 %v4428, %v4427
        %v4435 = vpack.c.bf16 %v4430, %v4429
        %v4436 = vpack.c.bf16 %v4432, %v4431
        %4437 = vmatprep.subr.bf16.mxu0 0
        %4438 = vmatpush1.bf16.msra.mxu0 %v4433
        %4439 = vmatprep.subr.bf16.mxu0 0
        %4440 = vmatpush1.bf16.msra.mxu0 %v4434
        %4441 = vmatprep.subr.bf16.mxu0 0
        %4442 = vmatpush1.bf16.msra.mxu0 %v4435
        %4443 = vmatprep.subr.bf16.mxu0 0
        %4444 = vmatpush1.bf16.msra.mxu0 %v4436
        %4445 = vmatprep.subr.bf16.mxu0 0
        %4446 = vmatpush1.bf16.msra.mxu0 0
        %4447 = vmatprep.subr.bf16.mxu0 0
        %4448 = vmatpush1.bf16.msra.mxu0 0
        %4449 = vmatprep.subr.bf16.mxu0 0
        %4450 = vmatpush1.bf16.msra.mxu0 0
        %4451 = vmatprep.subr.bf16.mxu0 0
        %4452 = vmatpush1.bf16.msra.mxu0 0
        %4453 = vmatprep.subr.bf16.mxu0 0
        %4454 = vmatpush1.bf16.msra.mxu0 0
        %4455 = vmatprep.subr.bf16.mxu0 0
        %4456 = vmatpush1.bf16.msra.mxu0 0
        %4457 = vmatprep.subr.bf16.mxu0 0
        %4458 = vmatpush1.bf16.msra.mxu0 0
        %4459 = vmatprep.subr.bf16.mxu0 0
        %4460 = vmatpush1.bf16.msra.mxu0 0
        %4461 = vmatprep.subr.bf16.mxu0 0
        %4462 = vmatpush1.bf16.msra.mxu0 0
        %4463 = vmatprep.subr.bf16.mxu0 0
        %4464 = vmatpush1.bf16.msra.mxu0 0
        %4465 = vmatprep.subr.bf16.mxu0 0
        %4466 = vmatpush1.bf16.msra.mxu0 0
        %4467 = vmatprep.subr.bf16.mxu0 0
        %4468 = vmatpush1.bf16.msra.mxu0 0
        %4469 = vmatprep.mubr.bf16.mxu0 0
        %4470 = vmatmul.mubr.bf16.gmra.mrb[0].mxu0 %v741
        %v4471 = vpop.f32.mrb[0].mxu0
        %v4472 = vadd.f32 %v713, %v4471
        %v4473 = vpop.f32.mrb[0].mxu0
        %v4474 = vpop.f32.mrb[0].mxu0
        %v4475 = vadd.f32 %v718, %v4474
        %v4476 = vpop.f32.mrb[0].mxu0
        %4477 = vmatprep.mubr.bf16.mxu0 0
        %4478 = vmatmul.mubr.bf16.gmra.mrb[0].mxu0 %v744
        %v4479 = vpop.f32.mrb[0].mxu0
        %v4480 = vadd.f32 %v723, %v4479
        %v4481 = vpop.f32.mrb[0].mxu0
        %v4482 = vpop.f32.mrb[0].mxu0
        %v4483 = vadd.f32 %v728, %v4482
        %v4484 = vpop.f32.mrb[0].mxu0
        %4485 = vdwg.mxu0
        %v4486 = vmax.f32 %v4472, 0.0
        %v4487 = vmax.f32 %v4475, 0.0
        %v4488 = vmax.f32 %v4480, 0.0
        %v4489 = vmax.f32 %v4483, 0.0
        %v4490 = vpack.c.bf16 %v4487, %v4486
        %v4491 = vpack.c.bf16 %v4489, %v4488
        %4492 = vmatprep.subr.bf16.mxu0 0
        %4493 = vmatpush1.bf16.msra.mxu0 %v4490
        %4494 = vmatprep.subr.bf16.mxu0 0
        %4495 = vmatpush1.bf16.msra.mxu0 %v4491
        %4496 = vmatprep.subr.bf16.mxu0 0
        %4497 = vmatpush1.bf16.msra.mxu0 0
        %4498 = vmatprep.subr.bf16.mxu0 0
        %4499 = vmatpush1.bf16.msra.mxu0 0
        %4500 = vmatprep.subr.bf16.mxu0 0
        %4501 = vmatpush1.bf16.msra.mxu0 0
        %4502 = vmatprep.subr.bf16.mxu0 0
        %4503 = vmatpush1.bf16.msra.mxu0 0
        %4504 = vmatprep.subr.bf16.mxu0 0
        %4505 = vmatpush1.bf16.msra.mxu0 0
        %4506 = vmatprep.subr.bf16.mxu0 0
        %4507 = vmatpush1.bf16.msra.mxu0 0
        %4508 = vmatprep.subr.bf16.mxu0 0
        %4509 = vmatpush1.bf16.msra.mxu0 0
        %4510 = vmatprep.subr.bf16.mxu0 0
        %4511 = vmatpush1.bf16.msra.mxu0 0
        %4512 = vmatprep.subr.bf16.mxu0 0
        %4513 = vmatpush1.bf16.msra.mxu0 0
        %4514 = vmatprep.subr.bf16.mxu0 0
        %4515 = vmatpush1.bf16.msra.mxu0 0
        %4516 = vmatprep.subr.bf16.mxu0 0
        %4517 = vmatpush1.bf16.msra.mxu0 0
        %4518 = vmatprep.subr.bf16.mxu0 0
        %4519 = vmatpush1.bf16.msra.mxu0 0
        %4520 = vmatprep.subr.bf16.mxu0 0
        %4521 = vmatpush1.bf16.msra.mxu0 0
        %4522 = vmatprep.subr.bf16.mxu0 0
        %4523 = vmatpush1.bf16.msra.mxu0 0
        %4524 = vmatprep.mubr.bf16.mxu0 0
        %4525 = vmatmul.mubr.bf16.gmra.mrb[0].mxu0 %v840
        %v4526 = vpop.f32.mrb[0].mxu0
        %v4527 = vadd.f32 %v812, %v4526
        %v4528 = vpop.f32.mrb[0].mxu0
        %v4529 = vpop.f32.mrb[0].mxu0
        %v4530 = vadd.f32 %v817, %v4529
        %v4531 = vpop.f32.mrb[0].mxu0
        %4532 = vmatprep.mubr.bf16.mxu0 0
        %4533 = vmatmul.mubr.bf16.gmra.mrb[0].mxu0 %v843
        %v4534 = vpop.f32.mrb[0].mxu0
        %v4535 = vadd.f32 %v822, %v4534
        %v4536 = vpop.f32.mrb[0].mxu0
        %v4537 = vpop.f32.mrb[0].mxu0
        %v4538 = vadd.f32 %v827, %v4537
        %v4539 = vpop.f32.mrb[0].mxu0
        %4540 = vdwg.mxu0
        %v4541 = vmax.f32 %v4527, 0.0
        %v4542 = vmax.f32 %v4530, 0.0
        %v4543 = vmax.f32 %v4535, 0.0
        %v4544 = vmax.f32 %v4538, 0.0
        %4545 = vst [vmem:[%s463] sm:$0xff] %v4541
        %4546 = vst [vmem:[%s463 + $0x8] sm:$0xff] %v4542
        %4547 = vst [vmem:[%s463 + $0x10] sm:$0xff] %v4543
        %4548 = vst [vmem:[%s463 + $0x18] sm:$0xff] %v4544
        %s4549 = sand.u32 %s323, 1
        %s4550 = scalar_lea.sflag [#allocation3], %s4549
        %s4551 = sand.u32 %s323, 1
        %s4552 = smul.addr %s4551, 32
        %s4553 = scalar_lea.vmem [#allocation2], %s4552
        // Predicated region
        $region73: #{tpu_custom_call.1} parent=71 // pred_check
          %p4554 = pneg %p333
        $region74: #{tpu_custom_call.1} parent=71 // pred_check_branch
          %4556 = sbr.rel (%p4554) target = $region76
        $region75: #{tpu_custom_call.1} parent=71 // pred_region
          %s4558 = ssub.s32 512, 512
          %4559 = vsyncadd %s4550, %s4558
          %s4560 = smul.addr %s27, 4
          %s4561 = smul.addr %s4560, 128
          %s4562 = scalar_lea.hbm %s13, %s4561
          %s4563 = sshll.u32 %s4553, 4
          %s4564 = int_to_ptr.vmem [resolvable:$true] %s4563
          %4569 = dma.vmem_to_hbm [thread:$0]  %s4564, 512, %s4562, %s4550, 128, 128, 8
        $region76: #{tpu_custom_call.1} parent=71 // pred_fallthru
          _
      $region72: #{tpu_custom_call.1} parent=5 // pred_fallthru
        _
      %p4570 = scmp.le.s32.totalorder 2, %s22
      // Predicated region
      $region77: #{tpu_custom_call.1} parent=5 // pred_check
        %p4571 = pneg %p4570
      $region78: #{tpu_custom_call.1} parent=5 // pred_check_branch
        %4573 = sbr.rel (%p4571) target = $region80
      $region79: #{tpu_custom_call.1} parent=5 // pred_region
        %s4574 = ssub.s32 %s22, 2
        // Predicated region
        $region81: #{tpu_custom_call.1} parent=79 // pred_check
          %p4575 = pneg %p339
        $region82: #{tpu_custom_call.1} parent=79 // pred_check_branch
          %4577 = sbr.rel (%p4575) target = $region84
        $region83: #{tpu_custom_call.1} parent=79 // pred_region
          %s4578 = sand.u32 %s324, 1
          %s4579 = scalar_lea.sflag [#allocation3], %s4578
          %s4580 = sand.u32 %s324, 1
          %s4581 = smul.addr %s4580, 32
          %s4582 = scalar_lea.vmem [#allocation2], %s4581
          %4583 = dma.done %s4579, 512
        $region84: #{tpu_custom_call.1} parent=79 // pred_fallthru
          _
      $region80: #{tpu_custom_call.1} parent=5 // pred_fallthru
        _
    $region6: #{tpu_custom_call.1} parent=1 // loop_footer
      %s26 = sadd.s32 1, %s22
    $region7: #{tpu_custom_call.1} parent=1 // loop_footer_branch
      %21 = sbr.rel target = $region3
    $region8: #{tpu_custom_call.1} parent=1 // loop_exit
      _
    %4584 = vsyncpa [#allocation3], 1
    %s4585 = scalar_lea.sflag [#allocation3], 1
    %4586 = vsyncpa %s4585, 1

</llo_original>
